<compile_context>
chip_gen: v6e
topology: v6e:2x2x1
jax: 0.10.0
libtpu: 0.0.40
codegen_flags: <defaults>
</compile_context>

<pallas_src>
import functools
import math

import jax
import jax.numpy as jnp
from jax import lax
from jax.experimental import pallas as pl
from jax.experimental.pallas import tpu as pltpu

_BN_EPS = 1e-5


def _round_up(x, m):
    return (x + m - 1) // m * m


# ---------------------------------------------------------------------------
# Pallas GEMM kernel: (M,K)bf16 @ (K,N)bf16 -> f32 acc, fused bias/residual/ReLU,
# stored as o_ref.dtype (bf16 between layers).
# ---------------------------------------------------------------------------
def _gemm_kernel(a_ref, b_ref, bias_ref, *rest, relu, has_res):
    if has_res:
        res_ref, o_ref = rest
    else:
        (o_ref,) = rest
    acc = jnp.dot(a_ref[...], b_ref[...], preferred_element_type=jnp.float32)
    r = acc + bias_ref[...]
    if has_res:
        r = r + res_ref[...].astype(jnp.float32)
    if relu:
        r = jnp.maximum(r, 0.0)
    o_ref[...] = r.astype(o_ref.dtype)


def matmul_bias_act(a, w_pad, bias_pad, n_out, residual=None, relu=False,
                    out_dtype=jnp.bfloat16):
    """(M,K) @ pre-padded (Kp,Np) bf16 weight + bias (+residual) (+ReLU) -> (M, n_out).

    Full-K blocks (no K grid axis, no accumulator scratch).  M tiled at 256,
    N tile = 128 (lane-dense, unmasked stores).  Both grid axes "parallel".
    """
    M, K = a.shape
    Kp, Np = w_pad.shape

    a = a.astype(jnp.bfloat16)
    if Kp > K:
        a = jnp.pad(a, ((0, 0), (0, Kp - K)))

    if M >= 256:
        Mp, tm = _round_up(M, 256), 256
    else:
        Mp = _round_up(M, 8)
        tm = Mp
    if Mp > M:
        a = jnp.pad(a, ((0, Mp - M), (0, 0)))

    tn = min(128, Np)
    grid = (Mp // tm, Np // tn)

    in_specs = [
        pl.BlockSpec((tm, Kp), lambda i, j: (i, 0)),
        pl.BlockSpec((Kp, tn), lambda i, j: (0, j)),
        pl.BlockSpec((1, tn), lambda i, j: (0, j)),
    ]
    args = [a, w_pad, bias_pad]
    if residual is not None:
        res = residual.astype(jnp.bfloat16)
        res = jnp.pad(res, ((0, Mp - M), (0, Np - res.shape[1])))
        in_specs.append(pl.BlockSpec((tm, tn), lambda i, j: (i, j)))
        args.append(res)

    out = pl.pallas_call(
        functools.partial(_gemm_kernel, relu=relu, has_res=residual is not None),
        out_shape=jax.ShapeDtypeStruct((Mp, Np), out_dtype),
        grid=grid,
        in_specs=in_specs,
        out_specs=pl.BlockSpec((tm, tn), lambda i, j: (i, j)),
        compiler_params=pltpu.CompilerParams(
            dimension_semantics=("parallel", "parallel")),
    )(*args)
    return out[:M, :n_out]


# ---------------------------------------------------------------------------
# Conv / pooling glue (NHWC im2col in plain JAX, GEMM in Pallas)
# ---------------------------------------------------------------------------
def conv2d_nhwc(x, cp, relu=False, residual=None):
    """x: (N,H,W,C) bf16.  cp holds pre-padded bf16 GEMM weight + static geometry."""
    N, H, W, C = x.shape
    kh, kw, s, pad, cout = cp['kh'], cp['kw'], cp['stride'], cp['pad'], cp['cout']
    OH = (H + 2 * pad - kh) // s + 1
    OW = (W + 2 * pad - kw) // s + 1
    if kh == 1 and kw == 1 and pad == 0:
        patches = x[:, ::s, ::s, :][:, :OH, :OW, :].reshape(N * OH * OW, C)
    else:
        xp = jnp.pad(x, ((0, 0), (pad, pad), (pad, pad), (0, 0)))
        cols = [xp[:, dy::s, dx::s, :][:, :OH, :OW, :]
                for dy in range(kh) for dx in range(kw)]
        # K order = (KH, KW, C) -> matches weight layout prepared at build time.
        patches = jnp.concatenate(cols, axis=-1).reshape(N * OH * OW, kh * kw * C)
    res2d = residual.reshape(N * OH * OW, cout) if residual is not None else None
    out = matmul_bias_act(patches, cp['w'], cp['b'], cout,
                          residual=res2d, relu=relu)
    return out.reshape(N, OH, OW, cout)


def maxpool3x3s2(x):
    # TODO(synk): 3x3/stride-2/pad-1 max-pool kept in lax.reduce_window (plain
    # JAX); it is a tiny memory-bound window op with no MXU work to offload.
    neg_inf = jnp.array(-jnp.inf, dtype=x.dtype)
    return lax.reduce_window(
        x, neg_inf, lax.max,
        window_dimensions=(1, 3, 3, 1),
        window_strides=(1, 2, 2, 1),
        padding=((0, 0), (1, 1), (1, 1), (0, 0)))


def basic_block(x, bp):
    """ResNet basic block; residual add + final ReLU fused into conv2's GEMM."""
    out = conv2d_nhwc(x, bp['conv1'], relu=True)
    sc = conv2d_nhwc(x, bp['short'], relu=False) if 'short' in bp else x
    return conv2d_nhwc(out, bp['conv2'], relu=True, residual=sc)


# ---------------------------------------------------------------------------
# Encoder forward
# ---------------------------------------------------------------------------
def encoder_forward(x, p):
    """x: (N, C, H, W) NCHW, as in the PyTorch module.  Returns NCHW f32 features."""
    f = jnp.transpose(x, (0, 2, 3, 1)).astype(jnp.bfloat16)   # NHWC, channels on lanes
    f = conv2d_nhwc(f, p['conv1'], relu=True)                  # conv7x7/s2 + folded BN + ReLU
    f = maxpool3x3s2(f)
    for bp in p['down1']:                                      # DownBlock2d(64, 64, layers[0])
        f = basic_block(f, bp)
    for bp in p['down2']:                                      # DownBlock2d(64, 128, layers[1], downsample)
        f = basic_block(f, bp)
    return jnp.transpose(f, (0, 3, 1, 2)).astype(jnp.float32)  # back to NCHW, f32


# ---------------------------------------------------------------------------
# Deterministic parameter construction (all GEMM-side prep hoisted here)
# ---------------------------------------------------------------------------
def build_params(key, in_ch, layers):
    keys = iter(jax.random.split(key, 64))
    bn_s = 1.0 / math.sqrt(1.0 + _BN_EPS)   # eval-mode BN (mean=0, var=1, g=1, b=0) fold

    def conv_w(oc, ic, kh, kw):             # kaiming_normal_, fan_out, relu
        fan_out = oc * kh * kw
        return (math.sqrt(2.0 / fan_out) *
                jax.random.normal(next(keys), (oc, ic, kh, kw), jnp.float32))

    def make_conv(oc, ic, kh, kw, stride, pad, bias=None, bn=True):
        w = conv_w(oc, ic, kh, kw)
        b = jnp.zeros((oc,), jnp.float32) if bias is None else bias
        if bn:
            w = w * bn_s
            b = b * bn_s
        K = kh * kw * ic
        Kp, Np = _round_up(K, 16), _round_up(oc, 128)
        wg = jnp.transpose(w, (2, 3, 1, 0)).reshape(K, oc)   # (KH,KW,IC,OC) = patch order
        wg = jnp.pad(wg, ((0, Kp - K), (0, Np - oc))).astype(jnp.bfloat16)
        bg = jnp.pad(b, (0, Np - oc)).reshape(1, Np).astype(jnp.float32)
        return {'w': wg, 'b': bg, 'kh': kh, 'kw': kw,
                'stride': stride, 'pad': pad, 'cout': oc}

    def make_block(ic, oc, stride):
        blk = {'conv1': make_conv(oc, ic, 3, 3, stride, 1),
               'conv2': make_conv(oc, oc, 3, 3, 1, 1)}
        if stride != 1 or ic != oc:
            blk['short'] = make_conv(oc, ic, 1, 1, stride, 0)
        return blk

    p = {}
    conv1_bias = 0.01 * jax.random.normal(next(keys), (64,), jnp.float32)
    p['conv1'] = make_conv(64, in_ch, 7, 7, 2, 3, bias=conv1_bias)

    p['down1'] = []
    ic = 64
    for _ in range(layers[0]):
        p['down1'].append(make_block(ic, 64, 1))
        ic = 64

    p['down2'] = []
    for bi in range(layers[1]):
        stride = 2 if bi == 0 else 1
        p['down2'].append(make_block(ic, 128, stride))
        ic = 128
    return p


# ---------------------------------------------------------------------------
if __name__ == "__main__":
    B, C, H, W = 2, 3, 32, 32
    layers = [2, 2]
    x = jax.random.normal(jax.random.PRNGKey(0), (B, C, H, W), jnp.float32)
    params = build_params(jax.random.PRNGKey(1), in_ch=C, layers=layers)

    # Params are closed over (static geometry stays Python ints; small constant
    # weights get baked into the executable).
    fwd = jax.jit(lambda inp: encoder_forward(inp, params))
    out = jax.block_until_ready(fwd(x))

    assert out.shape == (B, 128, H // 8, W // 8), out.shape
    assert out.dtype == jnp.float32
    assert bool(jnp.all(jnp.isfinite(out)))
    print("KERNEL_OK")
</pallas_src>

<mosaic_0001>
module attributes {stable_mosaic.version = 11 : i64} {
  func.func @_gemm_kernel(%arg0: i32, %arg1: i32, %arg2: memref<256x160xbf16, #tpu.memory_space<vmem>>, %arg3: memref<160x128xbf16, #tpu.memory_space<vmem>>, %arg4: memref<1x128xf32, #tpu.memory_space<vmem>>, %arg5: memref<256x128xbf16, #tpu.memory_space<vmem>>) attributes {dimension_semantics = [#tpu.dimension_semantics<parallel>, #tpu.dimension_semantics<parallel>], iteration_bounds = array<i64: 2, 1>, scalar_prefetch = 0 : i64, scratch_operands = 0 : i64, tpu.core_type = #tpu.core_type<tc>, window_params = [{transform_indices = @transform_0, window_bounds = array<i64: 256, 160>}, {transform_indices = @transform_1, window_bounds = array<i64: 160, 128>}, {transform_indices = @transform_2, window_bounds = array<i64: 1, 128>}, {transform_indices = @transform_3, window_bounds = array<i64: 256, 128>}]} {
    %c0 = arith.constant 0 : index
    %c0_0 = arith.constant 0 : index
    %0 = vector.load %arg2[%c0, %c0_0] : memref<256x160xbf16, #tpu.memory_space<vmem>>, vector<256x160xbf16>
    %c0_1 = arith.constant 0 : index
    %c0_2 = arith.constant 0 : index
    %1 = vector.load %arg3[%c0_1, %c0_2] : memref<160x128xbf16, #tpu.memory_space<vmem>>, vector<160x128xbf16>
    %cst = arith.constant dense<0.000000e+00> : vector<256x128xf32>
    %2 = tpu.matmul %0, %1, %cst {dimension_numbers = #tpu.dot_dimension_numbers<[1], [0], [0], [1], [0, 0, 1, 1], [], []>} : vector<256x160xbf16>, vector<160x128xbf16>, vector<256x128xf32> -> vector<256x128xf32>
    %c0_3 = arith.constant 0 : index
    %c0_4 = arith.constant 0 : index
    %3 = vector.load %arg4[%c0_3, %c0_4] : memref<1x128xf32, #tpu.memory_space<vmem>>, vector<1x128xf32>
    %4 = vector.broadcast %3 : vector<1x128xf32> to vector<256x128xf32>
    %5 = arith.addf %2, %4 : vector<256x128xf32>
    %cst_5 = arith.constant 0.000000e+00 : f32
    %6 = vector.broadcast %cst_5 : f32 to vector<256x128xf32>
    %7 = arith.maximumf %5, %6 : vector<256x128xf32>
    %8 = arith.truncf %7 : vector<256x128xf32> to vector<256x128xbf16>
    %c0_6 = arith.constant 0 : index
    %c0_7 = arith.constant 0 : index
    %9 = vector.load %arg5[%c0_6, %c0_7] : memref<256x128xbf16, #tpu.memory_space<vmem>>, vector<256x128xbf16>
    tpu.vector_store %arg5[%c0_6, %c0_7], %8 {strides = array<i32>} : memref<256x128xbf16, #tpu.memory_space<vmem>>, vector<256x128xbf16>,
    return
  }
  func.func @transform_0(%arg0: i32, %arg1: i32) -> (i32, i32) {
    %c0_i32 = arith.constant 0 : i32
    %c0_i32_0 = arith.constant 0 : i32
    return %arg0, %c0_i32 : i32, i32
  }
  func.func @transform_1(%arg0: i32, %arg1: i32) -> (i32, i32) {
    %c0_i32 = arith.constant 0 : i32
    %c0_i32_0 = arith.constant 0 : i32
    return %c0_i32, %arg1 : i32, i32
  }
  func.func @transform_2(%arg0: i32, %arg1: i32) -> (i32, i32) {
    %c0_i32 = arith.constant 0 : i32
    %c0_i32_0 = arith.constant 0 : i32
    return %c0_i32, %arg1 : i32, i32
  }
  func.func @transform_3(%arg0: i32, %arg1: i32) -> (i32, i32) {
    %c0_i32 = arith.constant 0 : i32
    return %arg0, %arg1 : i32, i32
  }
}

module attributes {stable_mosaic.version = 11 : i64} {
  func.func @_gemm_kernel(%arg0: i32, %arg1: i32, %arg2: memref<128x576xbf16, #tpu.memory_space<vmem>>, %arg3: memref<576x128xbf16, #tpu.memory_space<vmem>>, %arg4: memref<1x128xf32, #tpu.memory_space<vmem>>, %arg5: memref<128x128xbf16, #tpu.memory_space<vmem>>) attributes {dimension_semantics = [#tpu.dimension_semantics<parallel>, #tpu.dimension_semantics<parallel>], iteration_bounds = array<i64: 1, 1>, scalar_prefetch = 0 : i64, scratch_operands = 0 : i64, tpu.core_type = #tpu.core_type<tc>, window_params = [{transform_indices = @transform_0, window_bounds = array<i64: 128, 576>}, {transform_indices = @transform_1, window_bounds = array<i64: 576, 128>}, {transform_indices = @transform_2, window_bounds = array<i64: 1, 128>}, {transform_indices = @transform_3, window_bounds = array<i64: 128, 128>}]} {
    %c0 = arith.constant 0 : index
    %c0_0 = arith.constant 0 : index
    %0 = vector.load %arg2[%c0, %c0_0] : memref<128x576xbf16, #tpu.memory_space<vmem>>, vector<128x576xbf16>
    %c0_1 = arith.constant 0 : index
    %c0_2 = arith.constant 0 : index
    %1 = vector.load %arg3[%c0_1, %c0_2] : memref<576x128xbf16, #tpu.memory_space<vmem>>, vector<576x128xbf16>
    %cst = arith.constant dense<0.000000e+00> : vector<128x128xf32>
    %2 = tpu.matmul %0, %1, %cst {dimension_numbers = #tpu.dot_dimension_numbers<[1], [0], [0], [1], [0, 0, 1, 1], [], []>} : vector<128x576xbf16>, vector<576x128xbf16>, vector<128x128xf32> -> vector<128x128xf32>
    %c0_3 = arith.constant 0 : index
    %c0_4 = arith.constant 0 : index
    %3 = vector.load %arg4[%c0_3, %c0_4] : memref<1x128xf32, #tpu.memory_space<vmem>>, vector<1x128xf32>
    %4 = vector.broadcast %3 : vector<1x128xf32> to vector<128x128xf32>
    %5 = arith.addf %2, %4 : vector<128x128xf32>
    %cst_5 = arith.constant 0.000000e+00 : f32
    %6 = vector.broadcast %cst_5 : f32 to vector<128x128xf32>
    %7 = arith.maximumf %5, %6 : vector<128x128xf32>
    %8 = arith.truncf %7 : vector<128x128xf32> to vector<128x128xbf16>
    %c0_6 = arith.constant 0 : index
    %c0_7 = arith.constant 0 : index
    %9 = vector.load %arg5[%c0_6, %c0_7] : memref<128x128xbf16, #tpu.memory_space<vmem>>, vector<128x128xbf16>
    tpu.vector_store %arg5[%c0_6, %c0_7], %8 {strides = array<i32>} : memref<128x128xbf16, #tpu.memory_space<vmem>>, vector<128x128xbf16>,
    return
  }
  func.func @transform_0(%arg0: i32, %arg1: i32) -> (i32, i32) {
    %c0_i32 = arith.constant 0 : i32
    %c0_i32_0 = arith.constant 0 : i32
    return %arg0, %c0_i32 : i32, i32
  }
  func.func @transform_1(%arg0: i32, %arg1: i32) -> (i32, i32) {
    %c0_i32 = arith.constant 0 : i32
    %c0_i32_0 = arith.constant 0 : i32
    return %c0_i32, %arg1 : i32, i32
  }
  func.func @transform_2(%arg0: i32, %arg1: i32) -> (i32, i32) {
    %c0_i32 = arith.constant 0 : i32
    %c0_i32_0 = arith.constant 0 : i32
    return %c0_i32, %arg1 : i32, i32
  }
  func.func @transform_3(%arg0: i32, %arg1: i32) -> (i32, i32) {
    %c0_i32 = arith.constant 0 : i32
    return %arg0, %arg1 : i32, i32
  }
}

module attributes {stable_mosaic.version = 11 : i64} {
  func.func @_gemm_kernel(%arg0: i32, %arg1: i32, %arg2: memref<128x576xbf16, #tpu.memory_space<vmem>>, %arg3: memref<576x128xbf16, #tpu.memory_space<vmem>>, %arg4: memref<1x128xf32, #tpu.memory_space<vmem>>, %arg5: memref<128x128xbf16, #tpu.memory_space<vmem>>, %arg6: memref<128x128xbf16, #tpu.memory_space<vmem>>) attributes {dimension_semantics = [#tpu.dimension_semantics<parallel>, #tpu.dimension_semantics<parallel>], iteration_bounds = array<i64: 1, 1>, scalar_prefetch = 0 : i64, scratch_operands = 0 : i64, tpu.core_type = #tpu.core_type<tc>, window_params = [{transform_indices = @transform_0, window_bounds = array<i64: 128, 576>}, {transform_indices = @transform_1, window_bounds = array<i64: 576, 128>}, {transform_indices = @transform_2, window_bounds = array<i64: 1, 128>}, {transform_indices = @transform_3, window_bounds = array<i64: 128, 128>}, {transform_indices = @transform_4, window_bounds = array<i64: 128, 128>}]} {
    %c0 = arith.constant 0 : index
    %c0_0 = arith.constant 0 : index
    %0 = vector.load %arg2[%c0, %c0_0] : memref<128x576xbf16, #tpu.memory_space<vmem>>, vector<128x576xbf16>
    %c0_1 = arith.constant 0 : index
    %c0_2 = arith.constant 0 : index
    %1 = vector.load %arg3[%c0_1, %c0_2] : memref<576x128xbf16, #tpu.memory_space<vmem>>, vector<576x128xbf16>
    %cst = arith.constant dense<0.000000e+00> : vector<128x128xf32>
    %2 = tpu.matmul %0, %1, %cst {dimension_numbers = #tpu.dot_dimension_numbers<[1], [0], [0], [1], [0, 0, 1, 1], [], []>} : vector<128x576xbf16>, vector<576x128xbf16>, vector<128x128xf32> -> vector<128x128xf32>
    %c0_3 = arith.constant 0 : index
    %c0_4 = arith.constant 0 : index
    %3 = vector.load %arg4[%c0_3, %c0_4] : memref<1x128xf32, #tpu.memory_space<vmem>>, vector<1x128xf32>
    %4 = vector.broadcast %3 : vector<1x128xf32> to vector<128x128xf32>
    %5 = arith.addf %2, %4 : vector<128x128xf32>
    %c0_5 = arith.constant 0 : index
    %c0_6 = arith.constant 0 : index
    %6 = vector.load %arg5[%c0_5, %c0_6] : memref<128x128xbf16, #tpu.memory_space<vmem>>, vector<128x128xbf16>
    %7 = arith.extf %6 : vector<128x128xbf16> to vector<128x128xf32>
    %8 = arith.addf %5, %7 : vector<128x128xf32>
    %cst_7 = arith.constant 0.000000e+00 : f32
    %9 = vector.broadcast %cst_7 : f32 to vector<128x128xf32>
    %10 = arith.maximumf %8, %9 : vector<128x128xf32>
    %11 = arith.truncf %10 : vector<128x128xf32> to vector<128x128xbf16>
    %c0_8 = arith.constant 0 : index
    %c0_9 = arith.constant 0 : index
    %12 = vector.load %arg6[%c0_8, %c0_9] : memref<128x128xbf16, #tpu.memory_space<vmem>>, vector<128x128xbf16>
    tpu.vector_store %arg6[%c0_8, %c0_9], %11 {strides = array<i32>} : memref<128x128xbf16, #tpu.memory_space<vmem>>, vector<128x128xbf16>,
    return
  }
  func.func @transform_0(%arg0: i32, %arg1: i32) -> (i32, i32) {
    %c0_i32 = arith.constant 0 : i32
    %c0_i32_0 = arith.constant 0 : i32
    return %arg0, %c0_i32 : i32, i32
  }
  func.func @transform_1(%arg0: i32, %arg1: i32) -> (i32, i32) {
    %c0_i32 = arith.constant 0 : i32
    %c0_i32_0 = arith.constant 0 : i32
    return %c0_i32, %arg1 : i32, i32
  }
  func.func @transform_2(%arg0: i32, %arg1: i32) -> (i32, i32) {
    %c0_i32 = arith.constant 0 : i32
    %c0_i32_0 = arith.constant 0 : i32
    return %c0_i32, %arg1 : i32, i32
  }
  func.func @transform_3(%arg0: i32, %arg1: i32) -> (i32, i32) {
    %c0_i32 = arith.constant 0 : i32
    return %arg0, %arg1 : i32, i32
  }
  func.func @transform_4(%arg0: i32, %arg1: i32) -> (i32, i32) {
    %c0_i32 = arith.constant 0 : i32
    return %arg0, %arg1 : i32, i32
  }
}

module attributes {stable_mosaic.version = 11 : i64} {
  func.func @_gemm_kernel(%arg0: i32, %arg1: i32, %arg2: memref<32x576xbf16, #tpu.memory_space<vmem>>, %arg3: memref<576x128xbf16, #tpu.memory_space<vmem>>, %arg4: memref<1x128xf32, #tpu.memory_space<vmem>>, %arg5: memref<32x128xbf16, #tpu.memory_space<vmem>>) attributes {dimension_semantics = [#tpu.dimension_semantics<parallel>, #tpu.dimension_semantics<parallel>], iteration_bounds = array<i64: 1, 1>, scalar_prefetch = 0 : i64, scratch_operands = 0 : i64, tpu.core_type = #tpu.core_type<tc>, window_params = [{transform_indices = @transform_0, window_bounds = array<i64: 32, 576>}, {transform_indices = @transform_1, window_bounds = array<i64: 576, 128>}, {transform_indices = @transform_2, window_bounds = array<i64: 1, 128>}, {transform_indices = @transform_3, window_bounds = array<i64: 32, 128>}]} {
    %c0 = arith.constant 0 : index
    %c0_0 = arith.constant 0 : index
    %0 = vector.load %arg2[%c0, %c0_0] : memref<32x576xbf16, #tpu.memory_space<vmem>>, vector<32x576xbf16>
    %c0_1 = arith.constant 0 : index
    %c0_2 = arith.constant 0 : index
    %1 = vector.load %arg3[%c0_1, %c0_2] : memref<576x128xbf16, #tpu.memory_space<vmem>>, vector<576x128xbf16>
    %cst = arith.constant dense<0.000000e+00> : vector<32x128xf32>
    %2 = tpu.matmul %0, %1, %cst {dimension_numbers = #tpu.dot_dimension_numbers<[1], [0], [0], [1], [0, 0, 1, 1], [], []>} : vector<32x576xbf16>, vector<576x128xbf16>, vector<32x128xf32> -> vector<32x128xf32>
    %c0_3 = arith.constant 0 : index
    %c0_4 = arith.constant 0 : index
    %3 = vector.load %arg4[%c0_3, %c0_4] : memref<1x128xf32, #tpu.memory_space<vmem>>, vector<1x128xf32>
    %4 = vector.broadcast %3 : vector<1x128xf32> to vector<32x128xf32>
    %5 = arith.addf %2, %4 : vector<32x128xf32>
    %cst_5 = arith.constant 0.000000e+00 : f32
    %6 = vector.broadcast %cst_5 : f32 to vector<32x128xf32>
    %7 = arith.maximumf %5, %6 : vector<32x128xf32>
    %8 = arith.truncf %7 : vector<32x128xf32> to vector<32x128xbf16>
    %c0_6 = arith.constant 0 : index
    %c0_7 = arith.constant 0 : index
    %9 = vector.load %arg5[%c0_6, %c0_7] : memref<32x128xbf16, #tpu.memory_space<vmem>>, vector<32x128xbf16>
    tpu.vector_store %arg5[%c0_6, %c0_7], %8 {strides = array<i32>} : memref<32x128xbf16, #tpu.memory_space<vmem>>, vector<32x128xbf16>,
    return
  }
  func.func @transform_0(%arg0: i32, %arg1: i32) -> (i32, i32) {
    %c0_i32 = arith.constant 0 : i32
    %c0_i32_0 = arith.constant 0 : i32
    return %arg0, %c0_i32 : i32, i32
  }
  func.func @transform_1(%arg0: i32, %arg1: i32) -> (i32, i32) {
    %c0_i32 = arith.constant 0 : i32
    %c0_i32_0 = arith.constant 0 : i32
    return %c0_i32, %arg1 : i32, i32
  }
  func.func @transform_2(%arg0: i32, %arg1: i32) -> (i32, i32) {
    %c0_i32 = arith.constant 0 : i32
    %c0_i32_0 = arith.constant 0 : i32
    return %c0_i32, %arg1 : i32, i32
  }
  func.func @transform_3(%arg0: i32, %arg1: i32) -> (i32, i32) {
    %c0_i32 = arith.constant 0 : i32
    return %arg0, %arg1 : i32, i32
  }
}

module attributes {stable_mosaic.version = 11 : i64} {
  func.func @_gemm_kernel(%arg0: i32, %arg1: i32, %arg2: memref<32x1152xbf16, #tpu.memory_space<vmem>>, %arg3: memref<1152x128xbf16, #tpu.memory_space<vmem>>, %arg4: memref<1x128xf32, #tpu.memory_space<vmem>>, %arg5: memref<32x128xbf16, #tpu.memory_space<vmem>>, %arg6: memref<32x128xbf16, #tpu.memory_space<vmem>>) attributes {dimension_semantics = [#tpu.dimension_semantics<parallel>, #tpu.dimension_semantics<parallel>], iteration_bounds = array<i64: 1, 1>, scalar_prefetch = 0 : i64, scratch_operands = 0 : i64, tpu.core_type = #tpu.core_type<tc>, window_params = [{transform_indices = @transform_0, window_bounds = array<i64: 32, 1152>}, {transform_indices = @transform_1, window_bounds = array<i64: 1152, 128>}, {transform_indices = @transform_2, window_bounds = array<i64: 1, 128>}, {transform_indices = @transform_3, window_bounds = array<i64: 32, 128>}, {transform_indices = @transform_4, window_bounds = array<i64: 32, 128>}]} {
    %c0 = arith.constant 0 : index
    %c0_0 = arith.constant 0 : index
    %0 = vector.load %arg2[%c0, %c0_0] : memref<32x1152xbf16, #tpu.memory_space<vmem>>, vector<32x1152xbf16>
    %c0_1 = arith.constant 0 : index
    %c0_2 = arith.constant 0 : index
    %1 = vector.load %arg3[%c0_1, %c0_2] : memref<1152x128xbf16, #tpu.memory_space<vmem>>, vector<1152x128xbf16>
    %cst = arith.constant dense<0.000000e+00> : vector<32x128xf32>
    %2 = tpu.matmul %0, %1, %cst {dimension_numbers = #tpu.dot_dimension_numbers<[1], [0], [0], [1], [0, 0, 1, 1], [], []>} : vector<32x1152xbf16>, vector<1152x128xbf16>, vector<32x128xf32> -> vector<32x128xf32>
    %c0_3 = arith.constant 0 : index
    %c0_4 = arith.constant 0 : index
    %3 = vector.load %arg4[%c0_3, %c0_4] : memref<1x128xf32, #tpu.memory_space<vmem>>, vector<1x128xf32>
    %4 = vector.broadcast %3 : vector<1x128xf32> to vector<32x128xf32>
    %5 = arith.addf %2, %4 : vector<32x128xf32>
    %c0_5 = arith.constant 0 : index
    %c0_6 = arith.constant 0 : index
    %6 = vector.load %arg5[%c0_5, %c0_6] : memref<32x128xbf16, #tpu.memory_space<vmem>>, vector<32x128xbf16>
    %7 = arith.extf %6 : vector<32x128xbf16> to vector<32x128xf32>
    %8 = arith.addf %5, %7 : vector<32x128xf32>
    %cst_7 = arith.constant 0.000000e+00 : f32
    %9 = vector.broadcast %cst_7 : f32 to vector<32x128xf32>
    %10 = arith.maximumf %8, %9 : vector<32x128xf32>
    %11 = arith.truncf %10 : vector<32x128xf32> to vector<32x128xbf16>
    %c0_8 = arith.constant 0 : index
    %c0_9 = arith.constant 0 : index
    %12 = vector.load %arg6[%c0_8, %c0_9] : memref<32x128xbf16, #tpu.memory_space<vmem>>, vector<32x128xbf16>
    tpu.vector_store %arg6[%c0_8, %c0_9], %11 {strides = array<i32>} : memref<32x128xbf16, #tpu.memory_space<vmem>>, vector<32x128xbf16>,
    return
  }
  func.func @transform_0(%arg0: i32, %arg1: i32) -> (i32, i32) {
    %c0_i32 = arith.constant 0 : i32
    %c0_i32_0 = arith.constant 0 : i32
    return %arg0, %c0_i32 : i32, i32
  }
  func.func @transform_1(%arg0: i32, %arg1: i32) -> (i32, i32) {
    %c0_i32 = arith.constant 0 : i32
    %c0_i32_0 = arith.constant 0 : i32
    return %c0_i32, %arg1 : i32, i32
  }
  func.func @transform_2(%arg0: i32, %arg1: i32) -> (i32, i32) {
    %c0_i32 = arith.constant 0 : i32
    %c0_i32_0 = arith.constant 0 : i32
    return %c0_i32, %arg1 : i32, i32
  }
  func.func @transform_3(%arg0: i32, %arg1: i32) -> (i32, i32) {
    %c0_i32 = arith.constant 0 : i32
    return %arg0, %arg1 : i32, i32
  }
  func.func @transform_4(%arg0: i32, %arg1: i32) -> (i32, i32) {
    %c0_i32 = arith.constant 0 : i32
    return %arg0, %arg1 : i32, i32
  }
}

module attributes {stable_mosaic.version = 11 : i64} {
  func.func @_gemm_kernel(%arg0: i32, %arg1: i32, %arg2: memref<32x64xbf16, #tpu.memory_space<vmem>>, %arg3: memref<64x128xbf16, #tpu.memory_space<vmem>>, %arg4: memref<1x128xf32, #tpu.memory_space<vmem>>, %arg5: memref<32x128xbf16, #tpu.memory_space<vmem>>) attributes {dimension_semantics = [#tpu.dimension_semantics<parallel>, #tpu.dimension_semantics<parallel>], iteration_bounds = array<i64: 1, 1>, scalar_prefetch = 0 : i64, scratch_operands = 0 : i64, tpu.core_type = #tpu.core_type<tc>, window_params = [{transform_indices = @transform_0, window_bounds = array<i64: 32, 64>}, {transform_indices = @transform_1, window_bounds = array<i64: 64, 128>}, {transform_indices = @transform_2, window_bounds = array<i64: 1, 128>}, {transform_indices = @transform_3, window_bounds = array<i64: 32, 128>}]} {
    %c0 = arith.constant 0 : index
    %c0_0 = arith.constant 0 : index
    %0 = vector.load %arg2[%c0, %c0_0] : memref<32x64xbf16, #tpu.memory_space<vmem>>, vector<32x64xbf16>
    %c0_1 = arith.constant 0 : index
    %c0_2 = arith.constant 0 : index
    %1 = vector.load %arg3[%c0_1, %c0_2] : memref<64x128xbf16, #tpu.memory_space<vmem>>, vector<64x128xbf16>
    %cst = arith.constant dense<0.000000e+00> : vector<32x128xf32>
    %2 = tpu.matmul %0, %1, %cst {dimension_numbers = #tpu.dot_dimension_numbers<[1], [0], [0], [1], [0, 0, 1, 1], [], []>} : vector<32x64xbf16>, vector<64x128xbf16>, vector<32x128xf32> -> vector<32x128xf32>
    %c0_3 = arith.constant 0 : index
    %c0_4 = arith.constant 0 : index
    %3 = vector.load %arg4[%c0_3, %c0_4] : memref<1x128xf32, #tpu.memory_space<vmem>>, vector<1x128xf32>
    %4 = vector.broadcast %3 : vector<1x128xf32> to vector<32x128xf32>
    %5 = arith.addf %2, %4 : vector<32x128xf32>
    %6 = arith.truncf %5 : vector<32x128xf32> to vector<32x128xbf16>
    %c0_5 = arith.constant 0 : index
    %c0_6 = arith.constant 0 : index
    %7 = vector.load %arg5[%c0_5, %c0_6] : memref<32x128xbf16, #tpu.memory_space<vmem>>, vector<32x128xbf16>
    tpu.vector_store %arg5[%c0_5, %c0_6], %6 {strides = array<i32>} : memref<32x128xbf16, #tpu.memory_space<vmem>>, vector<32x128xbf16>,
    return
  }
  func.func @transform_0(%arg0: i32, %arg1: i32) -> (i32, i32) {
    %c0_i32 = arith.constant 0 : i32
    %c0_i32_0 = arith.constant 0 : i32
    return %arg0, %c0_i32 : i32, i32
  }
  func.func @transform_1(%arg0: i32, %arg1: i32) -> (i32, i32) {
    %c0_i32 = arith.constant 0 : i32
    %c0_i32_0 = arith.constant 0 : i32
    return %c0_i32, %arg1 : i32, i32
  }
  func.func @transform_2(%arg0: i32, %arg1: i32) -> (i32, i32) {
    %c0_i32 = arith.constant 0 : i32
    %c0_i32_0 = arith.constant 0 : i32
    return %c0_i32, %arg1 : i32, i32
  }
  func.func @transform_3(%arg0: i32, %arg1: i32) -> (i32, i32) {
    %c0_i32 = arith.constant 0 : i32
    return %arg0, %arg1 : i32, i32
  }
}

module attributes {stable_mosaic.version = 11 : i64} {
  func.func @_gemm_kernel(%arg0: i32, %arg1: i32, %arg2: memref<32x1152xbf16, #tpu.memory_space<vmem>>, %arg3: memref<1152x128xbf16, #tpu.memory_space<vmem>>, %arg4: memref<1x128xf32, #tpu.memory_space<vmem>>, %arg5: memref<32x128xbf16, #tpu.memory_space<vmem>>) attributes {dimension_semantics = [#tpu.dimension_semantics<parallel>, #tpu.dimension_semantics<parallel>], iteration_bounds = array<i64: 1, 1>, scalar_prefetch = 0 : i64, scratch_operands = 0 : i64, tpu.core_type = #tpu.core_type<tc>, window_params = [{transform_indices = @transform_0, window_bounds = array<i64: 32, 1152>}, {transform_indices = @transform_1, window_bounds = array<i64: 1152, 128>}, {transform_indices = @transform_2, window_bounds = array<i64: 1, 128>}, {transform_indices = @transform_3, window_bounds = array<i64: 32, 128>}]} {
    %c0 = arith.constant 0 : index
    %c0_0 = arith.constant 0 : index
    %0 = vector.load %arg2[%c0, %c0_0] : memref<32x1152xbf16, #tpu.memory_space<vmem>>, vector<32x1152xbf16>
    %c0_1 = arith.constant 0 : index
    %c0_2 = arith.constant 0 : index
    %1 = vector.load %arg3[%c0_1, %c0_2] : memref<1152x128xbf16, #tpu.memory_space<vmem>>, vector<1152x128xbf16>
    %cst = arith.constant dense<0.000000e+00> : vector<32x128xf32>
    %2 = tpu.matmul %0, %1, %cst {dimension_numbers = #tpu.dot_dimension_numbers<[1], [0], [0], [1], [0, 0, 1, 1], [], []>} : vector<32x1152xbf16>, vector<1152x128xbf16>, vector<32x128xf32> -> vector<32x128xf32>
    %c0_3 = arith.constant 0 : index
    %c0_4 = arith.constant 0 : index
    %3 = vector.load %arg4[%c0_3, %c0_4] : memref<1x128xf32, #tpu.memory_space<vmem>>, vector<1x128xf32>
    %4 = vector.broadcast %3 : vector<1x128xf32> to vector<32x128xf32>
    %5 = arith.addf %2, %4 : vector<32x128xf32>
    %cst_5 = arith.constant 0.000000e+00 : f32
    %6 = vector.broadcast %cst_5 : f32 to vector<32x128xf32>
    %7 = arith.maximumf %5, %6 : vector<32x128xf32>
    %8 = arith.truncf %7 : vector<32x128xf32> to vector<32x128xbf16>
    %c0_6 = arith.constant 0 : index
    %c0_7 = arith.constant 0 : index
    %9 = vector.load %arg5[%c0_6, %c0_7] : memref<32x128xbf16, #tpu.memory_space<vmem>>, vector<32x128xbf16>
    tpu.vector_store %arg5[%c0_6, %c0_7], %8 {strides = array<i32>} : memref<32x128xbf16, #tpu.memory_space<vmem>>, vector<32x128xbf16>,
    return
  }
  func.func @transform_0(%arg0: i32, %arg1: i32) -> (i32, i32) {
    %c0_i32 = arith.constant 0 : i32
    %c0_i32_0 = arith.constant 0 : i32
    return %arg0, %c0_i32 : i32, i32
  }
  func.func @transform_1(%arg0: i32, %arg1: i32) -> (i32, i32) {
    %c0_i32 = arith.constant 0 : i32
    %c0_i32_0 = arith.constant 0 : i32
    return %c0_i32, %arg1 : i32, i32
  }
  func.func @transform_2(%arg0: i32, %arg1: i32) -> (i32, i32) {
    %c0_i32 = arith.constant 0 : i32
    %c0_i32_0 = arith.constant 0 : i32
    return %c0_i32, %arg1 : i32, i32
  }
  func.func @transform_3(%arg0: i32, %arg1: i32) -> (i32, i32) {
    %c0_i32 = arith.constant 0 : i32
    return %arg0, %arg1 : i32, i32
  }
}

</mosaic_0001>

<llo_original>
// kernel: _lambda_.10
$region0: #{_lambda_.10}
  #allocation0 [shape = 'u32[]', space=smem, size = 0x4, offset = 0x4, fixed_abs, tag = 'smem constant byte address 0x4 - core index']
  #allocation1 [shape = 'u32[144,128]{1,0:T(1,128)}', space=vmem, size = 0x12000, scoped, tag = 'internal scratch']
  %s0 = inlined_call_operand.vmem [shape: bf16[512,160], index: 0, kind: input, shape index: {}]
  %s1 = inlined_call_operand.vmem [shape: bf16[160,128], index: 1, kind: input, shape index: {}]
  %s2 = inlined_call_operand.vmem [shape: f32[1,128], index: 2, kind: input, shape index: {}]
  %s3 = inlined_call_operand.vmem [shape: bf16[512,128], index: 3, kind: output, shape index: {}]
  %s4 = sld [smem:[#allocation0]]
  $region45: #{_lambda_.10} parent=0
    _
  %s6 = ssub.s32 1, %s4
  %s7 = scalar_select 0, %s6, %s4
  loop: start=0, step=1, limit=4
  $region2: #{_lambda_.10} parent=0 // loop_pre_header
    _
  $region3: #{_lambda_.10} parent=0 // loop_header
    %s9 = sphi 0, %s13
    %p10 = scmp.ge.s32.totalorder %s9, 4
    %s16 = sphi 0, %s28
    %s17 = sphi 0, %s24
    %s18 = sphi 0, %s16
    %s19 = sphi 0, %s17
    %s20 = sphi 0, %s18
    %s21 = sphi 0, %s19
    %s31 = sphi 0, %s33
    %s34 = sphi 0, %s31
    %s35 = sphi 0, %s34
    %s51 = sphi 0, %s35
    %s57 = sphi 0, %s59
    %s60 = sphi 0, %s57
    %s61 = sphi 0, %s60
    %s77 = sphi 0, %s61
    %s83 = sphi 0, %s85
    %s86 = sphi 0, %s83
    %s87 = sphi 0, %s86
    %s103 = sphi 0, %s87
    %s111 = sphi 0, %s113
    %s114 = sphi 0, %s111
    %s115 = sphi 0, %s114
    %s131 = sphi 0, %s115
  $region4: #{_lambda_.10} parent=0 // loop_header_branch
    %12 = sbr.rel (%p10) target = $region8
  $region5: #{_lambda_.10} parent=0 // loop_body
    %s14 = ssub.s32 %s9, 1
    %s15 = ssub.s32 %s9, 2
    %s22 = sadd.s32 1, %s17
    %p23 = scmp.ge.s32.totalorder %s22, 1
    %s24 = scalar_select %p23, 0, %s22
    %s25 = sadd.s32 1, %s16
    %s26 = scalar_select %p23, %s25, %s16
    %p27 = scmp.ge.s32.totalorder %s26, 2
    %s28 = scalar_select %p27, 0, %s26
    %s29 = ssub.s32 %s16, %s28
    %p30 = scmp.eq.s32.totalorder %s29, 0
    %s32 = sadd.s32 %s31, 1
    %s33 = scalar_select %p30, %s31, %s32
    %p36 = pneg %p30
    %p37 = scmp.eq.s32.totalorder %s9, 1
    %p38 = por %p36, %p37
    %p39 = scmp.ne.s32.totalorder %s31, %s34
    %p40 = scmp.eq.s32.totalorder %s9, 0
    %p41 = por %p39, %p40
    %p42 = scmp.ne.s32.totalorder %s31, %s34
    %p43 = scmp.eq.s32.totalorder %s14, 1
    %p44 = por %p42, %p43
    %p45 = scmp.ne.s32.totalorder %s34, %s35
    %p46 = scmp.eq.s32.totalorder %s14, 0
    %p47 = por %p45, %p46
    %p48 = scmp.ne.s32.totalorder %s34, %s35
    %p49 = scmp.eq.s32.totalorder %s15, 1
    %p50 = por %p48, %p49
    %p52 = scmp.ne.s32.totalorder %s35, %s51
    %p53 = scmp.eq.s32.totalorder %s15, 0
    %p54 = por %p52, %p53
    %s55 = ssub.s32 %s17, %s24
    %p56 = scmp.eq.s32.totalorder %s55, 0
    %s58 = sadd.s32 %s57, 1
    %s59 = scalar_select %p56, %s57, %s58
    %p62 = pneg %p56
    %p63 = scmp.eq.s32.totalorder %s9, 1
    %p64 = por %p62, %p63
    %p65 = scmp.ne.s32.totalorder %s57, %s60
    %p66 = scmp.eq.s32.totalorder %s9, 0
    %p67 = por %p65, %p66
    %p68 = scmp.ne.s32.totalorder %s57, %s60
    %p69 = scmp.eq.s32.totalorder %s14, 1
    %p70 = por %p68, %p69
    %p71 = scmp.ne.s32.totalorder %s60, %s61
    %p72 = scmp.eq.s32.totalorder %s14, 0
    %p73 = por %p71, %p72
    %p74 = scmp.ne.s32.totalorder %s60, %s61
    %p75 = scmp.eq.s32.totalorder %s15, 1
    %p76 = por %p74, %p75
    %p78 = scmp.ne.s32.totalorder %s61, %s77
    %p79 = scmp.eq.s32.totalorder %s15, 0
    %p80 = por %p78, %p79
    %s81 = ssub.s32 %s17, %s24
    %p82 = scmp.eq.s32.totalorder %s81, 0
    %s84 = sadd.s32 %s83, 1
    %s85 = scalar_select %p82, %s83, %s84
    %p88 = pneg %p82
    %p89 = scmp.eq.s32.totalorder %s9, 1
    %p90 = por %p88, %p89
    %p91 = scmp.ne.s32.totalorder %s83, %s86
    %p92 = scmp.eq.s32.totalorder %s9, 0
    %p93 = por %p91, %p92
    %p94 = scmp.ne.s32.totalorder %s83, %s86
    %p95 = scmp.eq.s32.totalorder %s14, 1
    %p96 = por %p94, %p95
    %p97 = scmp.ne.s32.totalorder %s86, %s87
    %p98 = scmp.eq.s32.totalorder %s14, 0
    %p99 = por %p97, %p98
    %p100 = scmp.ne.s32.totalorder %s86, %s87
    %p101 = scmp.eq.s32.totalorder %s15, 1
    %p102 = por %p100, %p101
    %p104 = scmp.ne.s32.totalorder %s87, %s103
    %p105 = scmp.eq.s32.totalorder %s15, 0
    %p106 = por %p104, %p105
    %s107 = ssub.s32 %s16, %s28
    %s108 = ssub.s32 %s17, %s24
    %s109 = sor.u32 %s107, %s108
    %p110 = scmp.eq.s32.totalorder %s109, 0
    %s112 = sadd.s32 %s111, 1
    %s113 = scalar_select %p110, %s111, %s112
    %p116 = pneg %p110
    %p117 = scmp.eq.s32.totalorder %s9, 1
    %p118 = por %p116, %p117
    %p119 = scmp.ne.s32.totalorder %s111, %s114
    %p120 = scmp.eq.s32.totalorder %s9, 0
    %p121 = por %p119, %p120
    %p122 = scmp.ne.s32.totalorder %s111, %s114
    %p123 = scmp.eq.s32.totalorder %s14, 1
    %p124 = por %p122, %p123
    %p125 = scmp.ne.s32.totalorder %s114, %s115
    %p126 = scmp.eq.s32.totalorder %s14, 0
    %p127 = por %p125, %p126
    %p128 = scmp.ne.s32.totalorder %s114, %s115
    %p129 = scmp.eq.s32.totalorder %s15, 1
    %p130 = por %p128, %p129
    %p132 = scmp.ne.s32.totalorder %s115, %s131
    %p133 = scmp.eq.s32.totalorder %s15, 0
    %p134 = por %p132, %p133
    %p135 = scmp.le.s32.totalorder 1, %s9
    %p136 = scmp.lt.s32.totalorder %s9, 3
    %p137 = pnand %p135, %p136
    %p138 = pneg %p137
    // Predicated region
    $region9: #{_lambda_.10} parent=5 // pred_check
      _
    $region10: #{_lambda_.10} parent=5 // pred_check_branch
      %140 = sbr.rel (%p137) target = $region12
    $region11: #{_lambda_.10} parent=5 // pred_region
      %s141 = ssub.s32 %s9, 1
      // Predicated region
      $region13: #{_lambda_.10} parent=11 // pred_check
        %p142 = pneg %p73
      $region14: #{_lambda_.10} parent=11 // pred_check_branch
        %144 = sbr.rel (%p142) target = $region16
      $region15: #{_lambda_.10} parent=11 // pred_region
        %p145 = scmp.lt.s32.totalorder %s19, 0
        %s146 = scalar_select %p145, %s19, 0
        %s147 = smul.addr %s146, 4
        %s148 = scalar_lea.vmem %s1, %s147
      $region16: #{_lambda_.10} parent=11 // pred_fallthru
        _
      // Predicated region
      $region17: #{_lambda_.10} parent=11 // pred_check
        %p149 = pneg %p99
      $region18: #{_lambda_.10} parent=11 // pred_check_branch
        %151 = sbr.rel (%p149) target = $region20
      $region19: #{_lambda_.10} parent=11 // pred_region
        %p152 = scmp.lt.s32.totalorder %s19, 0
        %s153 = scalar_select %p152, %s19, 0
        %s154 = scalar_lea.vmem %s2, %s153
      $region20: #{_lambda_.10} parent=11 // pred_fallthru
        _
    $region12: #{_lambda_.10} parent=5 // pred_fallthru
      _
    %p155 = scmp.lt.s32.totalorder %s9, 2
    // Predicated region
    $region21: #{_lambda_.10} parent=5 // pred_check
      %p156 = pneg %p155
    $region22: #{_lambda_.10} parent=5 // pred_check_branch
      %158 = sbr.rel (%p156) target = $region24
    $region23: #{_lambda_.10} parent=5 // pred_region
      // Predicated region
      $region25: #{_lambda_.10} parent=23 // pred_check
        %p159 = pneg %p41
      $region26: #{_lambda_.10} parent=23 // pred_check_branch
        %161 = sbr.rel (%p159) target = $region28
      $region27: #{_lambda_.10} parent=23 // pred_region
        %s162 = smul.u32 32, %s16
        %p163 = scmp.lt.s32.totalorder %s162, 63
        %s164 = scalar_select %p163, %s162, 63
        %s165 = smul.addr %s164, 2
        %s166 = smul.addr %s165, 4
        %s167 = scalar_lea.vmem %s0, %s166
        %s168 = smul.u32 32, %s16
      $region28: #{_lambda_.10} parent=23 // pred_fallthru
        _
    $region24: #{_lambda_.10} parent=5 // pred_fallthru
      _
    %p169 = scmp.le.s32.totalorder 1, %s9
    %p170 = scmp.lt.s32.totalorder %s9, 3
    %p171 = pnand %p169, %p170
    %p172 = pneg %p171
    // Predicated region
    $region29: #{_lambda_.10} parent=5 // pred_check
      _
    $region30: #{_lambda_.10} parent=5 // pred_check_branch
      %174 = sbr.rel (%p171) target = $region32
    $region31: #{_lambda_.10} parent=5 // pred_region
      %s175 = ssub.s32 %s9, 1
      %s176 = smul.u32 32, %s18
      %p177 = scmp.lt.s32.totalorder %s176, 63
      %s178 = scalar_select %p177, %s176, 63
      %s179 = smul.addr %s178, 2
      %s180 = smul.addr %s179, 4
      %s181 = scalar_lea.vmem %s0, %s180
      %p182 = pneg %p47
      %p183 = pneg %p44
      %p184 = scmp.lt.s32.totalorder %s19, 0
      %s185 = scalar_select %p184, %s19, 0
      %s186 = smul.addr %s185, 4
      %s187 = scalar_lea.vmem %s1, %s186
      %p188 = pneg %p73
      %p189 = pneg %p70
      %p190 = scmp.lt.s32.totalorder %s19, 0
      %s191 = scalar_select %p190, %s19, 0
      %s192 = scalar_lea.vmem %s2, %s191
      %p193 = pneg %p99
      %p194 = pneg %p96
      %p195 = pneg %p127
      %p196 = pneg %p124
      %s197 = smul.u32 32, %s18
      %p198 = scmp.lt.s32.totalorder %s197, 63
      %s199 = scalar_select %p198, %s197, 63
      %p200 = scmp.lt.s32.totalorder %s19, 0
      %s201 = scalar_select %p200, %s19, 0
      %s202 = sadd.s32 %s201, %s199
      %s203 = smul.addr %s202, 4
      %s204 = scalar_lea.vmem %s3, %s203
      %s205 = smul.u32 32, %s18
      %p206 = scmp.lt.s32.totalorder %s205, 63
      %s207 = scalar_select %p206, %s205, 63
      %s208 = smul.addr %s207, 2
      %s209 = smul.addr %s208, 4
      %s210 = scalar_lea.vmem %s0, %s209
      %s211 = smul.u32 32, %s18
      %p212 = scmp.lt.s32.totalorder %s19, 0
      %s213 = scalar_select %p212, %s19, 0
      %s214 = smul.addr %s213, 4
      %s215 = scalar_lea.vmem %s1, %s214
      %p216 = scmp.lt.s32.totalorder %s19, 0
      %s217 = scalar_select %p216, %s19, 0
      %s218 = scalar_lea.vmem %s2, %s217
      %s219 = smul.u32 32, %s18
      %p220 = scmp.lt.s32.totalorder %s219, 63
      %s221 = scalar_select %p220, %s219, 63
      %p222 = scmp.lt.s32.totalorder %s19, 0
      %s223 = scalar_select %p222, %s19, 0
      %s224 = sadd.s32 %s223, %s221
      %s225 = smul.addr %s224, 4
      %s226 = scalar_lea.vmem %s3, %s225
      %s227 = smul.u32 32, %s18
      %v229 = vld [vmem:[%s210] sm:$0xff]
      %v230 = vld [vmem:[%s210 + $0x8] sm:$0xff]
      %v231 = vld [vmem:[%s210 + $0x10] sm:$0xff]
      %v232 = vld [vmem:[%s210 + $0x18] sm:$0xff]
      %v233 = vld [vmem:[%s210 + $0x20] sm:$0xff]
      %v234 = vld [vmem:[%s210 + $0x28] sm:$0xff]
      %v235 = vld [vmem:[%s210 + $0x30] sm:$0xff]
      %v236 = vld [vmem:[%s210 + $0x38] sm:$0xff]
      %v237 = vld [vmem:[%s210 + $0x40] sm:$0xff]
      %v238 = vld [vmem:[%s210 + $0x48] sm:$0xff]
      %v239 = vld [vmem:[%s210 + $0x50] sm:$0xff]
      %v240 = vld [vmem:[%s210 + $0x58] sm:$0xff]
      %v241 = vld [vmem:[%s210 + $0x60] sm:$0xff]
      %v242 = vld [vmem:[%s210 + $0x68] sm:$0xff]
      %v243 = vld [vmem:[%s210 + $0x70] sm:$0xff]
      %v244 = vld [vmem:[%s210 + $0x78] sm:$0xff]
      %v245 = vld [vmem:[%s210 + $0x80] sm:$0xff]
      %v246 = vld [vmem:[%s210 + $0x88] sm:$0xff]
      %v247 = vld [vmem:[%s210 + $0x90] sm:$0xff]
      %v248 = vld [vmem:[%s210 + $0x98] sm:$0xff]
      %v249 = vld [vmem:[%s210 + $0xa0] sm:$0xff]
      %v250 = vld [vmem:[%s210 + $0xa8] sm:$0xff]
      %v251 = vld [vmem:[%s210 + $0xb0] sm:$0xff]
      %v252 = vld [vmem:[%s210 + $0xb8] sm:$0xff]
      %v253 = vld [vmem:[%s210 + $0xc0] sm:$0xff]
      %v254 = vld [vmem:[%s210 + $0xc8] sm:$0xff]
      %v255 = vld [vmem:[%s210 + $0xd0] sm:$0xff]
      %v256 = vld [vmem:[%s210 + $0xd8] sm:$0xff]
      %v257 = vld [vmem:[%s210 + $0xe0] sm:$0xff]
      %v258 = vld [vmem:[%s210 + $0xe8] sm:$0xff]
      %v259 = vld [vmem:[%s210 + $0xf0] sm:$0xff]
      %v260 = vld [vmem:[%s210 + $0xf8] sm:$0xff]
      %v261 = vld [vmem:[%s215] sm:$0xf]
      %v262 = vld [vmem:[%s215 + $0x4] sm:$0xf]
      %v263 = vld [vmem:[%s215 + $0x8] sm:$0xf]
      %v264 = vld [vmem:[%s215 + $0xc] sm:$0xf]
      %v265 = vld [vmem:[%s215 + $0x10] sm:$0xf]
      %v266 = vld [vmem:[%s215 + $0x14] sm:$0xf]
      %v267 = vld [vmem:[%s215 + $0x18] sm:$0xf]
      %v268 = vld [vmem:[%s215 + $0x1c] sm:$0xf]
      %v269 = vld [vmem:[%s215 + $0x20] sm:$0xf]
      %v270 = vld [vmem:[%s215 + $0x24] sm:$0xf]
      %v271 = vld [vmem:[%s215 + $0x28] sm:$0xf]
      %v272 = vld [vmem:[%s215 + $0x2c] sm:$0xf]
      %v273 = vld [vmem:[%s215 + $0x30] sm:$0xf]
      %v274 = vld [vmem:[%s215 + $0x34] sm:$0xf]
      %v275 = vld [vmem:[%s215 + $0x38] sm:$0xf]
      %v276 = vld [vmem:[%s215 + $0x3c] sm:$0xf]
      %v277 = vld [vmem:[%s215 + $0x40] sm:$0xf]
      %v278 = vld [vmem:[%s215 + $0x44] sm:$0xf]
      %v279 = vld [vmem:[%s215 + $0x48] sm:$0xf]
      %v280 = vld [vmem:[%s215 + $0x4c] sm:$0xf]
      %v281 = vld [vmem:[%s218] sm:$0x1]
      %v283 = vlaneseq
      %v284 = vshrl.u32 %v283, 7
      %v285 = vsub.s32 0, %v284
      %v286 = vrot.slane %v281, %v285
      %v320 = vunpack.c.l.b16 %v229
      %v321 = vunpack.c.h.b16 %v229
      %v322 = vunpack.c.l.b16 %v230
      %v323 = vunpack.c.h.b16 %v230
      %v324 = vunpack.c.l.b16 %v231
      %v325 = vunpack.c.h.b16 %v231
      %v326 = vunpack.c.l.b16 %v232
      %v327 = vunpack.c.h.b16 %v232
      %v328 = vunpack.c.l.b16 %v233
      %v329 = vunpack.c.h.b16 %v233
      %v330 = vunpack.c.l.b16 %v234
      %v331 = vunpack.c.h.b16 %v234
      %v332 = vunpack.c.l.b16 %v235
      %v333 = vunpack.c.h.b16 %v235
      %v334 = vunpack.c.l.b16 %v236
      %v335 = vunpack.c.h.b16 %v236
      %v336 = vunpack.c.l.b16 %v237
      %v337 = vunpack.c.h.b16 %v237
      %v338 = vunpack.c.l.b16 %v238
      %v339 = vunpack.c.h.b16 %v238
      %v340 = vunpack.c.l.b16 %v239
      %v341 = vunpack.c.h.b16 %v239
      %v342 = vunpack.c.l.b16 %v240
      %v343 = vunpack.c.h.b16 %v240
      %v344 = vunpack.c.l.b16 %v241
      %v345 = vunpack.c.h.b16 %v241
      %v346 = vunpack.c.l.b16 %v242
      %v347 = vunpack.c.h.b16 %v242
      %v348 = vunpack.c.l.b16 %v243
      %v349 = vunpack.c.h.b16 %v243
      %v350 = vunpack.c.l.b16 %v244
      %v351 = vunpack.c.h.b16 %v244
      %v352 = vunpack.c.l.b16 %v245
      %v353 = vunpack.c.h.b16 %v245
      %v354 = vunpack.c.l.b16 %v246
      %v355 = vunpack.c.h.b16 %v246
      %v356 = vunpack.c.l.b16 %v247
      %v357 = vunpack.c.h.b16 %v247
      %v358 = vunpack.c.l.b16 %v248
      %v359 = vunpack.c.h.b16 %v248
      %v360 = vunpack.c.l.b16 %v249
      %v361 = vunpack.c.h.b16 %v249
      %v362 = vunpack.c.l.b16 %v250
      %v363 = vunpack.c.h.b16 %v250
      %v364 = vunpack.c.l.b16 %v251
      %v365 = vunpack.c.h.b16 %v251
      %v366 = vunpack.c.l.b16 %v252
      %v367 = vunpack.c.h.b16 %v252
      %v368 = vunpack.c.l.b16 %v253
      %v369 = vunpack.c.h.b16 %v253
      %v370 = vunpack.c.l.b16 %v254
      %v371 = vunpack.c.h.b16 %v254
      %v372 = vunpack.c.l.b16 %v255
      %v373 = vunpack.c.h.b16 %v255
      %v374 = vunpack.c.l.b16 %v256
      %v375 = vunpack.c.h.b16 %v256
      %v376 = vunpack.c.l.b16 %v257
      %v377 = vunpack.c.h.b16 %v257
      %v378 = vunpack.c.l.b16 %v258
      %v379 = vunpack.c.h.b16 %v258
      %v380 = vunpack.c.l.b16 %v259
      %v381 = vunpack.c.h.b16 %v259
      %v382 = vunpack.c.l.b16 %v260
      %v383 = vunpack.c.h.b16 %v260
      %v384 = vpack.c.b16 %v322, %v320
      %v385 = vpack.c.b16 %v323, %v321
      %v386 = vpack.c.b16 %v326, %v324
      %v387 = vpack.c.b16 %v327, %v325
      %v388 = vpack.c.b16 %v330, %v328
      %v389 = vpack.c.b16 %v331, %v329
      %v390 = vpack.c.b16 %v334, %v332
      %v391 = vpack.c.b16 %v335, %v333
      %v392 = vpack.c.b16 %v338, %v336
      %v393 = vpack.c.b16 %v339, %v337
      %v394 = vpack.c.b16 %v342, %v340
      %v395 = vpack.c.b16 %v343, %v341
      %v396 = vpack.c.b16 %v346, %v344
      %v397 = vpack.c.b16 %v347, %v345
      %v398 = vpack.c.b16 %v350, %v348
      %v399 = vpack.c.b16 %v351, %v349
      %v400 = vpack.c.b16 %v354, %v352
      %v401 = vpack.c.b16 %v355, %v353
      %v402 = vpack.c.b16 %v358, %v356
      %v403 = vpack.c.b16 %v359, %v357
      %v404 = vpack.c.b16 %v362, %v360
      %v405 = vpack.c.b16 %v363, %v361
      %v406 = vpack.c.b16 %v366, %v364
      %v407 = vpack.c.b16 %v367, %v365
      %v408 = vpack.c.b16 %v370, %v368
      %v409 = vpack.c.b16 %v371, %v369
      %v410 = vpack.c.b16 %v374, %v372
      %v411 = vpack.c.b16 %v375, %v373
      %v412 = vpack.c.b16 %v378, %v376
      %v413 = vpack.c.b16 %v379, %v377
      %v414 = vpack.c.b16 %v382, %v380
      %v415 = vpack.c.b16 %v383, %v381
      %v452 = vunpack.c.l.b16 %v261
      %v453 = vunpack.c.l.b16 %v262
      %v454 = vunpack.c.l.b16 %v263
      %v455 = vunpack.c.l.b16 %v264
      %v456 = vunpack.c.l.b16 %v265
      %v457 = vunpack.c.l.b16 %v266
      %v458 = vunpack.c.l.b16 %v267
      %v459 = vunpack.c.l.b16 %v268
      %v460 = vunpack.c.l.b16 %v269
      %v461 = vunpack.c.l.b16 %v270
      %v462 = vunpack.c.l.b16 %v271
      %v463 = vunpack.c.l.b16 %v272
      %v464 = vunpack.c.l.b16 %v273
      %v465 = vunpack.c.l.b16 %v274
      %v466 = vunpack.c.l.b16 %v275
      %v467 = vunpack.c.l.b16 %v276
      %v468 = vunpack.c.l.b16 %v277
      %v469 = vunpack.c.l.b16 %v278
      %v470 = vunpack.c.l.b16 %v279
      %v471 = vunpack.c.l.b16 %v280
      %v472 = vpack.c.b16 %v453, %v452
      %v473 = vpack.c.b16 %v455, %v454
      %v474 = vpack.c.b16 %v457, %v456
      %v475 = vpack.c.b16 %v459, %v458
      %v476 = vpack.c.b16 %v461, %v460
      %v477 = vpack.c.b16 %v463, %v462
      %v478 = vpack.c.b16 %v465, %v464
      %v479 = vpack.c.b16 %v467, %v466
      %v480 = vpack.c.b16 %v469, %v468
      %v481 = vpack.c.b16 %v471, %v470
      %vm492 = vcmask 261120
      %v494 = vsel %vm492, %v385, 0
      %v497 = vsel %vm492, %v387, 0
      %v500 = vsel %vm492, %v389, 0
      %v503 = vsel %vm492, %v391, 0
      %v506 = vsel %vm492, %v393, 0
      %v509 = vsel %vm492, %v395, 0
      %v512 = vsel %vm492, %v397, 0
      %v515 = vsel %vm492, %v399, 0
      %v518 = vsel %vm492, %v401, 0
      %v521 = vsel %vm492, %v403, 0
      %v524 = vsel %vm492, %v405, 0
      %v527 = vsel %vm492, %v407, 0
      %v530 = vsel %vm492, %v409, 0
      %v533 = vsel %vm492, %v411, 0
      %v536 = vsel %vm492, %v413, 0
      %v539 = vsel %vm492, %v415, 0
      %541 = vmatprep.subr.bf16.mxu0 0
      %542 = vmatpush1.bf16.msra.mxu0 %v479
      %543 = vmatprep.subr.bf16.mxu0 0
      %544 = vmatpush1.bf16.msra.mxu0 %v478
      %545 = vmatprep.subr.bf16.mxu0 0
      %546 = vmatpush1.bf16.msra.mxu0 %v477
      %547 = vmatprep.subr.bf16.mxu0 0
      %548 = vmatpush1.bf16.msra.mxu0 %v476
      %549 = vmatprep.subr.bf16.mxu0 0
      %550 = vmatpush1.bf16.msra.mxu0 %v475
      %551 = vmatprep.subr.bf16.mxu0 0
      %552 = vmatpush1.bf16.msra.mxu0 %v474
      %553 = vmatprep.subr.bf16.mxu0 0
      %554 = vmatpush1.bf16.msra.mxu0 %v473
      %555 = vmatprep.subr.bf16.mxu0 0
      %556 = vmatpush1.bf16.msra.mxu0 %v472
      %557 = vmatprep.subr.bf16.mxu0 0
      %558 = vmatpush2.bf16.msra.mxu0 0
      %559 = vmatprep.subr.bf16.mxu0 0
      %560 = vmatpush2.bf16.msra.mxu0 0
      %561 = vmatprep.subr.bf16.mxu0 0
      %562 = vmatpush2.bf16.msra.mxu0 0
      %563 = vmatprep.subr.bf16.mxu0 0
      %564 = vmatpush2.bf16.msra.mxu0 0
      %565 = vmatprep.subr.bf16.mxu0 0
      %566 = vmatpush2.bf16.msra.mxu0 0
      %567 = vmatprep.subr.bf16.mxu0 0
      %568 = vmatpush2.bf16.msra.mxu0 0
      %569 = vmatprep.subr.bf16.mxu0 0
      %570 = vmatpush2.bf16.msra.mxu0 %v481
      %571 = vmatprep.subr.bf16.mxu0 0
      %572 = vmatpush2.bf16.msra.mxu0 %v480
      %573 = vmatprep.mubr.bf16.mxu0 %v494
      %574 = vmatmul.mubr.bf16.gmra.mxu0 %v384
      %v575 = vpop.f32.mrf.mxu0
      %v576 = vadd.f32 %v286, %v575
      %v577 = vpop.f32.mrf.mxu0
      %v578 = vpop.f32.mrf.mxu0
      %v579 = vadd.f32 %v286, %v578
      %v580 = vpop.f32.mrf.mxu0
      %581 = vmatprep.mubr.bf16.mxu0 %v497
      %582 = vmatmul.mubr.bf16.gmra.mxu0 %v386
      %v583 = vpop.f32.mrf.mxu0
      %v584 = vadd.f32 %v286, %v583
      %v585 = vpop.f32.mrf.mxu0
      %v586 = vpop.f32.mrf.mxu0
      %v587 = vadd.f32 %v286, %v586
      %v588 = vpop.f32.mrf.mxu0
      %589 = vmatprep.mubr.bf16.mxu0 %v500
      %590 = vmatmul.mubr.bf16.gmra.mxu0 %v388
      %v591 = vpop.f32.mrf.mxu0
      %v592 = vadd.f32 %v286, %v591
      %v593 = vpop.f32.mrf.mxu0
      %v594 = vpop.f32.mrf.mxu0
      %v595 = vadd.f32 %v286, %v594
      %v596 = vpop.f32.mrf.mxu0
      %597 = vmatprep.mubr.bf16.mxu0 %v503
      %598 = vmatmul.mubr.bf16.gmra.mxu0 %v390
      %v599 = vpop.f32.mrf.mxu0
      %v600 = vadd.f32 %v286, %v599
      %v601 = vpop.f32.mrf.mxu0
      %v602 = vpop.f32.mrf.mxu0
      %v603 = vadd.f32 %v286, %v602
      %v604 = vpop.f32.mrf.mxu0
      %605 = vmatprep.mubr.bf16.mxu0 %v506
      %606 = vmatmul.mubr.bf16.gmra.mxu0 %v392
      %v607 = vpop.f32.mrf.mxu0
      %v608 = vadd.f32 %v286, %v607
      %v609 = vpop.f32.mrf.mxu0
      %v610 = vpop.f32.mrf.mxu0
      %v611 = vadd.f32 %v286, %v610
      %v612 = vpop.f32.mrf.mxu0
      %613 = vmatprep.mubr.bf16.mxu0 %v509
      %614 = vmatmul.mubr.bf16.gmra.mxu0 %v394
      %v615 = vpop.f32.mrf.mxu0
      %v616 = vadd.f32 %v286, %v615
      %v617 = vpop.f32.mrf.mxu0
      %v618 = vpop.f32.mrf.mxu0
      %v619 = vadd.f32 %v286, %v618
      %v620 = vpop.f32.mrf.mxu0
      %621 = vmatprep.mubr.bf16.mxu0 %v512
      %622 = vmatmul.mubr.bf16.gmra.mxu0 %v396
      %v623 = vpop.f32.mrf.mxu0
      %v624 = vadd.f32 %v286, %v623
      %v625 = vpop.f32.mrf.mxu0
      %v626 = vpop.f32.mrf.mxu0
      %v627 = vadd.f32 %v286, %v626
      %v628 = vpop.f32.mrf.mxu0
      %629 = vmatprep.mubr.bf16.mxu0 %v515
      %630 = vmatmul.mubr.bf16.gmra.mxu0 %v398
      %v631 = vpop.f32.mrf.mxu0
      %v632 = vadd.f32 %v286, %v631
      %v633 = vpop.f32.mrf.mxu0
      %v634 = vpop.f32.mrf.mxu0
      %v635 = vadd.f32 %v286, %v634
      %v636 = vpop.f32.mrf.mxu0
      %637 = vmatprep.mubr.bf16.mxu0 %v518
      %638 = vmatmul.mubr.bf16.gmra.mxu0 %v400
      %v639 = vpop.f32.mrf.mxu0
      %v640 = vadd.f32 %v286, %v639
      %v641 = vpop.f32.mrf.mxu0
      %v642 = vpop.f32.mrf.mxu0
      %v643 = vadd.f32 %v286, %v642
      %v644 = vpop.f32.mrf.mxu0
      %645 = vmatprep.mubr.bf16.mxu0 %v521
      %646 = vmatmul.mubr.bf16.gmra.mxu0 %v402
      %v647 = vpop.f32.mrf.mxu0
      %v648 = vadd.f32 %v286, %v647
      %v649 = vpop.f32.mrf.mxu0
      %v650 = vpop.f32.mrf.mxu0
      %v651 = vadd.f32 %v286, %v650
      %v652 = vpop.f32.mrf.mxu0
      %653 = vmatprep.mubr.bf16.mxu0 %v524
      %654 = vmatmul.mubr.bf16.gmra.mxu0 %v404
      %v655 = vpop.f32.mrf.mxu0
      %v656 = vadd.f32 %v286, %v655
      %v657 = vpop.f32.mrf.mxu0
      %v658 = vpop.f32.mrf.mxu0
      %v659 = vadd.f32 %v286, %v658
      %v660 = vpop.f32.mrf.mxu0
      %661 = vmatprep.mubr.bf16.mxu0 %v527
      %662 = vmatmul.mubr.bf16.gmra.mxu0 %v406
      %v663 = vpop.f32.mrf.mxu0
      %v664 = vadd.f32 %v286, %v663
      %v665 = vpop.f32.mrf.mxu0
      %v666 = vpop.f32.mrf.mxu0
      %v667 = vadd.f32 %v286, %v666
      %v668 = vpop.f32.mrf.mxu0
      %669 = vmatprep.mubr.bf16.mxu0 %v530
      %670 = vmatmul.mubr.bf16.gmra.mxu0 %v408
      %v671 = vpop.f32.mrf.mxu0
      %v672 = vadd.f32 %v286, %v671
      %v673 = vpop.f32.mrf.mxu0
      %v674 = vpop.f32.mrf.mxu0
      %v675 = vadd.f32 %v286, %v674
      %v676 = vpop.f32.mrf.mxu0
      %677 = vmatprep.mubr.bf16.mxu0 %v533
      %678 = vmatmul.mubr.bf16.gmra.mxu0 %v410
      %v679 = vpop.f32.mrf.mxu0
      %v680 = vadd.f32 %v286, %v679
      %v681 = vpop.f32.mrf.mxu0
      %v682 = vpop.f32.mrf.mxu0
      %v683 = vadd.f32 %v286, %v682
      %v684 = vpop.f32.mrf.mxu0
      %685 = vmatprep.mubr.bf16.mxu0 %v536
      %686 = vmatmul.mubr.bf16.gmra.mxu0 %v412
      %v687 = vpop.f32.mrf.mxu0
      %v688 = vadd.f32 %v286, %v687
      %v689 = vpop.f32.mrf.mxu0
      %v690 = vpop.f32.mrf.mxu0
      %v691 = vadd.f32 %v286, %v690
      %v692 = vpop.f32.mrf.mxu0
      %693 = vmatprep.mubr.bf16.mxu0 %v539
      %694 = vmatmul.mubr.bf16.gmra.mxu0 %v414
      %v695 = vpop.f32.mrf.mxu0
      %v696 = vadd.f32 %v286, %v695
      %v697 = vpop.f32.mrf.mxu0
      %v698 = vpop.f32.mrf.mxu0
      %v699 = vadd.f32 %v286, %v698
      %v700 = vpop.f32.mrf.mxu0
      %701 = vdwg.mxu0
      %v702 = vmax.f32 %v576, 0.0
      %v703 = vmax.f32 %v579, 0.0
      %v704 = vmax.f32 %v584, 0.0
      %v705 = vmax.f32 %v587, 0.0
      %v706 = vmax.f32 %v592, 0.0
      %v707 = vmax.f32 %v595, 0.0
      %v708 = vmax.f32 %v600, 0.0
      %v709 = vmax.f32 %v603, 0.0
      %v710 = vmax.f32 %v608, 0.0
      %v711 = vmax.f32 %v611, 0.0
      %v712 = vmax.f32 %v616, 0.0
      %v713 = vmax.f32 %v619, 0.0
      %v714 = vmax.f32 %v624, 0.0
      %v715 = vmax.f32 %v627, 0.0
      %v716 = vmax.f32 %v632, 0.0
      %v717 = vmax.f32 %v635, 0.0
      %v718 = vmax.f32 %v640, 0.0
      %v719 = vmax.f32 %v643, 0.0
      %v720 = vmax.f32 %v648, 0.0
      %v721 = vmax.f32 %v651, 0.0
      %v722 = vmax.f32 %v656, 0.0
      %v723 = vmax.f32 %v659, 0.0
      %v724 = vmax.f32 %v664, 0.0
      %v725 = vmax.f32 %v667, 0.0
      %v726 = vmax.f32 %v672, 0.0
      %v727 = vmax.f32 %v675, 0.0
      %v728 = vmax.f32 %v680, 0.0
      %v729 = vmax.f32 %v683, 0.0
      %v730 = vmax.f32 %v688, 0.0
      %v731 = vmax.f32 %v691, 0.0
      %v732 = vmax.f32 %v696, 0.0
      %v733 = vmax.f32 %v699, 0.0
      %v734 = vpack.c.bf16 %v703, %v702
      %v735 = vpack.c.bf16 %v705, %v704
      %v736 = vpack.c.bf16 %v707, %v706
      %v737 = vpack.c.bf16 %v709, %v708
      %v738 = vpack.c.bf16 %v711, %v710
      %v739 = vpack.c.bf16 %v713, %v712
      %v740 = vpack.c.bf16 %v715, %v714
      %v741 = vpack.c.bf16 %v717, %v716
      %v742 = vpack.c.bf16 %v719, %v718
      %v743 = vpack.c.bf16 %v721, %v720
      %v744 = vpack.c.bf16 %v723, %v722
      %v745 = vpack.c.bf16 %v725, %v724
      %v746 = vpack.c.bf16 %v727, %v726
      %v747 = vpack.c.bf16 %v729, %v728
      %v748 = vpack.c.bf16 %v731, %v730
      %v749 = vpack.c.bf16 %v733, %v732
      %v766 = vunpack.c.l.b16 %v734
      %v767 = vunpack.c.h.b16 %v734
      %v768 = vunpack.c.l.b16 %v735
      %v769 = vunpack.c.h.b16 %v735
      %v770 = vunpack.c.l.b16 %v736
      %v771 = vunpack.c.h.b16 %v736
      %v772 = vunpack.c.l.b16 %v737
      %v773 = vunpack.c.h.b16 %v737
      %v774 = vunpack.c.l.b16 %v738
      %v775 = vunpack.c.h.b16 %v738
      %v776 = vunpack.c.l.b16 %v739
      %v777 = vunpack.c.h.b16 %v739
      %v778 = vunpack.c.l.b16 %v740
      %v779 = vunpack.c.h.b16 %v740
      %v780 = vunpack.c.l.b16 %v741
      %v781 = vunpack.c.h.b16 %v741
      %v782 = vunpack.c.l.b16 %v742
      %v783 = vunpack.c.h.b16 %v742
      %v784 = vunpack.c.l.b16 %v743
      %v785 = vunpack.c.h.b16 %v743
      %v786 = vunpack.c.l.b16 %v744
      %v787 = vunpack.c.h.b16 %v744
      %v788 = vunpack.c.l.b16 %v745
      %v789 = vunpack.c.h.b16 %v745
      %v790 = vunpack.c.l.b16 %v746
      %v791 = vunpack.c.h.b16 %v746
      %v792 = vunpack.c.l.b16 %v747
      %v793 = vunpack.c.h.b16 %v747
      %v794 = vunpack.c.l.b16 %v748
      %v795 = vunpack.c.h.b16 %v748
      %v796 = vunpack.c.l.b16 %v749
      %v797 = vunpack.c.h.b16 %v749
      %v798 = vpack.c.b16 %v766, %v766
      %v799 = vpack.c.b16 %v767, %v767
      %v800 = vpack.c.b16 %v768, %v768
      %v801 = vpack.c.b16 %v769, %v769
      %v802 = vpack.c.b16 %v770, %v770
      %v803 = vpack.c.b16 %v771, %v771
      %v804 = vpack.c.b16 %v772, %v772
      %v805 = vpack.c.b16 %v773, %v773
      %v806 = vpack.c.b16 %v774, %v774
      %v807 = vpack.c.b16 %v775, %v775
      %v808 = vpack.c.b16 %v776, %v776
      %v809 = vpack.c.b16 %v777, %v777
      %v810 = vpack.c.b16 %v778, %v778
      %v811 = vpack.c.b16 %v779, %v779
      %v812 = vpack.c.b16 %v780, %v780
      %v813 = vpack.c.b16 %v781, %v781
      %v814 = vpack.c.b16 %v782, %v782
      %v815 = vpack.c.b16 %v783, %v783
      %v816 = vpack.c.b16 %v784, %v784
      %v817 = vpack.c.b16 %v785, %v785
      %v818 = vpack.c.b16 %v786, %v786
      %v819 = vpack.c.b16 %v787, %v787
      %v820 = vpack.c.b16 %v788, %v788
      %v821 = vpack.c.b16 %v789, %v789
      %v822 = vpack.c.b16 %v790, %v790
      %v823 = vpack.c.b16 %v791, %v791
      %v824 = vpack.c.b16 %v792, %v792
      %v825 = vpack.c.b16 %v793, %v793
      %v826 = vpack.c.b16 %v794, %v794
      %v827 = vpack.c.b16 %v795, %v795
      %v828 = vpack.c.b16 %v796, %v796
      %v829 = vpack.c.b16 %v797, %v797
      %862 = vst [vmem:[%s226] sm:$0xf] %v798
      %863 = vst [vmem:[%s226 + $0x4] sm:$0xf] %v799
      %864 = vst [vmem:[%s226 + $0x8] sm:$0xf] %v800
      %865 = vst [vmem:[%s226 + $0xc] sm:$0xf] %v801
      %866 = vst [vmem:[%s226 + $0x10] sm:$0xf] %v802
      %867 = vst [vmem:[%s226 + $0x14] sm:$0xf] %v803
      %868 = vst [vmem:[%s226 + $0x18] sm:$0xf] %v804
      %869 = vst [vmem:[%s226 + $0x1c] sm:$0xf] %v805
      %870 = vst [vmem:[%s226 + $0x20] sm:$0xf] %v806
      %871 = vst [vmem:[%s226 + $0x24] sm:$0xf] %v807
      %872 = vst [vmem:[%s226 + $0x28] sm:$0xf] %v808
      %873 = vst [vmem:[%s226 + $0x2c] sm:$0xf] %v809
      %874 = vst [vmem:[%s226 + $0x30] sm:$0xf] %v810
      %875 = vst [vmem:[%s226 + $0x34] sm:$0xf] %v811
      %876 = vst [vmem:[%s226 + $0x38] sm:$0xf] %v812
      %877 = vst [vmem:[%s226 + $0x3c] sm:$0xf] %v813
      %878 = vst [vmem:[%s226 + $0x40] sm:$0xf] %v814
      %879 = vst [vmem:[%s226 + $0x44] sm:$0xf] %v815
      %880 = vst [vmem:[%s226 + $0x48] sm:$0xf] %v816
      %881 = vst [vmem:[%s226 + $0x4c] sm:$0xf] %v817
      %882 = vst [vmem:[%s226 + $0x50] sm:$0xf] %v818
      %883 = vst [vmem:[%s226 + $0x54] sm:$0xf] %v819
      %884 = vst [vmem:[%s226 + $0x58] sm:$0xf] %v820
      %885 = vst [vmem:[%s226 + $0x5c] sm:$0xf] %v821
      %886 = vst [vmem:[%s226 + $0x60] sm:$0xf] %v822
      %887 = vst [vmem:[%s226 + $0x64] sm:$0xf] %v823
      %888 = vst [vmem:[%s226 + $0x68] sm:$0xf] %v824
      %889 = vst [vmem:[%s226 + $0x6c] sm:$0xf] %v825
      %890 = vst [vmem:[%s226 + $0x70] sm:$0xf] %v826
      %891 = vst [vmem:[%s226 + $0x74] sm:$0xf] %v827
      %892 = vst [vmem:[%s226 + $0x78] sm:$0xf] %v828
      %893 = vst [vmem:[%s226 + $0x7c] sm:$0xf] %v829
      %s894 = smul.u32 32, %s18
      %p895 = scmp.lt.s32.totalorder %s894, 63
      %s896 = scalar_select %p895, %s894, 63
      %p897 = scmp.lt.s32.totalorder %s19, 0
      %s898 = scalar_select %p897, %s19, 0
      %s899 = sadd.s32 %s898, %s896
      %s900 = smul.addr %s899, 4
      %s901 = scalar_lea.vmem %s3, %s900
      // Predicated region
      $region33: #{_lambda_.10} parent=31 // pred_check
        %p902 = pneg %p124
      $region34: #{_lambda_.10} parent=31 // pred_check_branch
        %904 = sbr.rel (%p902) target = $region36
      $region35: #{_lambda_.10} parent=31 // pred_region
        %s905 = smul.u32 32, %s18
      $region36: #{_lambda_.10} parent=31 // pred_fallthru
        _
    $region32: #{_lambda_.10} parent=5 // pred_fallthru
      _
    %p906 = scmp.le.s32.totalorder 2, %s9
    // Predicated region
    $region37: #{_lambda_.10} parent=5 // pred_check
      %p907 = pneg %p906
    $region38: #{_lambda_.10} parent=5 // pred_check_branch
      %909 = sbr.rel (%p907) target = $region40
    $region39: #{_lambda_.10} parent=5 // pred_region
      %s910 = ssub.s32 %s9, 2
      // Predicated region
      $region41: #{_lambda_.10} parent=39 // pred_check
        %p911 = pneg %p130
      $region42: #{_lambda_.10} parent=39 // pred_check_branch
        %913 = sbr.rel (%p911) target = $region44
      $region43: #{_lambda_.10} parent=39 // pred_region
        %s914 = smul.u32 32, %s20
        %p915 = scmp.lt.s32.totalorder %s914, 63
        %s916 = scalar_select %p915, %s914, 63
        %p917 = scmp.lt.s32.totalorder %s21, 0
        %s918 = scalar_select %p917, %s21, 0
        %s919 = sadd.s32 %s918, %s916
        %s920 = smul.addr %s919, 4
        %s921 = scalar_lea.vmem %s3, %s920
      $region44: #{_lambda_.10} parent=39 // pred_fallthru
        _
    $region40: #{_lambda_.10} parent=5 // pred_fallthru
      _
  $region6: #{_lambda_.10} parent=0 // loop_footer
    %s13 = sadd.s32 1, %s9
  $region7: #{_lambda_.10} parent=0 // loop_footer_branch
    %8 = sbr.rel target = $region3
  $region8: #{_lambda_.10} parent=0 // loop_exit
    _

// kernel: _lambda_.11
$region0: #{_lambda_.11}
  #allocation0 [shape = 'u32[]', space=smem, size = 0x4, offset = 0x4, fixed_abs, tag = 'smem constant byte address 0x4 - core index']
  #allocation1 [shape = 'u32[144,128]{1,0:T(1,128)}', space=vmem, size = 0x12000, scoped, tag = 'internal scratch']
  %s0 = inlined_call_operand.vmem [shape: bf16[128,576], index: 0, kind: input, shape index: {}]
  %s1 = inlined_call_operand.vmem [shape: bf16[576,128], index: 1, kind: input, shape index: {}]
  %s2 = inlined_call_operand.vmem [shape: f32[1,128], index: 2, kind: input, shape index: {}]
  %s3 = inlined_call_operand.vmem [shape: bf16[128,128], index: 3, kind: output, shape index: {}]
  %s4 = sld [smem:[#allocation0]]
  $region22: #{_lambda_.11} parent=0
    _
  %s6 = ssub.s32 1, %s4
  %s7 = scalar_select 0, %s6, %s4
  // Predicated region
  $region2: #{_lambda_.11} parent=0 // pred_check
    _
  $region3: #{_lambda_.11} parent=0 // pred_check_branch
    %9 = sbr.rel (0) target = $region5
  $region4: #{_lambda_.11} parent=0 // pred_region
    _
  $region5: #{_lambda_.11} parent=0 // pred_fallthru
    _
  // Predicated region
  $region6: #{_lambda_.11} parent=0 // pred_check
    _
  $region7: #{_lambda_.11} parent=0 // pred_check_branch
    %11 = sbr.rel (0) target = $region9
  $region8: #{_lambda_.11} parent=0 // pred_region
    _
  $region9: #{_lambda_.11} parent=0 // pred_fallthru
    _
  // Predicated region
  $region10: #{_lambda_.11} parent=0 // pred_check
    _
  $region11: #{_lambda_.11} parent=0 // pred_check_branch
    %13 = sbr.rel (0) target = $region13
  $region12: #{_lambda_.11} parent=0 // pred_region
    _
  $region13: #{_lambda_.11} parent=0 // pred_fallthru
    _
  %v15 = vld [vmem:[%s0] sm:$0xff]
  %v16 = vld [vmem:[%s0 + $0x8] sm:$0xff]
  %v17 = vld [vmem:[%s0 + $0x10] sm:$0xf]
  %v18 = vld [vmem:[%s0 + $0x14] sm:$0xff]
  %v19 = vld [vmem:[%s0 + $0x1c] sm:$0xff]
  %v20 = vld [vmem:[%s0 + $0x24] sm:$0xf]
  %v21 = vld [vmem:[%s0 + $0x28] sm:$0xff]
  %v22 = vld [vmem:[%s0 + $0x30] sm:$0xff]
  %v23 = vld [vmem:[%s0 + $0x38] sm:$0xf]
  %v24 = vld [vmem:[%s0 + $0x3c] sm:$0xff]
  %v25 = vld [vmem:[%s0 + $0x44] sm:$0xff]
  %v26 = vld [vmem:[%s0 + $0x4c] sm:$0xf]
  %v27 = vld [vmem:[%s0 + $0x50] sm:$0xff]
  %v28 = vld [vmem:[%s0 + $0x58] sm:$0xff]
  %v29 = vld [vmem:[%s0 + $0x60] sm:$0xf]
  %v30 = vld [vmem:[%s0 + $0x64] sm:$0xff]
  %v31 = vld [vmem:[%s0 + $0x6c] sm:$0xff]
  %v32 = vld [vmem:[%s0 + $0x74] sm:$0xf]
  %v33 = vld [vmem:[%s0 + $0x78] sm:$0xff]
  %v34 = vld [vmem:[%s0 + $0x80] sm:$0xff]
  %v35 = vld [vmem:[%s0 + $0x88] sm:$0xf]
  %v36 = vld [vmem:[%s0 + $0x8c] sm:$0xff]
  %v37 = vld [vmem:[%s0 + $0x94] sm:$0xff]
  %v38 = vld [vmem:[%s0 + $0x9c] sm:$0xf]
  %v39 = vld [vmem:[%s0 + $0xa0] sm:$0xff]
  %v40 = vld [vmem:[%s0 + $0xa8] sm:$0xff]
  %v41 = vld [vmem:[%s0 + $0xb0] sm:$0xf]
  %v42 = vld [vmem:[%s0 + $0xb4] sm:$0xff]
  %v43 = vld [vmem:[%s0 + $0xbc] sm:$0xff]
  %v44 = vld [vmem:[%s0 + $0xc4] sm:$0xf]
  %v45 = vld [vmem:[%s0 + $0xc8] sm:$0xff]
  %v46 = vld [vmem:[%s0 + $0xd0] sm:$0xff]
  %v47 = vld [vmem:[%s0 + $0xd8] sm:$0xf]
  %v48 = vld [vmem:[%s0 + $0xdc] sm:$0xff]
  %v49 = vld [vmem:[%s0 + $0xe4] sm:$0xff]
  %v50 = vld [vmem:[%s0 + $0xec] sm:$0xf]
  %v51 = vld [vmem:[%s0 + $0xf0] sm:$0xff]
  %v52 = vld [vmem:[%s0 + $0xf8] sm:$0xff]
  %v53 = vld [vmem:[%s0 + $0x100] sm:$0xf]
  %v54 = vld [vmem:[%s0 + $0x104] sm:$0xff]
  %v55 = vld [vmem:[%s0 + $0x10c] sm:$0xff]
  %v56 = vld [vmem:[%s0 + $0x114] sm:$0xf]
  %v57 = vld [vmem:[%s0 + $0x118] sm:$0xff]
  %v58 = vld [vmem:[%s0 + $0x120] sm:$0xff]
  %v59 = vld [vmem:[%s0 + $0x128] sm:$0xf]
  %v60 = vld [vmem:[%s0 + $0x12c] sm:$0xff]
  %v61 = vld [vmem:[%s0 + $0x134] sm:$0xff]
  %v62 = vld [vmem:[%s0 + $0x13c] sm:$0xf]
  %v63 = vld [vmem:[%s1] sm:$0xf]
  %v64 = vld [vmem:[%s1 + $0x4] sm:$0xf]
  %v65 = vld [vmem:[%s1 + $0x8] sm:$0xf]
  %v66 = vld [vmem:[%s1 + $0xc] sm:$0xf]
  %v67 = vld [vmem:[%s1 + $0x10] sm:$0xf]
  %v68 = vld [vmem:[%s1 + $0x14] sm:$0xf]
  %v69 = vld [vmem:[%s1 + $0x18] sm:$0xf]
  %v70 = vld [vmem:[%s1 + $0x1c] sm:$0xf]
  %v71 = vld [vmem:[%s1 + $0x20] sm:$0xf]
  %v72 = vld [vmem:[%s1 + $0x24] sm:$0xf]
  %v73 = vld [vmem:[%s1 + $0x28] sm:$0xf]
  %v74 = vld [vmem:[%s1 + $0x2c] sm:$0xf]
  %v75 = vld [vmem:[%s1 + $0x30] sm:$0xf]
  %v76 = vld [vmem:[%s1 + $0x34] sm:$0xf]
  %v77 = vld [vmem:[%s1 + $0x38] sm:$0xf]
  %v78 = vld [vmem:[%s1 + $0x3c] sm:$0xf]
  %v79 = vld [vmem:[%s1 + $0x40] sm:$0xf]
  %v80 = vld [vmem:[%s1 + $0x44] sm:$0xf]
  %v81 = vld [vmem:[%s1 + $0x48] sm:$0xf]
  %v82 = vld [vmem:[%s1 + $0x4c] sm:$0xf]
  %v83 = vld [vmem:[%s1 + $0x50] sm:$0xf]
  %v84 = vld [vmem:[%s1 + $0x54] sm:$0xf]
  %v85 = vld [vmem:[%s1 + $0x58] sm:$0xf]
  %v86 = vld [vmem:[%s1 + $0x5c] sm:$0xf]
  %v87 = vld [vmem:[%s1 + $0x60] sm:$0xf]
  %v88 = vld [vmem:[%s1 + $0x64] sm:$0xf]
  %v89 = vld [vmem:[%s1 + $0x68] sm:$0xf]
  %v90 = vld [vmem:[%s1 + $0x6c] sm:$0xf]
  %v91 = vld [vmem:[%s1 + $0x70] sm:$0xf]
  %v92 = vld [vmem:[%s1 + $0x74] sm:$0xf]
  %v93 = vld [vmem:[%s1 + $0x78] sm:$0xf]
  %v94 = vld [vmem:[%s1 + $0x7c] sm:$0xf]
  %v95 = vld [vmem:[%s1 + $0x80] sm:$0xf]
  %v96 = vld [vmem:[%s1 + $0x84] sm:$0xf]
  %v97 = vld [vmem:[%s1 + $0x88] sm:$0xf]
  %v98 = vld [vmem:[%s1 + $0x8c] sm:$0xf]
  %v99 = vld [vmem:[%s1 + $0x90] sm:$0xf]
  %v100 = vld [vmem:[%s1 + $0x94] sm:$0xf]
  %v101 = vld [vmem:[%s1 + $0x98] sm:$0xf]
  %v102 = vld [vmem:[%s1 + $0x9c] sm:$0xf]
  %v103 = vld [vmem:[%s1 + $0xa0] sm:$0xf]
  %v104 = vld [vmem:[%s1 + $0xa4] sm:$0xf]
  %v105 = vld [vmem:[%s1 + $0xa8] sm:$0xf]
  %v106 = vld [vmem:[%s1 + $0xac] sm:$0xf]
  %v107 = vld [vmem:[%s1 + $0xb0] sm:$0xf]
  %v108 = vld [vmem:[%s1 + $0xb4] sm:$0xf]
  %v109 = vld [vmem:[%s1 + $0xb8] sm:$0xf]
  %v110 = vld [vmem:[%s1 + $0xbc] sm:$0xf]
  %v111 = vld [vmem:[%s1 + $0xc0] sm:$0xf]
  %v112 = vld [vmem:[%s1 + $0xc4] sm:$0xf]
  %v113 = vld [vmem:[%s1 + $0xc8] sm:$0xf]
  %v114 = vld [vmem:[%s1 + $0xcc] sm:$0xf]
  %v115 = vld [vmem:[%s1 + $0xd0] sm:$0xf]
  %v116 = vld [vmem:[%s1 + $0xd4] sm:$0xf]
  %v117 = vld [vmem:[%s1 + $0xd8] sm:$0xf]
  %v118 = vld [vmem:[%s1 + $0xdc] sm:$0xf]
  %v119 = vld [vmem:[%s1 + $0xe0] sm:$0xf]
  %v120 = vld [vmem:[%s1 + $0xe4] sm:$0xf]
  %v121 = vld [vmem:[%s1 + $0xe8] sm:$0xf]
  %v122 = vld [vmem:[%s1 + $0xec] sm:$0xf]
  %v123 = vld [vmem:[%s1 + $0xf0] sm:$0xf]
  %v124 = vld [vmem:[%s1 + $0xf4] sm:$0xf]
  %v125 = vld [vmem:[%s1 + $0xf8] sm:$0xf]
  %v126 = vld [vmem:[%s1 + $0xfc] sm:$0xf]
  %v127 = vld [vmem:[%s1 + $0x100] sm:$0xf]
  %v128 = vld [vmem:[%s1 + $0x104] sm:$0xf]
  %v129 = vld [vmem:[%s1 + $0x108] sm:$0xf]
  %v130 = vld [vmem:[%s1 + $0x10c] sm:$0xf]
  %v131 = vld [vmem:[%s1 + $0x110] sm:$0xf]
  %v132 = vld [vmem:[%s1 + $0x114] sm:$0xf]
  %v133 = vld [vmem:[%s1 + $0x118] sm:$0xf]
  %v134 = vld [vmem:[%s1 + $0x11c] sm:$0xf]
  %v135 = vld [vmem:[%s2] sm:$0x1]
  %v137 = vlaneseq
  %v138 = vshrl.u32 %v137, 7
  %v139 = vsub.s32 0, %v138
  %v140 = vrot.slane %v135, %v139
  %v190 = vunpack.c.l.b16 %v15
  %v191 = vunpack.c.h.b16 %v15
  %v192 = vunpack.c.l.b16 %v16
  %v193 = vunpack.c.h.b16 %v16
  %v194 = vunpack.c.l.b16 %v17
  %v195 = vunpack.c.l.b16 %v18
  %v196 = vunpack.c.h.b16 %v18
  %v197 = vunpack.c.l.b16 %v19
  %v198 = vunpack.c.h.b16 %v19
  %v199 = vunpack.c.l.b16 %v20
  %v200 = vunpack.c.l.b16 %v21
  %v201 = vunpack.c.h.b16 %v21
  %v202 = vunpack.c.l.b16 %v22
  %v203 = vunpack.c.h.b16 %v22
  %v204 = vunpack.c.l.b16 %v23
  %v205 = vunpack.c.l.b16 %v24
  %v206 = vunpack.c.h.b16 %v24
  %v207 = vunpack.c.l.b16 %v25
  %v208 = vunpack.c.h.b16 %v25
  %v209 = vunpack.c.l.b16 %v26
  %v210 = vunpack.c.l.b16 %v27
  %v211 = vunpack.c.h.b16 %v27
  %v212 = vunpack.c.l.b16 %v28
  %v213 = vunpack.c.h.b16 %v28
  %v214 = vunpack.c.l.b16 %v29
  %v215 = vunpack.c.l.b16 %v30
  %v216 = vunpack.c.h.b16 %v30
  %v217 = vunpack.c.l.b16 %v31
  %v218 = vunpack.c.h.b16 %v31
  %v219 = vunpack.c.l.b16 %v32
  %v220 = vunpack.c.l.b16 %v33
  %v221 = vunpack.c.h.b16 %v33
  %v222 = vunpack.c.l.b16 %v34
  %v223 = vunpack.c.h.b16 %v34
  %v224 = vunpack.c.l.b16 %v35
  %v225 = vunpack.c.l.b16 %v36
  %v226 = vunpack.c.h.b16 %v36
  %v227 = vunpack.c.l.b16 %v37
  %v228 = vunpack.c.h.b16 %v37
  %v229 = vunpack.c.l.b16 %v38
  %v230 = vunpack.c.l.b16 %v39
  %v231 = vunpack.c.h.b16 %v39
  %v232 = vunpack.c.l.b16 %v40
  %v233 = vunpack.c.h.b16 %v40
  %v234 = vunpack.c.l.b16 %v41
  %v235 = vunpack.c.l.b16 %v42
  %v236 = vunpack.c.h.b16 %v42
  %v237 = vunpack.c.l.b16 %v43
  %v238 = vunpack.c.h.b16 %v43
  %v239 = vunpack.c.l.b16 %v44
  %v240 = vunpack.c.l.b16 %v45
  %v241 = vunpack.c.h.b16 %v45
  %v242 = vunpack.c.l.b16 %v46
  %v243 = vunpack.c.h.b16 %v46
  %v244 = vunpack.c.l.b16 %v47
  %v245 = vunpack.c.l.b16 %v48
  %v246 = vunpack.c.h.b16 %v48
  %v247 = vunpack.c.l.b16 %v49
  %v248 = vunpack.c.h.b16 %v49
  %v249 = vunpack.c.l.b16 %v50
  %v250 = vunpack.c.l.b16 %v51
  %v251 = vunpack.c.h.b16 %v51
  %v252 = vunpack.c.l.b16 %v52
  %v253 = vunpack.c.h.b16 %v52
  %v254 = vunpack.c.l.b16 %v53
  %v255 = vunpack.c.l.b16 %v54
  %v256 = vunpack.c.h.b16 %v54
  %v257 = vunpack.c.l.b16 %v55
  %v258 = vunpack.c.h.b16 %v55
  %v259 = vunpack.c.l.b16 %v56
  %v260 = vunpack.c.l.b16 %v57
  %v261 = vunpack.c.h.b16 %v57
  %v262 = vunpack.c.l.b16 %v58
  %v263 = vunpack.c.h.b16 %v58
  %v264 = vunpack.c.l.b16 %v59
  %v265 = vunpack.c.l.b16 %v60
  %v266 = vunpack.c.h.b16 %v60
  %v267 = vunpack.c.l.b16 %v61
  %v268 = vunpack.c.h.b16 %v61
  %v269 = vunpack.c.l.b16 %v62
  %v270 = vpack.c.b16 %v195, %v190
  %v271 = vpack.c.b16 %v196, %v191
  %v272 = vpack.c.b16 %v197, %v192
  %v273 = vpack.c.b16 %v198, %v193
  %v274 = vpack.c.b16 %v199, %v194
  %v275 = vpack.c.b16 %v205, %v200
  %v276 = vpack.c.b16 %v206, %v201
  %v277 = vpack.c.b16 %v207, %v202
  %v278 = vpack.c.b16 %v208, %v203
  %v279 = vpack.c.b16 %v209, %v204
  %v280 = vpack.c.b16 %v215, %v210
  %v281 = vpack.c.b16 %v216, %v211
  %v282 = vpack.c.b16 %v217, %v212
  %v283 = vpack.c.b16 %v218, %v213
  %v284 = vpack.c.b16 %v219, %v214
  %v285 = vpack.c.b16 %v225, %v220
  %v286 = vpack.c.b16 %v226, %v221
  %v287 = vpack.c.b16 %v227, %v222
  %v288 = vpack.c.b16 %v228, %v223
  %v289 = vpack.c.b16 %v229, %v224
  %v290 = vpack.c.b16 %v235, %v230
  %v291 = vpack.c.b16 %v236, %v231
  %v292 = vpack.c.b16 %v237, %v232
  %v293 = vpack.c.b16 %v238, %v233
  %v294 = vpack.c.b16 %v239, %v234
  %v295 = vpack.c.b16 %v245, %v240
  %v296 = vpack.c.b16 %v246, %v241
  %v297 = vpack.c.b16 %v247, %v242
  %v298 = vpack.c.b16 %v248, %v243
  %v299 = vpack.c.b16 %v249, %v244
  %v300 = vpack.c.b16 %v255, %v250
  %v301 = vpack.c.b16 %v256, %v251
  %v302 = vpack.c.b16 %v257, %v252
  %v303 = vpack.c.b16 %v258, %v253
  %v304 = vpack.c.b16 %v259, %v254
  %v305 = vpack.c.b16 %v265, %v260
  %v306 = vpack.c.b16 %v266, %v261
  %v307 = vpack.c.b16 %v267, %v262
  %v308 = vpack.c.b16 %v268, %v263
  %v309 = vpack.c.b16 %v269, %v264
  %v414 = vunpack.c.l.b16 %v63
  %v415 = vunpack.c.l.b16 %v64
  %v416 = vunpack.c.l.b16 %v65
  %v417 = vunpack.c.l.b16 %v66
  %v418 = vunpack.c.l.b16 %v67
  %v419 = vunpack.c.l.b16 %v68
  %v420 = vunpack.c.l.b16 %v69
  %v421 = vunpack.c.l.b16 %v70
  %v422 = vunpack.c.l.b16 %v71
  %v423 = vunpack.c.l.b16 %v72
  %v424 = vunpack.c.l.b16 %v73
  %v425 = vunpack.c.l.b16 %v74
  %v426 = vunpack.c.l.b16 %v75
  %v427 = vunpack.c.l.b16 %v76
  %v428 = vunpack.c.l.b16 %v77
  %v429 = vunpack.c.l.b16 %v78
  %v430 = vunpack.c.l.b16 %v79
  %v431 = vunpack.c.l.b16 %v80
  %v432 = vunpack.c.l.b16 %v81
  %v433 = vunpack.c.l.b16 %v82
  %v434 = vunpack.c.l.b16 %v83
  %v435 = vunpack.c.l.b16 %v84
  %v436 = vunpack.c.l.b16 %v85
  %v437 = vunpack.c.l.b16 %v86
  %v438 = vunpack.c.l.b16 %v87
  %v439 = vunpack.c.l.b16 %v88
  %v440 = vunpack.c.l.b16 %v89
  %v441 = vunpack.c.l.b16 %v90
  %v442 = vunpack.c.l.b16 %v91
  %v443 = vunpack.c.l.b16 %v92
  %v444 = vunpack.c.l.b16 %v93
  %v445 = vunpack.c.l.b16 %v94
  %v446 = vunpack.c.l.b16 %v95
  %v447 = vunpack.c.l.b16 %v96
  %v448 = vunpack.c.l.b16 %v97
  %v449 = vunpack.c.l.b16 %v98
  %v450 = vunpack.c.l.b16 %v99
  %v451 = vunpack.c.l.b16 %v100
  %v452 = vunpack.c.l.b16 %v101
  %v453 = vunpack.c.l.b16 %v102
  %v454 = vunpack.c.l.b16 %v103
  %v455 = vunpack.c.l.b16 %v104
  %v456 = vunpack.c.l.b16 %v105
  %v457 = vunpack.c.l.b16 %v106
  %v458 = vunpack.c.l.b16 %v107
  %v459 = vunpack.c.l.b16 %v108
  %v460 = vunpack.c.l.b16 %v109
  %v461 = vunpack.c.l.b16 %v110
  %v462 = vunpack.c.l.b16 %v111
  %v463 = vunpack.c.l.b16 %v112
  %v464 = vunpack.c.l.b16 %v113
  %v465 = vunpack.c.l.b16 %v114
  %v466 = vunpack.c.l.b16 %v115
  %v467 = vunpack.c.l.b16 %v116
  %v468 = vunpack.c.l.b16 %v117
  %v469 = vunpack.c.l.b16 %v118
  %v470 = vunpack.c.l.b16 %v119
  %v471 = vunpack.c.l.b16 %v120
  %v472 = vunpack.c.l.b16 %v121
  %v473 = vunpack.c.l.b16 %v122
  %v474 = vunpack.c.l.b16 %v123
  %v475 = vunpack.c.l.b16 %v124
  %v476 = vunpack.c.l.b16 %v125
  %v477 = vunpack.c.l.b16 %v126
  %v478 = vunpack.c.l.b16 %v127
  %v479 = vunpack.c.l.b16 %v128
  %v480 = vunpack.c.l.b16 %v129
  %v481 = vunpack.c.l.b16 %v130
  %v482 = vunpack.c.l.b16 %v131
  %v483 = vunpack.c.l.b16 %v132
  %v484 = vunpack.c.l.b16 %v133
  %v485 = vunpack.c.l.b16 %v134
  %v486 = vpack.c.b16 %v415, %v414
  %v487 = vpack.c.b16 %v417, %v416
  %v488 = vpack.c.b16 %v419, %v418
  %v489 = vpack.c.b16 %v421, %v420
  %v490 = vpack.c.b16 %v423, %v422
  %v491 = vpack.c.b16 %v425, %v424
  %v492 = vpack.c.b16 %v427, %v426
  %v493 = vpack.c.b16 %v429, %v428
  %v494 = vpack.c.b16 %v431, %v430
  %v495 = vpack.c.b16 %v433, %v432
  %v496 = vpack.c.b16 %v435, %v434
  %v497 = vpack.c.b16 %v437, %v436
  %v498 = vpack.c.b16 %v439, %v438
  %v499 = vpack.c.b16 %v441, %v440
  %v500 = vpack.c.b16 %v443, %v442
  %v501 = vpack.c.b16 %v445, %v444
  %v502 = vpack.c.b16 %v447, %v446
  %v503 = vpack.c.b16 %v449, %v448
  %v504 = vpack.c.b16 %v451, %v450
  %v505 = vpack.c.b16 %v453, %v452
  %v506 = vpack.c.b16 %v455, %v454
  %v507 = vpack.c.b16 %v457, %v456
  %v508 = vpack.c.b16 %v459, %v458
  %v509 = vpack.c.b16 %v461, %v460
  %v510 = vpack.c.b16 %v463, %v462
  %v511 = vpack.c.b16 %v465, %v464
  %v512 = vpack.c.b16 %v467, %v466
  %v513 = vpack.c.b16 %v469, %v468
  %v514 = vpack.c.b16 %v471, %v470
  %v515 = vpack.c.b16 %v473, %v472
  %v516 = vpack.c.b16 %v475, %v474
  %v517 = vpack.c.b16 %v477, %v476
  %v518 = vpack.c.b16 %v479, %v478
  %v519 = vpack.c.b16 %v481, %v480
  %v520 = vpack.c.b16 %v483, %v482
  %v521 = vpack.c.b16 %v485, %v484
  %vm558 = vcmask 523264
  %v560 = vsel %vm558, %v274, 0
  %v563 = vsel %vm558, %v279, 0
  %v566 = vsel %vm558, %v284, 0
  %v569 = vsel %vm558, %v289, 0
  %v572 = vsel %vm558, %v294, 0
  %v575 = vsel %vm558, %v299, 0
  %v578 = vsel %vm558, %v304, 0
  %v581 = vsel %vm558, %v309, 0
  %583 = vmatprep.subr.bf16.mxu0 0
  %584 = vmatpush1.bf16.msra.mxu0 %v493
  %585 = vmatprep.subr.bf16.mxu0 0
  %586 = vmatpush1.bf16.msra.mxu0 %v492
  %587 = vmatprep.subr.bf16.mxu0 0
  %588 = vmatpush1.bf16.msra.mxu0 %v491
  %589 = vmatprep.subr.bf16.mxu0 0
  %590 = vmatpush1.bf16.msra.mxu0 %v490
  %591 = vmatprep.subr.bf16.mxu0 0
  %592 = vmatpush1.bf16.msra.mxu0 %v489
  %593 = vmatprep.subr.bf16.mxu0 0
  %594 = vmatpush1.bf16.msra.mxu0 %v488
  %595 = vmatprep.subr.bf16.mxu0 0
  %596 = vmatpush1.bf16.msra.mxu0 %v487
  %597 = vmatprep.subr.bf16.mxu0 0
  %598 = vmatpush1.bf16.msra.mxu0 %v486
  %599 = vmatprep.subr.bf16.mxu0 0
  %600 = vmatpush2.bf16.msra.mxu0 %v501
  %601 = vmatprep.subr.bf16.mxu0 0
  %602 = vmatpush2.bf16.msra.mxu0 %v500
  %603 = vmatprep.subr.bf16.mxu0 0
  %604 = vmatpush2.bf16.msra.mxu0 %v499
  %605 = vmatprep.subr.bf16.mxu0 0
  %606 = vmatpush2.bf16.msra.mxu0 %v498
  %607 = vmatprep.subr.bf16.mxu0 0
  %608 = vmatpush2.bf16.msra.mxu0 %v497
  %609 = vmatprep.subr.bf16.mxu0 0
  %610 = vmatpush2.bf16.msra.mxu0 %v496
  %611 = vmatprep.subr.bf16.mxu0 0
  %612 = vmatpush2.bf16.msra.mxu0 %v495
  %613 = vmatprep.subr.bf16.mxu0 0
  %614 = vmatpush2.bf16.msra.mxu0 %v494
  %615 = vmatprep.mubr.bf16.mxu0 %v271
  %616 = vmatmul.mubr.bf16.gmra.mxu0 %v270
  %v617 = vpop.f32.mrf.mxu0
  %v618 = vadd.f32 %v140, %v617
  %v619 = vpop.f32.mrf.mxu0
  %v620 = vpop.f32.mrf.mxu0
  %v621 = vadd.f32 %v140, %v620
  %v622 = vpop.f32.mrf.mxu0
  %623 = vmatprep.mubr.bf16.mxu0 %v276
  %624 = vmatmul.mubr.bf16.gmra.mxu0 %v275
  %v625 = vpop.f32.mrf.mxu0
  %v626 = vadd.f32 %v140, %v625
  %v627 = vpop.f32.mrf.mxu0
  %v628 = vpop.f32.mrf.mxu0
  %v629 = vadd.f32 %v140, %v628
  %v630 = vpop.f32.mrf.mxu0
  %631 = vmatprep.mubr.bf16.mxu0 %v281
  %632 = vmatmul.mubr.bf16.gmra.mxu0 %v280
  %v633 = vpop.f32.mrf.mxu0
  %v634 = vadd.f32 %v140, %v633
  %v635 = vpop.f32.mrf.mxu0
  %v636 = vpop.f32.mrf.mxu0
  %v637 = vadd.f32 %v140, %v636
  %v638 = vpop.f32.mrf.mxu0
  %639 = vmatprep.mubr.bf16.mxu0 %v286
  %640 = vmatmul.mubr.bf16.gmra.mxu0 %v285
  %v641 = vpop.f32.mrf.mxu0
  %v642 = vadd.f32 %v140, %v641
  %v643 = vpop.f32.mrf.mxu0
  %v644 = vpop.f32.mrf.mxu0
  %v645 = vadd.f32 %v140, %v644
  %v646 = vpop.f32.mrf.mxu0
  %647 = vmatprep.mubr.bf16.mxu0 %v291
  %648 = vmatmul.mubr.bf16.gmra.mxu0 %v290
  %v649 = vpop.f32.mrf.mxu0
  %v650 = vadd.f32 %v140, %v649
  %v651 = vpop.f32.mrf.mxu0
  %v652 = vpop.f32.mrf.mxu0
  %v653 = vadd.f32 %v140, %v652
  %v654 = vpop.f32.mrf.mxu0
  %655 = vmatprep.mubr.bf16.mxu0 %v296
  %656 = vmatmul.mubr.bf16.gmra.mxu0 %v295
  %v657 = vpop.f32.mrf.mxu0
  %v658 = vadd.f32 %v140, %v657
  %v659 = vpop.f32.mrf.mxu0
  %v660 = vpop.f32.mrf.mxu0
  %v661 = vadd.f32 %v140, %v660
  %v662 = vpop.f32.mrf.mxu0
  %663 = vmatprep.mubr.bf16.mxu0 %v301
  %664 = vmatmul.mubr.bf16.gmra.mxu0 %v300
  %v665 = vpop.f32.mrf.mxu0
  %v666 = vadd.f32 %v140, %v665
  %v667 = vpop.f32.mrf.mxu0
  %v668 = vpop.f32.mrf.mxu0
  %v669 = vadd.f32 %v140, %v668
  %v670 = vpop.f32.mrf.mxu0
  %671 = vmatprep.mubr.bf16.mxu0 %v306
  %672 = vmatmul.mubr.bf16.gmra.mxu0 %v305
  %v673 = vpop.f32.mrf.mxu0
  %v674 = vadd.f32 %v140, %v673
  %v675 = vpop.f32.mrf.mxu0
  %v676 = vpop.f32.mrf.mxu0
  %v677 = vadd.f32 %v140, %v676
  %v678 = vpop.f32.mrf.mxu0
  %679 = vdwg.mxu0
  %680 = vmatprep.subr.bf16.mxu0 0
  %681 = vmatpush1.bf16.msra.mxu0 %v509
  %682 = vmatprep.subr.bf16.mxu0 0
  %683 = vmatpush1.bf16.msra.mxu0 %v508
  %684 = vmatprep.subr.bf16.mxu0 0
  %685 = vmatpush1.bf16.msra.mxu0 %v507
  %686 = vmatprep.subr.bf16.mxu0 0
  %687 = vmatpush1.bf16.msra.mxu0 %v506
  %688 = vmatprep.subr.bf16.mxu0 0
  %689 = vmatpush1.bf16.msra.mxu0 %v505
  %690 = vmatprep.subr.bf16.mxu0 0
  %691 = vmatpush1.bf16.msra.mxu0 %v504
  %692 = vmatprep.subr.bf16.mxu0 0
  %693 = vmatpush1.bf16.msra.mxu0 %v503
  %694 = vmatprep.subr.bf16.mxu0 0
  %695 = vmatpush1.bf16.msra.mxu0 %v502
  %696 = vmatprep.subr.bf16.mxu0 0
  %697 = vmatpush2.bf16.msra.mxu0 %v517
  %698 = vmatprep.subr.bf16.mxu0 0
  %699 = vmatpush2.bf16.msra.mxu0 %v516
  %700 = vmatprep.subr.bf16.mxu0 0
  %701 = vmatpush2.bf16.msra.mxu0 %v515
  %702 = vmatprep.subr.bf16.mxu0 0
  %703 = vmatpush2.bf16.msra.mxu0 %v514
  %704 = vmatprep.subr.bf16.mxu0 0
  %705 = vmatpush2.bf16.msra.mxu0 %v513
  %706 = vmatprep.subr.bf16.mxu0 0
  %707 = vmatpush2.bf16.msra.mxu0 %v512
  %708 = vmatprep.subr.bf16.mxu0 0
  %709 = vmatpush2.bf16.msra.mxu0 %v511
  %710 = vmatprep.subr.bf16.mxu0 0
  %711 = vmatpush2.bf16.msra.mxu0 %v510
  %712 = vmatprep.mubr.bf16.mxu0 %v273
  %713 = vmatmul.mubr.bf16.gmra.mxu0 %v272
  %v714 = vpop.f32.mrf.mxu0
  %v715 = vadd.f32 %v618, %v714
  %v716 = vpop.f32.mrf.mxu0
  %v717 = vpop.f32.mrf.mxu0
  %v718 = vadd.f32 %v621, %v717
  %v719 = vpop.f32.mrf.mxu0
  %720 = vmatprep.mubr.bf16.mxu0 %v278
  %721 = vmatmul.mubr.bf16.gmra.mxu0 %v277
  %v722 = vpop.f32.mrf.mxu0
  %v723 = vadd.f32 %v626, %v722
  %v724 = vpop.f32.mrf.mxu0
  %v725 = vpop.f32.mrf.mxu0
  %v726 = vadd.f32 %v629, %v725
  %v727 = vpop.f32.mrf.mxu0
  %728 = vmatprep.mubr.bf16.mxu0 %v283
  %729 = vmatmul.mubr.bf16.gmra.mxu0 %v282
  %v730 = vpop.f32.mrf.mxu0
  %v731 = vadd.f32 %v634, %v730
  %v732 = vpop.f32.mrf.mxu0
  %v733 = vpop.f32.mrf.mxu0
  %v734 = vadd.f32 %v637, %v733
  %v735 = vpop.f32.mrf.mxu0
  %736 = vmatprep.mubr.bf16.mxu0 %v288
  %737 = vmatmul.mubr.bf16.gmra.mxu0 %v287
  %v738 = vpop.f32.mrf.mxu0
  %v739 = vadd.f32 %v642, %v738
  %v740 = vpop.f32.mrf.mxu0
  %v741 = vpop.f32.mrf.mxu0
  %v742 = vadd.f32 %v645, %v741
  %v743 = vpop.f32.mrf.mxu0
  %744 = vmatprep.mubr.bf16.mxu0 %v293
  %745 = vmatmul.mubr.bf16.gmra.mxu0 %v292
  %v746 = vpop.f32.mrf.mxu0
  %v747 = vadd.f32 %v650, %v746
  %v748 = vpop.f32.mrf.mxu0
  %v749 = vpop.f32.mrf.mxu0
  %v750 = vadd.f32 %v653, %v749
  %v751 = vpop.f32.mrf.mxu0
  %752 = vmatprep.mubr.bf16.mxu0 %v298
  %753 = vmatmul.mubr.bf16.gmra.mxu0 %v297
  %v754 = vpop.f32.mrf.mxu0
  %v755 = vadd.f32 %v658, %v754
  %v756 = vpop.f32.mrf.mxu0
  %v757 = vpop.f32.mrf.mxu0
  %v758 = vadd.f32 %v661, %v757
  %v759 = vpop.f32.mrf.mxu0
  %760 = vmatprep.mubr.bf16.mxu0 %v303
  %761 = vmatmul.mubr.bf16.gmra.mxu0 %v302
  %v762 = vpop.f32.mrf.mxu0
  %v763 = vadd.f32 %v666, %v762
  %v764 = vpop.f32.mrf.mxu0
  %v765 = vpop.f32.mrf.mxu0
  %v766 = vadd.f32 %v669, %v765
  %v767 = vpop.f32.mrf.mxu0
  %768 = vmatprep.mubr.bf16.mxu0 %v308
  %769 = vmatmul.mubr.bf16.gmra.mxu0 %v307
  %v770 = vpop.f32.mrf.mxu0
  %v771 = vadd.f32 %v674, %v770
  %v772 = vpop.f32.mrf.mxu0
  %v773 = vpop.f32.mrf.mxu0
  %v774 = vadd.f32 %v677, %v773
  %v775 = vpop.f32.mrf.mxu0
  %776 = vdwg.mxu0
  %777 = vmatprep.subr.bf16.mxu0 0
  %778 = vmatpush1.bf16.msra.mxu0 0
  %779 = vmatprep.subr.bf16.mxu0 0
  %780 = vmatpush1.bf16.msra.mxu0 0
  %781 = vmatprep.subr.bf16.mxu0 0
  %782 = vmatpush1.bf16.msra.mxu0 0
  %783 = vmatprep.subr.bf16.mxu0 0
  %784 = vmatpush1.bf16.msra.mxu0 0
  %785 = vmatprep.subr.bf16.mxu0 0
  %786 = vmatpush1.bf16.msra.mxu0 %v521
  %787 = vmatprep.subr.bf16.mxu0 0
  %788 = vmatpush1.bf16.msra.mxu0 %v520
  %789 = vmatprep.subr.bf16.mxu0 0
  %790 = vmatpush1.bf16.msra.mxu0 %v519
  %791 = vmatprep.subr.bf16.mxu0 0
  %792 = vmatpush1.bf16.msra.mxu0 %v518
  %793 = vmatprep.subr.bf16.mxu0 0
  %794 = vmatpush2.bf16.msra.mxu0 0
  %795 = vmatprep.subr.bf16.mxu0 0
  %796 = vmatpush2.bf16.msra.mxu0 0
  %797 = vmatprep.subr.bf16.mxu0 0
  %798 = vmatpush2.bf16.msra.mxu0 0
  %799 = vmatprep.subr.bf16.mxu0 0
  %800 = vmatpush2.bf16.msra.mxu0 0
  %801 = vmatprep.subr.bf16.mxu0 0
  %802 = vmatpush2.bf16.msra.mxu0 0
  %803 = vmatprep.subr.bf16.mxu0 0
  %804 = vmatpush2.bf16.msra.mxu0 0
  %805 = vmatprep.subr.bf16.mxu0 0
  %806 = vmatpush2.bf16.msra.mxu0 0
  %807 = vmatprep.subr.bf16.mxu0 0
  %808 = vmatpush2.bf16.msra.mxu0 0
  %809 = vmatprep.mubr.bf16.mxu0 0
  %810 = vmatmul.mubr.bf16.gmra.mxu0 %v560
  %v811 = vpop.f32.mrf.mxu0
  %v812 = vadd.f32 %v715, %v811
  %v813 = vpop.f32.mrf.mxu0
  %v814 = vpop.f32.mrf.mxu0
  %v815 = vadd.f32 %v718, %v814
  %v816 = vpop.f32.mrf.mxu0
  %817 = vmatprep.mubr.bf16.mxu0 0
  %818 = vmatmul.mubr.bf16.gmra.mxu0 %v563
  %v819 = vpop.f32.mrf.mxu0
  %v820 = vadd.f32 %v723, %v819
  %v821 = vpop.f32.mrf.mxu0
  %v822 = vpop.f32.mrf.mxu0
  %v823 = vadd.f32 %v726, %v822
  %v824 = vpop.f32.mrf.mxu0
  %825 = vmatprep.mubr.bf16.mxu0 0
  %826 = vmatmul.mubr.bf16.gmra.mxu0 %v566
  %v827 = vpop.f32.mrf.mxu0
  %v828 = vadd.f32 %v731, %v827
  %v829 = vpop.f32.mrf.mxu0
  %v830 = vpop.f32.mrf.mxu0
  %v831 = vadd.f32 %v734, %v830
  %v832 = vpop.f32.mrf.mxu0
  %833 = vmatprep.mubr.bf16.mxu0 0
  %834 = vmatmul.mubr.bf16.gmra.mxu0 %v569
  %v835 = vpop.f32.mrf.mxu0
  %v836 = vadd.f32 %v739, %v835
  %v837 = vpop.f32.mrf.mxu0
  %v838 = vpop.f32.mrf.mxu0
  %v839 = vadd.f32 %v742, %v838
  %v840 = vpop.f32.mrf.mxu0
  %841 = vmatprep.mubr.bf16.mxu0 0
  %842 = vmatmul.mubr.bf16.gmra.mxu0 %v572
  %v843 = vpop.f32.mrf.mxu0
  %v844 = vadd.f32 %v747, %v843
  %v845 = vpop.f32.mrf.mxu0
  %v846 = vpop.f32.mrf.mxu0
  %v847 = vadd.f32 %v750, %v846
  %v848 = vpop.f32.mrf.mxu0
  %849 = vmatprep.mubr.bf16.mxu0 0
  %850 = vmatmul.mubr.bf16.gmra.mxu0 %v575
  %v851 = vpop.f32.mrf.mxu0
  %v852 = vadd.f32 %v755, %v851
  %v853 = vpop.f32.mrf.mxu0
  %v854 = vpop.f32.mrf.mxu0
  %v855 = vadd.f32 %v758, %v854
  %v856 = vpop.f32.mrf.mxu0
  %857 = vmatprep.mubr.bf16.mxu0 0
  %858 = vmatmul.mubr.bf16.gmra.mxu0 %v578
  %v859 = vpop.f32.mrf.mxu0
  %v860 = vadd.f32 %v763, %v859
  %v861 = vpop.f32.mrf.mxu0
  %v862 = vpop.f32.mrf.mxu0
  %v863 = vadd.f32 %v766, %v862
  %v864 = vpop.f32.mrf.mxu0
  %865 = vmatprep.mubr.bf16.mxu0 0
  %866 = vmatmul.mubr.bf16.gmra.mxu0 %v581
  %v867 = vpop.f32.mrf.mxu0
  %v868 = vadd.f32 %v771, %v867
  %v869 = vpop.f32.mrf.mxu0
  %v870 = vpop.f32.mrf.mxu0
  %v871 = vadd.f32 %v774, %v870
  %v872 = vpop.f32.mrf.mxu0
  %873 = vdwg.mxu0
  %v874 = vmax.f32 %v812, 0.0
  %v875 = vmax.f32 %v815, 0.0
  %v876 = vmax.f32 %v820, 0.0
  %v877 = vmax.f32 %v823, 0.0
  %v878 = vmax.f32 %v828, 0.0
  %v879 = vmax.f32 %v831, 0.0
  %v880 = vmax.f32 %v836, 0.0
  %v881 = vmax.f32 %v839, 0.0
  %v882 = vmax.f32 %v844, 0.0
  %v883 = vmax.f32 %v847, 0.0
  %v884 = vmax.f32 %v852, 0.0
  %v885 = vmax.f32 %v855, 0.0
  %v886 = vmax.f32 %v860, 0.0
  %v887 = vmax.f32 %v863, 0.0
  %v888 = vmax.f32 %v868, 0.0
  %v889 = vmax.f32 %v871, 0.0
  %v890 = vpack.c.bf16 %v875, %v874
  %v891 = vpack.c.bf16 %v877, %v876
  %v892 = vpack.c.bf16 %v879, %v878
  %v893 = vpack.c.bf16 %v881, %v880
  %v894 = vpack.c.bf16 %v883, %v882
  %v895 = vpack.c.bf16 %v885, %v884
  %v896 = vpack.c.bf16 %v887, %v886
  %v897 = vpack.c.bf16 %v889, %v888
  %v906 = vunpack.c.l.b16 %v890
  %v907 = vunpack.c.h.b16 %v890
  %v908 = vunpack.c.l.b16 %v891
  %v909 = vunpack.c.h.b16 %v891
  %v910 = vunpack.c.l.b16 %v892
  %v911 = vunpack.c.h.b16 %v892
  %v912 = vunpack.c.l.b16 %v893
  %v913 = vunpack.c.h.b16 %v893
  %v914 = vunpack.c.l.b16 %v894
  %v915 = vunpack.c.h.b16 %v894
  %v916 = vunpack.c.l.b16 %v895
  %v917 = vunpack.c.h.b16 %v895
  %v918 = vunpack.c.l.b16 %v896
  %v919 = vunpack.c.h.b16 %v896
  %v920 = vunpack.c.l.b16 %v897
  %v921 = vunpack.c.h.b16 %v897
  %v922 = vpack.c.b16 %v906, %v906
  %v923 = vpack.c.b16 %v907, %v907
  %v924 = vpack.c.b16 %v908, %v908
  %v925 = vpack.c.b16 %v909, %v909
  %v926 = vpack.c.b16 %v910, %v910
  %v927 = vpack.c.b16 %v911, %v911
  %v928 = vpack.c.b16 %v912, %v912
  %v929 = vpack.c.b16 %v913, %v913
  %v930 = vpack.c.b16 %v914, %v914
  %v931 = vpack.c.b16 %v915, %v915
  %v932 = vpack.c.b16 %v916, %v916
  %v933 = vpack.c.b16 %v917, %v917
  %v934 = vpack.c.b16 %v918, %v918
  %v935 = vpack.c.b16 %v919, %v919
  %v936 = vpack.c.b16 %v920, %v920
  %v937 = vpack.c.b16 %v921, %v921
  %954 = vst [vmem:[%s3] sm:$0xf] %v922
  %955 = vst [vmem:[%s3 + $0x4] sm:$0xf] %v923
  %956 = vst [vmem:[%s3 + $0x8] sm:$0xf] %v924
  %957 = vst [vmem:[%s3 + $0xc] sm:$0xf] %v925
  %958 = vst [vmem:[%s3 + $0x10] sm:$0xf] %v926
  %959 = vst [vmem:[%s3 + $0x14] sm:$0xf] %v927
  %960 = vst [vmem:[%s3 + $0x18] sm:$0xf] %v928
  %961 = vst [vmem:[%s3 + $0x1c] sm:$0xf] %v929
  %962 = vst [vmem:[%s3 + $0x20] sm:$0xf] %v930
  %963 = vst [vmem:[%s3 + $0x24] sm:$0xf] %v931
  %964 = vst [vmem:[%s3 + $0x28] sm:$0xf] %v932
  %965 = vst [vmem:[%s3 + $0x2c] sm:$0xf] %v933
  %966 = vst [vmem:[%s3 + $0x30] sm:$0xf] %v934
  %967 = vst [vmem:[%s3 + $0x34] sm:$0xf] %v935
  %968 = vst [vmem:[%s3 + $0x38] sm:$0xf] %v936
  %969 = vst [vmem:[%s3 + $0x3c] sm:$0xf] %v937
  // Predicated region
  $region14: #{_lambda_.11} parent=0 // pred_check
    _
  $region15: #{_lambda_.11} parent=0 // pred_check_branch
    %971 = sbr.rel (0) target = $region17
  $region16: #{_lambda_.11} parent=0 // pred_region
    _
  $region17: #{_lambda_.11} parent=0 // pred_fallthru
    _
  // Predicated region
  $region18: #{_lambda_.11} parent=0 // pred_check
    _
  $region19: #{_lambda_.11} parent=0 // pred_check_branch
    %973 = sbr.rel (0) target = $region21
  $region20: #{_lambda_.11} parent=0 // pred_region
    _
  $region21: #{_lambda_.11} parent=0 // pred_fallthru
    _

// kernel: _lambda_.12
$region0: #{_lambda_.12}
  #allocation0 [shape = 'u32[]', space=smem, size = 0x4, offset = 0x4, fixed_abs, tag = 'smem constant byte address 0x4 - core index']
  #allocation1 [shape = 'u32[144,128]{1,0:T(1,128)}', space=vmem, size = 0x12000, scoped, tag = 'internal scratch']
  %s0 = inlined_call_operand.vmem [shape: bf16[128,576], index: 0, kind: input, shape index: {}]
  %s1 = inlined_call_operand.vmem [shape: bf16[576,128], index: 1, kind: input, shape index: {}]
  %s2 = inlined_call_operand.vmem [shape: f32[1,128], index: 2, kind: input, shape index: {}]
  %s3 = inlined_call_operand.vmem [shape: bf16[128,128], index: 3, kind: input, shape index: {}]
  %s4 = inlined_call_operand.vmem [shape: bf16[128,128], index: 4, kind: output, shape index: {}]
  %s5 = sld [smem:[#allocation0]]
  $region26: #{_lambda_.12} parent=0
    _
  %s7 = ssub.s32 1, %s5
  %s8 = scalar_select 0, %s7, %s5
  // Predicated region
  $region2: #{_lambda_.12} parent=0 // pred_check
    _
  $region3: #{_lambda_.12} parent=0 // pred_check_branch
    %10 = sbr.rel (0) target = $region5
  $region4: #{_lambda_.12} parent=0 // pred_region
    _
  $region5: #{_lambda_.12} parent=0 // pred_fallthru
    _
  // Predicated region
  $region6: #{_lambda_.12} parent=0 // pred_check
    _
  $region7: #{_lambda_.12} parent=0 // pred_check_branch
    %12 = sbr.rel (0) target = $region9
  $region8: #{_lambda_.12} parent=0 // pred_region
    _
  $region9: #{_lambda_.12} parent=0 // pred_fallthru
    _
  // Predicated region
  $region10: #{_lambda_.12} parent=0 // pred_check
    _
  $region11: #{_lambda_.12} parent=0 // pred_check_branch
    %14 = sbr.rel (0) target = $region13
  $region12: #{_lambda_.12} parent=0 // pred_region
    _
  $region13: #{_lambda_.12} parent=0 // pred_fallthru
    _
  // Predicated region
  $region14: #{_lambda_.12} parent=0 // pred_check
    _
  $region15: #{_lambda_.12} parent=0 // pred_check_branch
    %16 = sbr.rel (0) target = $region17
  $region16: #{_lambda_.12} parent=0 // pred_region
    _
  $region17: #{_lambda_.12} parent=0 // pred_fallthru
    _
  %v18 = vld [vmem:[%s0] sm:$0xff]
  %v19 = vld [vmem:[%s0 + $0x8] sm:$0xff]
  %v20 = vld [vmem:[%s0 + $0x10] sm:$0xf]
  %v21 = vld [vmem:[%s0 + $0x14] sm:$0xff]
  %v22 = vld [vmem:[%s0 + $0x1c] sm:$0xff]
  %v23 = vld [vmem:[%s0 + $0x24] sm:$0xf]
  %v24 = vld [vmem:[%s0 + $0x28] sm:$0xff]
  %v25 = vld [vmem:[%s0 + $0x30] sm:$0xff]
  %v26 = vld [vmem:[%s0 + $0x38] sm:$0xf]
  %v27 = vld [vmem:[%s0 + $0x3c] sm:$0xff]
  %v28 = vld [vmem:[%s0 + $0x44] sm:$0xff]
  %v29 = vld [vmem:[%s0 + $0x4c] sm:$0xf]
  %v30 = vld [vmem:[%s0 + $0x50] sm:$0xff]
  %v31 = vld [vmem:[%s0 + $0x58] sm:$0xff]
  %v32 = vld [vmem:[%s0 + $0x60] sm:$0xf]
  %v33 = vld [vmem:[%s0 + $0x64] sm:$0xff]
  %v34 = vld [vmem:[%s0 + $0x6c] sm:$0xff]
  %v35 = vld [vmem:[%s0 + $0x74] sm:$0xf]
  %v36 = vld [vmem:[%s0 + $0x78] sm:$0xff]
  %v37 = vld [vmem:[%s0 + $0x80] sm:$0xff]
  %v38 = vld [vmem:[%s0 + $0x88] sm:$0xf]
  %v39 = vld [vmem:[%s0 + $0x8c] sm:$0xff]
  %v40 = vld [vmem:[%s0 + $0x94] sm:$0xff]
  %v41 = vld [vmem:[%s0 + $0x9c] sm:$0xf]
  %v42 = vld [vmem:[%s0 + $0xa0] sm:$0xff]
  %v43 = vld [vmem:[%s0 + $0xa8] sm:$0xff]
  %v44 = vld [vmem:[%s0 + $0xb0] sm:$0xf]
  %v45 = vld [vmem:[%s0 + $0xb4] sm:$0xff]
  %v46 = vld [vmem:[%s0 + $0xbc] sm:$0xff]
  %v47 = vld [vmem:[%s0 + $0xc4] sm:$0xf]
  %v48 = vld [vmem:[%s0 + $0xc8] sm:$0xff]
  %v49 = vld [vmem:[%s0 + $0xd0] sm:$0xff]
  %v50 = vld [vmem:[%s0 + $0xd8] sm:$0xf]
  %v51 = vld [vmem:[%s0 + $0xdc] sm:$0xff]
  %v52 = vld [vmem:[%s0 + $0xe4] sm:$0xff]
  %v53 = vld [vmem:[%s0 + $0xec] sm:$0xf]
  %v54 = vld [vmem:[%s0 + $0xf0] sm:$0xff]
  %v55 = vld [vmem:[%s0 + $0xf8] sm:$0xff]
  %v56 = vld [vmem:[%s0 + $0x100] sm:$0xf]
  %v57 = vld [vmem:[%s0 + $0x104] sm:$0xff]
  %v58 = vld [vmem:[%s0 + $0x10c] sm:$0xff]
  %v59 = vld [vmem:[%s0 + $0x114] sm:$0xf]
  %v60 = vld [vmem:[%s0 + $0x118] sm:$0xff]
  %v61 = vld [vmem:[%s0 + $0x120] sm:$0xff]
  %v62 = vld [vmem:[%s0 + $0x128] sm:$0xf]
  %v63 = vld [vmem:[%s0 + $0x12c] sm:$0xff]
  %v64 = vld [vmem:[%s0 + $0x134] sm:$0xff]
  %v65 = vld [vmem:[%s0 + $0x13c] sm:$0xf]
  %v66 = vld [vmem:[%s1] sm:$0xf]
  %v67 = vld [vmem:[%s1 + $0x4] sm:$0xf]
  %v68 = vld [vmem:[%s1 + $0x8] sm:$0xf]
  %v69 = vld [vmem:[%s1 + $0xc] sm:$0xf]
  %v70 = vld [vmem:[%s1 + $0x10] sm:$0xf]
  %v71 = vld [vmem:[%s1 + $0x14] sm:$0xf]
  %v72 = vld [vmem:[%s1 + $0x18] sm:$0xf]
  %v73 = vld [vmem:[%s1 + $0x1c] sm:$0xf]
  %v74 = vld [vmem:[%s1 + $0x20] sm:$0xf]
  %v75 = vld [vmem:[%s1 + $0x24] sm:$0xf]
  %v76 = vld [vmem:[%s1 + $0x28] sm:$0xf]
  %v77 = vld [vmem:[%s1 + $0x2c] sm:$0xf]
  %v78 = vld [vmem:[%s1 + $0x30] sm:$0xf]
  %v79 = vld [vmem:[%s1 + $0x34] sm:$0xf]
  %v80 = vld [vmem:[%s1 + $0x38] sm:$0xf]
  %v81 = vld [vmem:[%s1 + $0x3c] sm:$0xf]
  %v82 = vld [vmem:[%s1 + $0x40] sm:$0xf]
  %v83 = vld [vmem:[%s1 + $0x44] sm:$0xf]
  %v84 = vld [vmem:[%s1 + $0x48] sm:$0xf]
  %v85 = vld [vmem:[%s1 + $0x4c] sm:$0xf]
  %v86 = vld [vmem:[%s1 + $0x50] sm:$0xf]
  %v87 = vld [vmem:[%s1 + $0x54] sm:$0xf]
  %v88 = vld [vmem:[%s1 + $0x58] sm:$0xf]
  %v89 = vld [vmem:[%s1 + $0x5c] sm:$0xf]
  %v90 = vld [vmem:[%s1 + $0x60] sm:$0xf]
  %v91 = vld [vmem:[%s1 + $0x64] sm:$0xf]
  %v92 = vld [vmem:[%s1 + $0x68] sm:$0xf]
  %v93 = vld [vmem:[%s1 + $0x6c] sm:$0xf]
  %v94 = vld [vmem:[%s1 + $0x70] sm:$0xf]
  %v95 = vld [vmem:[%s1 + $0x74] sm:$0xf]
  %v96 = vld [vmem:[%s1 + $0x78] sm:$0xf]
  %v97 = vld [vmem:[%s1 + $0x7c] sm:$0xf]
  %v98 = vld [vmem:[%s1 + $0x80] sm:$0xf]
  %v99 = vld [vmem:[%s1 + $0x84] sm:$0xf]
  %v100 = vld [vmem:[%s1 + $0x88] sm:$0xf]
  %v101 = vld [vmem:[%s1 + $0x8c] sm:$0xf]
  %v102 = vld [vmem:[%s1 + $0x90] sm:$0xf]
  %v103 = vld [vmem:[%s1 + $0x94] sm:$0xf]
  %v104 = vld [vmem:[%s1 + $0x98] sm:$0xf]
  %v105 = vld [vmem:[%s1 + $0x9c] sm:$0xf]
  %v106 = vld [vmem:[%s1 + $0xa0] sm:$0xf]
  %v107 = vld [vmem:[%s1 + $0xa4] sm:$0xf]
  %v108 = vld [vmem:[%s1 + $0xa8] sm:$0xf]
  %v109 = vld [vmem:[%s1 + $0xac] sm:$0xf]
  %v110 = vld [vmem:[%s1 + $0xb0] sm:$0xf]
  %v111 = vld [vmem:[%s1 + $0xb4] sm:$0xf]
  %v112 = vld [vmem:[%s1 + $0xb8] sm:$0xf]
  %v113 = vld [vmem:[%s1 + $0xbc] sm:$0xf]
  %v114 = vld [vmem:[%s1 + $0xc0] sm:$0xf]
  %v115 = vld [vmem:[%s1 + $0xc4] sm:$0xf]
  %v116 = vld [vmem:[%s1 + $0xc8] sm:$0xf]
  %v117 = vld [vmem:[%s1 + $0xcc] sm:$0xf]
  %v118 = vld [vmem:[%s1 + $0xd0] sm:$0xf]
  %v119 = vld [vmem:[%s1 + $0xd4] sm:$0xf]
  %v120 = vld [vmem:[%s1 + $0xd8] sm:$0xf]
  %v121 = vld [vmem:[%s1 + $0xdc] sm:$0xf]
  %v122 = vld [vmem:[%s1 + $0xe0] sm:$0xf]
  %v123 = vld [vmem:[%s1 + $0xe4] sm:$0xf]
  %v124 = vld [vmem:[%s1 + $0xe8] sm:$0xf]
  %v125 = vld [vmem:[%s1 + $0xec] sm:$0xf]
  %v126 = vld [vmem:[%s1 + $0xf0] sm:$0xf]
  %v127 = vld [vmem:[%s1 + $0xf4] sm:$0xf]
  %v128 = vld [vmem:[%s1 + $0xf8] sm:$0xf]
  %v129 = vld [vmem:[%s1 + $0xfc] sm:$0xf]
  %v130 = vld [vmem:[%s1 + $0x100] sm:$0xf]
  %v131 = vld [vmem:[%s1 + $0x104] sm:$0xf]
  %v132 = vld [vmem:[%s1 + $0x108] sm:$0xf]
  %v133 = vld [vmem:[%s1 + $0x10c] sm:$0xf]
  %v134 = vld [vmem:[%s1 + $0x110] sm:$0xf]
  %v135 = vld [vmem:[%s1 + $0x114] sm:$0xf]
  %v136 = vld [vmem:[%s1 + $0x118] sm:$0xf]
  %v137 = vld [vmem:[%s1 + $0x11c] sm:$0xf]
  %v138 = vld [vmem:[%s2] sm:$0x1]
  %v140 = vlaneseq
  %v141 = vshrl.u32 %v140, 7
  %v142 = vsub.s32 0, %v141
  %v143 = vrot.slane %v138, %v142
  %v193 = vunpack.c.l.b16 %v18
  %v194 = vunpack.c.h.b16 %v18
  %v195 = vunpack.c.l.b16 %v19
  %v196 = vunpack.c.h.b16 %v19
  %v197 = vunpack.c.l.b16 %v20
  %v198 = vunpack.c.l.b16 %v21
  %v199 = vunpack.c.h.b16 %v21
  %v200 = vunpack.c.l.b16 %v22
  %v201 = vunpack.c.h.b16 %v22
  %v202 = vunpack.c.l.b16 %v23
  %v203 = vunpack.c.l.b16 %v24
  %v204 = vunpack.c.h.b16 %v24
  %v205 = vunpack.c.l.b16 %v25
  %v206 = vunpack.c.h.b16 %v25
  %v207 = vunpack.c.l.b16 %v26
  %v208 = vunpack.c.l.b16 %v27
  %v209 = vunpack.c.h.b16 %v27
  %v210 = vunpack.c.l.b16 %v28
  %v211 = vunpack.c.h.b16 %v28
  %v212 = vunpack.c.l.b16 %v29
  %v213 = vunpack.c.l.b16 %v30
  %v214 = vunpack.c.h.b16 %v30
  %v215 = vunpack.c.l.b16 %v31
  %v216 = vunpack.c.h.b16 %v31
  %v217 = vunpack.c.l.b16 %v32
  %v218 = vunpack.c.l.b16 %v33
  %v219 = vunpack.c.h.b16 %v33
  %v220 = vunpack.c.l.b16 %v34
  %v221 = vunpack.c.h.b16 %v34
  %v222 = vunpack.c.l.b16 %v35
  %v223 = vunpack.c.l.b16 %v36
  %v224 = vunpack.c.h.b16 %v36
  %v225 = vunpack.c.l.b16 %v37
  %v226 = vunpack.c.h.b16 %v37
  %v227 = vunpack.c.l.b16 %v38
  %v228 = vunpack.c.l.b16 %v39
  %v229 = vunpack.c.h.b16 %v39
  %v230 = vunpack.c.l.b16 %v40
  %v231 = vunpack.c.h.b16 %v40
  %v232 = vunpack.c.l.b16 %v41
  %v233 = vunpack.c.l.b16 %v42
  %v234 = vunpack.c.h.b16 %v42
  %v235 = vunpack.c.l.b16 %v43
  %v236 = vunpack.c.h.b16 %v43
  %v237 = vunpack.c.l.b16 %v44
  %v238 = vunpack.c.l.b16 %v45
  %v239 = vunpack.c.h.b16 %v45
  %v240 = vunpack.c.l.b16 %v46
  %v241 = vunpack.c.h.b16 %v46
  %v242 = vunpack.c.l.b16 %v47
  %v243 = vunpack.c.l.b16 %v48
  %v244 = vunpack.c.h.b16 %v48
  %v245 = vunpack.c.l.b16 %v49
  %v246 = vunpack.c.h.b16 %v49
  %v247 = vunpack.c.l.b16 %v50
  %v248 = vunpack.c.l.b16 %v51
  %v249 = vunpack.c.h.b16 %v51
  %v250 = vunpack.c.l.b16 %v52
  %v251 = vunpack.c.h.b16 %v52
  %v252 = vunpack.c.l.b16 %v53
  %v253 = vunpack.c.l.b16 %v54
  %v254 = vunpack.c.h.b16 %v54
  %v255 = vunpack.c.l.b16 %v55
  %v256 = vunpack.c.h.b16 %v55
  %v257 = vunpack.c.l.b16 %v56
  %v258 = vunpack.c.l.b16 %v57
  %v259 = vunpack.c.h.b16 %v57
  %v260 = vunpack.c.l.b16 %v58
  %v261 = vunpack.c.h.b16 %v58
  %v262 = vunpack.c.l.b16 %v59
  %v263 = vunpack.c.l.b16 %v60
  %v264 = vunpack.c.h.b16 %v60
  %v265 = vunpack.c.l.b16 %v61
  %v266 = vunpack.c.h.b16 %v61
  %v267 = vunpack.c.l.b16 %v62
  %v268 = vunpack.c.l.b16 %v63
  %v269 = vunpack.c.h.b16 %v63
  %v270 = vunpack.c.l.b16 %v64
  %v271 = vunpack.c.h.b16 %v64
  %v272 = vunpack.c.l.b16 %v65
  %v273 = vpack.c.b16 %v198, %v193
  %v274 = vpack.c.b16 %v199, %v194
  %v275 = vpack.c.b16 %v200, %v195
  %v276 = vpack.c.b16 %v201, %v196
  %v277 = vpack.c.b16 %v202, %v197
  %v278 = vpack.c.b16 %v208, %v203
  %v279 = vpack.c.b16 %v209, %v204
  %v280 = vpack.c.b16 %v210, %v205
  %v281 = vpack.c.b16 %v211, %v206
  %v282 = vpack.c.b16 %v212, %v207
  %v283 = vpack.c.b16 %v218, %v213
  %v284 = vpack.c.b16 %v219, %v214
  %v285 = vpack.c.b16 %v220, %v215
  %v286 = vpack.c.b16 %v221, %v216
  %v287 = vpack.c.b16 %v222, %v217
  %v288 = vpack.c.b16 %v228, %v223
  %v289 = vpack.c.b16 %v229, %v224
  %v290 = vpack.c.b16 %v230, %v225
  %v291 = vpack.c.b16 %v231, %v226
  %v292 = vpack.c.b16 %v232, %v227
  %v293 = vpack.c.b16 %v238, %v233
  %v294 = vpack.c.b16 %v239, %v234
  %v295 = vpack.c.b16 %v240, %v235
  %v296 = vpack.c.b16 %v241, %v236
  %v297 = vpack.c.b16 %v242, %v237
  %v298 = vpack.c.b16 %v248, %v243
  %v299 = vpack.c.b16 %v249, %v244
  %v300 = vpack.c.b16 %v250, %v245
  %v301 = vpack.c.b16 %v251, %v246
  %v302 = vpack.c.b16 %v252, %v247
  %v303 = vpack.c.b16 %v258, %v253
  %v304 = vpack.c.b16 %v259, %v254
  %v305 = vpack.c.b16 %v260, %v255
  %v306 = vpack.c.b16 %v261, %v256
  %v307 = vpack.c.b16 %v262, %v257
  %v308 = vpack.c.b16 %v268, %v263
  %v309 = vpack.c.b16 %v269, %v264
  %v310 = vpack.c.b16 %v270, %v265
  %v311 = vpack.c.b16 %v271, %v266
  %v312 = vpack.c.b16 %v272, %v267
  %v417 = vunpack.c.l.b16 %v66
  %v418 = vunpack.c.l.b16 %v67
  %v419 = vunpack.c.l.b16 %v68
  %v420 = vunpack.c.l.b16 %v69
  %v421 = vunpack.c.l.b16 %v70
  %v422 = vunpack.c.l.b16 %v71
  %v423 = vunpack.c.l.b16 %v72
  %v424 = vunpack.c.l.b16 %v73
  %v425 = vunpack.c.l.b16 %v74
  %v426 = vunpack.c.l.b16 %v75
  %v427 = vunpack.c.l.b16 %v76
  %v428 = vunpack.c.l.b16 %v77
  %v429 = vunpack.c.l.b16 %v78
  %v430 = vunpack.c.l.b16 %v79
  %v431 = vunpack.c.l.b16 %v80
  %v432 = vunpack.c.l.b16 %v81
  %v433 = vunpack.c.l.b16 %v82
  %v434 = vunpack.c.l.b16 %v83
  %v435 = vunpack.c.l.b16 %v84
  %v436 = vunpack.c.l.b16 %v85
  %v437 = vunpack.c.l.b16 %v86
  %v438 = vunpack.c.l.b16 %v87
  %v439 = vunpack.c.l.b16 %v88
  %v440 = vunpack.c.l.b16 %v89
  %v441 = vunpack.c.l.b16 %v90
  %v442 = vunpack.c.l.b16 %v91
  %v443 = vunpack.c.l.b16 %v92
  %v444 = vunpack.c.l.b16 %v93
  %v445 = vunpack.c.l.b16 %v94
  %v446 = vunpack.c.l.b16 %v95
  %v447 = vunpack.c.l.b16 %v96
  %v448 = vunpack.c.l.b16 %v97
  %v449 = vunpack.c.l.b16 %v98
  %v450 = vunpack.c.l.b16 %v99
  %v451 = vunpack.c.l.b16 %v100
  %v452 = vunpack.c.l.b16 %v101
  %v453 = vunpack.c.l.b16 %v102
  %v454 = vunpack.c.l.b16 %v103
  %v455 = vunpack.c.l.b16 %v104
  %v456 = vunpack.c.l.b16 %v105
  %v457 = vunpack.c.l.b16 %v106
  %v458 = vunpack.c.l.b16 %v107
  %v459 = vunpack.c.l.b16 %v108
  %v460 = vunpack.c.l.b16 %v109
  %v461 = vunpack.c.l.b16 %v110
  %v462 = vunpack.c.l.b16 %v111
  %v463 = vunpack.c.l.b16 %v112
  %v464 = vunpack.c.l.b16 %v113
  %v465 = vunpack.c.l.b16 %v114
  %v466 = vunpack.c.l.b16 %v115
  %v467 = vunpack.c.l.b16 %v116
  %v468 = vunpack.c.l.b16 %v117
  %v469 = vunpack.c.l.b16 %v118
  %v470 = vunpack.c.l.b16 %v119
  %v471 = vunpack.c.l.b16 %v120
  %v472 = vunpack.c.l.b16 %v121
  %v473 = vunpack.c.l.b16 %v122
  %v474 = vunpack.c.l.b16 %v123
  %v475 = vunpack.c.l.b16 %v124
  %v476 = vunpack.c.l.b16 %v125
  %v477 = vunpack.c.l.b16 %v126
  %v478 = vunpack.c.l.b16 %v127
  %v479 = vunpack.c.l.b16 %v128
  %v480 = vunpack.c.l.b16 %v129
  %v481 = vunpack.c.l.b16 %v130
  %v482 = vunpack.c.l.b16 %v131
  %v483 = vunpack.c.l.b16 %v132
  %v484 = vunpack.c.l.b16 %v133
  %v485 = vunpack.c.l.b16 %v134
  %v486 = vunpack.c.l.b16 %v135
  %v487 = vunpack.c.l.b16 %v136
  %v488 = vunpack.c.l.b16 %v137
  %v489 = vpack.c.b16 %v418, %v417
  %v490 = vpack.c.b16 %v420, %v419
  %v491 = vpack.c.b16 %v422, %v421
  %v492 = vpack.c.b16 %v424, %v423
  %v493 = vpack.c.b16 %v426, %v425
  %v494 = vpack.c.b16 %v428, %v427
  %v495 = vpack.c.b16 %v430, %v429
  %v496 = vpack.c.b16 %v432, %v431
  %v497 = vpack.c.b16 %v434, %v433
  %v498 = vpack.c.b16 %v436, %v435
  %v499 = vpack.c.b16 %v438, %v437
  %v500 = vpack.c.b16 %v440, %v439
  %v501 = vpack.c.b16 %v442, %v441
  %v502 = vpack.c.b16 %v444, %v443
  %v503 = vpack.c.b16 %v446, %v445
  %v504 = vpack.c.b16 %v448, %v447
  %v505 = vpack.c.b16 %v450, %v449
  %v506 = vpack.c.b16 %v452, %v451
  %v507 = vpack.c.b16 %v454, %v453
  %v508 = vpack.c.b16 %v456, %v455
  %v509 = vpack.c.b16 %v458, %v457
  %v510 = vpack.c.b16 %v460, %v459
  %v511 = vpack.c.b16 %v462, %v461
  %v512 = vpack.c.b16 %v464, %v463
  %v513 = vpack.c.b16 %v466, %v465
  %v514 = vpack.c.b16 %v468, %v467
  %v515 = vpack.c.b16 %v470, %v469
  %v516 = vpack.c.b16 %v472, %v471
  %v517 = vpack.c.b16 %v474, %v473
  %v518 = vpack.c.b16 %v476, %v475
  %v519 = vpack.c.b16 %v478, %v477
  %v520 = vpack.c.b16 %v480, %v479
  %v521 = vpack.c.b16 %v482, %v481
  %v522 = vpack.c.b16 %v484, %v483
  %v523 = vpack.c.b16 %v486, %v485
  %v524 = vpack.c.b16 %v488, %v487
  %vm561 = vcmask 523264
  %v563 = vsel %vm561, %v277, 0
  %v566 = vsel %vm561, %v282, 0
  %v569 = vsel %vm561, %v287, 0
  %v572 = vsel %vm561, %v292, 0
  %v575 = vsel %vm561, %v297, 0
  %v578 = vsel %vm561, %v302, 0
  %v581 = vsel %vm561, %v307, 0
  %v584 = vsel %vm561, %v312, 0
  %586 = vmatprep.subr.bf16.mxu0 0
  %587 = vmatpush1.bf16.msra.mxu0 %v496
  %588 = vmatprep.subr.bf16.mxu0 0
  %589 = vmatpush1.bf16.msra.mxu0 %v495
  %590 = vmatprep.subr.bf16.mxu0 0
  %591 = vmatpush1.bf16.msra.mxu0 %v494
  %592 = vmatprep.subr.bf16.mxu0 0
  %593 = vmatpush1.bf16.msra.mxu0 %v493
  %594 = vmatprep.subr.bf16.mxu0 0
  %595 = vmatpush1.bf16.msra.mxu0 %v492
  %596 = vmatprep.subr.bf16.mxu0 0
  %597 = vmatpush1.bf16.msra.mxu0 %v491
  %598 = vmatprep.subr.bf16.mxu0 0
  %599 = vmatpush1.bf16.msra.mxu0 %v490
  %600 = vmatprep.subr.bf16.mxu0 0
  %601 = vmatpush1.bf16.msra.mxu0 %v489
  %602 = vmatprep.subr.bf16.mxu0 0
  %603 = vmatpush2.bf16.msra.mxu0 %v504
  %604 = vmatprep.subr.bf16.mxu0 0
  %605 = vmatpush2.bf16.msra.mxu0 %v503
  %606 = vmatprep.subr.bf16.mxu0 0
  %607 = vmatpush2.bf16.msra.mxu0 %v502
  %608 = vmatprep.subr.bf16.mxu0 0
  %609 = vmatpush2.bf16.msra.mxu0 %v501
  %610 = vmatprep.subr.bf16.mxu0 0
  %611 = vmatpush2.bf16.msra.mxu0 %v500
  %612 = vmatprep.subr.bf16.mxu0 0
  %613 = vmatpush2.bf16.msra.mxu0 %v499
  %614 = vmatprep.subr.bf16.mxu0 0
  %615 = vmatpush2.bf16.msra.mxu0 %v498
  %616 = vmatprep.subr.bf16.mxu0 0
  %617 = vmatpush2.bf16.msra.mxu0 %v497
  %618 = vmatprep.mubr.bf16.mxu0 %v274
  %619 = vmatmul.mubr.bf16.gmra.mxu0 %v273
  %v620 = vpop.f32.mrf.mxu0
  %v621 = vadd.f32 %v143, %v620
  %v622 = vpop.f32.mrf.mxu0
  %v623 = vpop.f32.mrf.mxu0
  %v624 = vadd.f32 %v143, %v623
  %v625 = vpop.f32.mrf.mxu0
  %626 = vmatprep.mubr.bf16.mxu0 %v279
  %627 = vmatmul.mubr.bf16.gmra.mxu0 %v278
  %v628 = vpop.f32.mrf.mxu0
  %v629 = vadd.f32 %v143, %v628
  %v630 = vpop.f32.mrf.mxu0
  %v631 = vpop.f32.mrf.mxu0
  %v632 = vadd.f32 %v143, %v631
  %v633 = vpop.f32.mrf.mxu0
  %634 = vmatprep.mubr.bf16.mxu0 %v284
  %635 = vmatmul.mubr.bf16.gmra.mxu0 %v283
  %v636 = vpop.f32.mrf.mxu0
  %v637 = vadd.f32 %v143, %v636
  %v638 = vpop.f32.mrf.mxu0
  %v639 = vpop.f32.mrf.mxu0
  %v640 = vadd.f32 %v143, %v639
  %v641 = vpop.f32.mrf.mxu0
  %642 = vmatprep.mubr.bf16.mxu0 %v289
  %643 = vmatmul.mubr.bf16.gmra.mxu0 %v288
  %v644 = vpop.f32.mrf.mxu0
  %v645 = vadd.f32 %v143, %v644
  %v646 = vpop.f32.mrf.mxu0
  %v647 = vpop.f32.mrf.mxu0
  %v648 = vadd.f32 %v143, %v647
  %v649 = vpop.f32.mrf.mxu0
  %650 = vmatprep.mubr.bf16.mxu0 %v294
  %651 = vmatmul.mubr.bf16.gmra.mxu0 %v293
  %v652 = vpop.f32.mrf.mxu0
  %v653 = vadd.f32 %v143, %v652
  %v654 = vpop.f32.mrf.mxu0
  %v655 = vpop.f32.mrf.mxu0
  %v656 = vadd.f32 %v143, %v655
  %v657 = vpop.f32.mrf.mxu0
  %658 = vmatprep.mubr.bf16.mxu0 %v299
  %659 = vmatmul.mubr.bf16.gmra.mxu0 %v298
  %v660 = vpop.f32.mrf.mxu0
  %v661 = vadd.f32 %v143, %v660
  %v662 = vpop.f32.mrf.mxu0
  %v663 = vpop.f32.mrf.mxu0
  %v664 = vadd.f32 %v143, %v663
  %v665 = vpop.f32.mrf.mxu0
  %666 = vmatprep.mubr.bf16.mxu0 %v304
  %667 = vmatmul.mubr.bf16.gmra.mxu0 %v303
  %v668 = vpop.f32.mrf.mxu0
  %v669 = vadd.f32 %v143, %v668
  %v670 = vpop.f32.mrf.mxu0
  %v671 = vpop.f32.mrf.mxu0
  %v672 = vadd.f32 %v143, %v671
  %v673 = vpop.f32.mrf.mxu0
  %674 = vmatprep.mubr.bf16.mxu0 %v309
  %675 = vmatmul.mubr.bf16.gmra.mxu0 %v308
  %v676 = vpop.f32.mrf.mxu0
  %v677 = vadd.f32 %v143, %v676
  %v678 = vpop.f32.mrf.mxu0
  %v679 = vpop.f32.mrf.mxu0
  %v680 = vadd.f32 %v143, %v679
  %v681 = vpop.f32.mrf.mxu0
  %682 = vdwg.mxu0
  %683 = vmatprep.subr.bf16.mxu0 0
  %684 = vmatpush1.bf16.msra.mxu0 %v512
  %685 = vmatprep.subr.bf16.mxu0 0
  %686 = vmatpush1.bf16.msra.mxu0 %v511
  %687 = vmatprep.subr.bf16.mxu0 0
  %688 = vmatpush1.bf16.msra.mxu0 %v510
  %689 = vmatprep.subr.bf16.mxu0 0
  %690 = vmatpush1.bf16.msra.mxu0 %v509
  %691 = vmatprep.subr.bf16.mxu0 0
  %692 = vmatpush1.bf16.msra.mxu0 %v508
  %693 = vmatprep.subr.bf16.mxu0 0
  %694 = vmatpush1.bf16.msra.mxu0 %v507
  %695 = vmatprep.subr.bf16.mxu0 0
  %696 = vmatpush1.bf16.msra.mxu0 %v506
  %697 = vmatprep.subr.bf16.mxu0 0
  %698 = vmatpush1.bf16.msra.mxu0 %v505
  %699 = vmatprep.subr.bf16.mxu0 0
  %700 = vmatpush2.bf16.msra.mxu0 %v520
  %701 = vmatprep.subr.bf16.mxu0 0
  %702 = vmatpush2.bf16.msra.mxu0 %v519
  %703 = vmatprep.subr.bf16.mxu0 0
  %704 = vmatpush2.bf16.msra.mxu0 %v518
  %705 = vmatprep.subr.bf16.mxu0 0
  %706 = vmatpush2.bf16.msra.mxu0 %v517
  %707 = vmatprep.subr.bf16.mxu0 0
  %708 = vmatpush2.bf16.msra.mxu0 %v516
  %709 = vmatprep.subr.bf16.mxu0 0
  %710 = vmatpush2.bf16.msra.mxu0 %v515
  %711 = vmatprep.subr.bf16.mxu0 0
  %712 = vmatpush2.bf16.msra.mxu0 %v514
  %713 = vmatprep.subr.bf16.mxu0 0
  %714 = vmatpush2.bf16.msra.mxu0 %v513
  %715 = vmatprep.mubr.bf16.mxu0 %v276
  %716 = vmatmul.mubr.bf16.gmra.mxu0 %v275
  %v717 = vpop.f32.mrf.mxu0
  %v718 = vadd.f32 %v621, %v717
  %v719 = vpop.f32.mrf.mxu0
  %v720 = vpop.f32.mrf.mxu0
  %v721 = vadd.f32 %v624, %v720
  %v722 = vpop.f32.mrf.mxu0
  %723 = vmatprep.mubr.bf16.mxu0 %v281
  %724 = vmatmul.mubr.bf16.gmra.mxu0 %v280
  %v725 = vpop.f32.mrf.mxu0
  %v726 = vadd.f32 %v629, %v725
  %v727 = vpop.f32.mrf.mxu0
  %v728 = vpop.f32.mrf.mxu0
  %v729 = vadd.f32 %v632, %v728
  %v730 = vpop.f32.mrf.mxu0
  %731 = vmatprep.mubr.bf16.mxu0 %v286
  %732 = vmatmul.mubr.bf16.gmra.mxu0 %v285
  %v733 = vpop.f32.mrf.mxu0
  %v734 = vadd.f32 %v637, %v733
  %v735 = vpop.f32.mrf.mxu0
  %v736 = vpop.f32.mrf.mxu0
  %v737 = vadd.f32 %v640, %v736
  %v738 = vpop.f32.mrf.mxu0
  %739 = vmatprep.mubr.bf16.mxu0 %v291
  %740 = vmatmul.mubr.bf16.gmra.mxu0 %v290
  %v741 = vpop.f32.mrf.mxu0
  %v742 = vadd.f32 %v645, %v741
  %v743 = vpop.f32.mrf.mxu0
  %v744 = vpop.f32.mrf.mxu0
  %v745 = vadd.f32 %v648, %v744
  %v746 = vpop.f32.mrf.mxu0
  %747 = vmatprep.mubr.bf16.mxu0 %v296
  %748 = vmatmul.mubr.bf16.gmra.mxu0 %v295
  %v749 = vpop.f32.mrf.mxu0
  %v750 = vadd.f32 %v653, %v749
  %v751 = vpop.f32.mrf.mxu0
  %v752 = vpop.f32.mrf.mxu0
  %v753 = vadd.f32 %v656, %v752
  %v754 = vpop.f32.mrf.mxu0
  %755 = vmatprep.mubr.bf16.mxu0 %v301
  %756 = vmatmul.mubr.bf16.gmra.mxu0 %v300
  %v757 = vpop.f32.mrf.mxu0
  %v758 = vadd.f32 %v661, %v757
  %v759 = vpop.f32.mrf.mxu0
  %v760 = vpop.f32.mrf.mxu0
  %v761 = vadd.f32 %v664, %v760
  %v762 = vpop.f32.mrf.mxu0
  %763 = vmatprep.mubr.bf16.mxu0 %v306
  %764 = vmatmul.mubr.bf16.gmra.mxu0 %v305
  %v765 = vpop.f32.mrf.mxu0
  %v766 = vadd.f32 %v669, %v765
  %v767 = vpop.f32.mrf.mxu0
  %v768 = vpop.f32.mrf.mxu0
  %v769 = vadd.f32 %v672, %v768
  %v770 = vpop.f32.mrf.mxu0
  %771 = vmatprep.mubr.bf16.mxu0 %v311
  %772 = vmatmul.mubr.bf16.gmra.mxu0 %v310
  %v773 = vpop.f32.mrf.mxu0
  %v774 = vadd.f32 %v677, %v773
  %v775 = vpop.f32.mrf.mxu0
  %v776 = vpop.f32.mrf.mxu0
  %v777 = vadd.f32 %v680, %v776
  %v778 = vpop.f32.mrf.mxu0
  %779 = vdwg.mxu0
  %780 = vmatprep.subr.bf16.mxu0 0
  %781 = vmatpush1.bf16.msra.mxu0 0
  %782 = vmatprep.subr.bf16.mxu0 0
  %783 = vmatpush1.bf16.msra.mxu0 0
  %784 = vmatprep.subr.bf16.mxu0 0
  %785 = vmatpush1.bf16.msra.mxu0 0
  %786 = vmatprep.subr.bf16.mxu0 0
  %787 = vmatpush1.bf16.msra.mxu0 0
  %788 = vmatprep.subr.bf16.mxu0 0
  %789 = vmatpush1.bf16.msra.mxu0 %v524
  %790 = vmatprep.subr.bf16.mxu0 0
  %791 = vmatpush1.bf16.msra.mxu0 %v523
  %792 = vmatprep.subr.bf16.mxu0 0
  %793 = vmatpush1.bf16.msra.mxu0 %v522
  %794 = vmatprep.subr.bf16.mxu0 0
  %795 = vmatpush1.bf16.msra.mxu0 %v521
  %796 = vmatprep.subr.bf16.mxu0 0
  %797 = vmatpush2.bf16.msra.mxu0 0
  %798 = vmatprep.subr.bf16.mxu0 0
  %799 = vmatpush2.bf16.msra.mxu0 0
  %800 = vmatprep.subr.bf16.mxu0 0
  %801 = vmatpush2.bf16.msra.mxu0 0
  %802 = vmatprep.subr.bf16.mxu0 0
  %803 = vmatpush2.bf16.msra.mxu0 0
  %804 = vmatprep.subr.bf16.mxu0 0
  %805 = vmatpush2.bf16.msra.mxu0 0
  %806 = vmatprep.subr.bf16.mxu0 0
  %807 = vmatpush2.bf16.msra.mxu0 0
  %808 = vmatprep.subr.bf16.mxu0 0
  %809 = vmatpush2.bf16.msra.mxu0 0
  %810 = vmatprep.subr.bf16.mxu0 0
  %811 = vmatpush2.bf16.msra.mxu0 0
  %812 = vmatprep.mubr.bf16.mxu0 0
  %813 = vmatmul.mubr.bf16.gmra.mxu0 %v563
  %v814 = vpop.f32.mrf.mxu0
  %v815 = vadd.f32 %v718, %v814
  %v816 = vpop.f32.mrf.mxu0
  %v817 = vpop.f32.mrf.mxu0
  %v818 = vadd.f32 %v721, %v817
  %v819 = vpop.f32.mrf.mxu0
  %820 = vmatprep.mubr.bf16.mxu0 0
  %821 = vmatmul.mubr.bf16.gmra.mxu0 %v566
  %v822 = vpop.f32.mrf.mxu0
  %v823 = vadd.f32 %v726, %v822
  %v824 = vpop.f32.mrf.mxu0
  %v825 = vpop.f32.mrf.mxu0
  %v826 = vadd.f32 %v729, %v825
  %v827 = vpop.f32.mrf.mxu0
  %828 = vmatprep.mubr.bf16.mxu0 0
  %829 = vmatmul.mubr.bf16.gmra.mxu0 %v569
  %v830 = vpop.f32.mrf.mxu0
  %v831 = vadd.f32 %v734, %v830
  %v832 = vpop.f32.mrf.mxu0
  %v833 = vpop.f32.mrf.mxu0
  %v834 = vadd.f32 %v737, %v833
  %v835 = vpop.f32.mrf.mxu0
  %836 = vmatprep.mubr.bf16.mxu0 0
  %837 = vmatmul.mubr.bf16.gmra.mxu0 %v572
  %v838 = vpop.f32.mrf.mxu0
  %v839 = vadd.f32 %v742, %v838
  %v840 = vpop.f32.mrf.mxu0
  %v841 = vpop.f32.mrf.mxu0
  %v842 = vadd.f32 %v745, %v841
  %v843 = vpop.f32.mrf.mxu0
  %844 = vmatprep.mubr.bf16.mxu0 0
  %845 = vmatmul.mubr.bf16.gmra.mxu0 %v575
  %v846 = vpop.f32.mrf.mxu0
  %v847 = vadd.f32 %v750, %v846
  %v848 = vpop.f32.mrf.mxu0
  %v849 = vpop.f32.mrf.mxu0
  %v850 = vadd.f32 %v753, %v849
  %v851 = vpop.f32.mrf.mxu0
  %852 = vmatprep.mubr.bf16.mxu0 0
  %853 = vmatmul.mubr.bf16.gmra.mxu0 %v578
  %v854 = vpop.f32.mrf.mxu0
  %v855 = vadd.f32 %v758, %v854
  %v856 = vpop.f32.mrf.mxu0
  %v857 = vpop.f32.mrf.mxu0
  %v858 = vadd.f32 %v761, %v857
  %v859 = vpop.f32.mrf.mxu0
  %860 = vmatprep.mubr.bf16.mxu0 0
  %861 = vmatmul.mubr.bf16.gmra.mxu0 %v581
  %v862 = vpop.f32.mrf.mxu0
  %v863 = vadd.f32 %v766, %v862
  %v864 = vpop.f32.mrf.mxu0
  %v865 = vpop.f32.mrf.mxu0
  %v866 = vadd.f32 %v769, %v865
  %v867 = vpop.f32.mrf.mxu0
  %868 = vmatprep.mubr.bf16.mxu0 0
  %869 = vmatmul.mubr.bf16.gmra.mxu0 %v584
  %v870 = vpop.f32.mrf.mxu0
  %v871 = vadd.f32 %v774, %v870
  %v872 = vpop.f32.mrf.mxu0
  %v873 = vpop.f32.mrf.mxu0
  %v874 = vadd.f32 %v777, %v873
  %v875 = vpop.f32.mrf.mxu0
  %876 = vdwg.mxu0
  %v877 = vld [vmem:[%s3] sm:$0xf]
  %v878 = vld [vmem:[%s3 + $0x4] sm:$0xf]
  %v879 = vld [vmem:[%s3 + $0x8] sm:$0xf]
  %v880 = vld [vmem:[%s3 + $0xc] sm:$0xf]
  %v881 = vld [vmem:[%s3 + $0x10] sm:$0xf]
  %v882 = vld [vmem:[%s3 + $0x14] sm:$0xf]
  %v883 = vld [vmem:[%s3 + $0x18] sm:$0xf]
  %v884 = vld [vmem:[%s3 + $0x1c] sm:$0xf]
  %v885 = vld [vmem:[%s3 + $0x20] sm:$0xf]
  %v886 = vld [vmem:[%s3 + $0x24] sm:$0xf]
  %v887 = vld [vmem:[%s3 + $0x28] sm:$0xf]
  %v888 = vld [vmem:[%s3 + $0x2c] sm:$0xf]
  %v889 = vld [vmem:[%s3 + $0x30] sm:$0xf]
  %v890 = vld [vmem:[%s3 + $0x34] sm:$0xf]
  %v891 = vld [vmem:[%s3 + $0x38] sm:$0xf]
  %v892 = vld [vmem:[%s3 + $0x3c] sm:$0xf]
  %v893 = vunpack.c.l.bf16 %v877
  %v894 = vunpack.c.l.bf16 %v878
  %v895 = vunpack.c.l.bf16 %v879
  %v896 = vunpack.c.l.bf16 %v880
  %v897 = vunpack.c.l.bf16 %v881
  %v898 = vunpack.c.l.bf16 %v882
  %v899 = vunpack.c.l.bf16 %v883
  %v900 = vunpack.c.l.bf16 %v884
  %v901 = vunpack.c.l.bf16 %v885
  %v902 = vunpack.c.l.bf16 %v886
  %v903 = vunpack.c.l.bf16 %v887
  %v904 = vunpack.c.l.bf16 %v888
  %v905 = vunpack.c.l.bf16 %v889
  %v906 = vunpack.c.l.bf16 %v890
  %v907 = vunpack.c.l.bf16 %v891
  %v908 = vunpack.c.l.bf16 %v892
  %v909 = vadd.f32 %v815, %v893
  %v910 = vadd.f32 %v818, %v894
  %v911 = vadd.f32 %v823, %v895
  %v912 = vadd.f32 %v826, %v896
  %v913 = vadd.f32 %v831, %v897
  %v914 = vadd.f32 %v834, %v898
  %v915 = vadd.f32 %v839, %v899
  %v916 = vadd.f32 %v842, %v900
  %v917 = vadd.f32 %v847, %v901
  %v918 = vadd.f32 %v850, %v902
  %v919 = vadd.f32 %v855, %v903
  %v920 = vadd.f32 %v858, %v904
  %v921 = vadd.f32 %v863, %v905
  %v922 = vadd.f32 %v866, %v906
  %v923 = vadd.f32 %v871, %v907
  %v924 = vadd.f32 %v874, %v908
  %v925 = vmax.f32 %v909, 0.0
  %v926 = vmax.f32 %v910, 0.0
  %v927 = vmax.f32 %v911, 0.0
  %v928 = vmax.f32 %v912, 0.0
  %v929 = vmax.f32 %v913, 0.0
  %v930 = vmax.f32 %v914, 0.0
  %v931 = vmax.f32 %v915, 0.0
  %v932 = vmax.f32 %v916, 0.0
  %v933 = vmax.f32 %v917, 0.0
  %v934 = vmax.f32 %v918, 0.0
  %v935 = vmax.f32 %v919, 0.0
  %v936 = vmax.f32 %v920, 0.0
  %v937 = vmax.f32 %v921, 0.0
  %v938 = vmax.f32 %v922, 0.0
  %v939 = vmax.f32 %v923, 0.0
  %v940 = vmax.f32 %v924, 0.0
  %v941 = vpack.c.bf16 %v926, %v925
  %v942 = vpack.c.bf16 %v928, %v927
  %v943 = vpack.c.bf16 %v930, %v929
  %v944 = vpack.c.bf16 %v932, %v931
  %v945 = vpack.c.bf16 %v934, %v933
  %v946 = vpack.c.bf16 %v936, %v935
  %v947 = vpack.c.bf16 %v938, %v937
  %v948 = vpack.c.bf16 %v940, %v939
  %v957 = vunpack.c.l.b16 %v941
  %v958 = vunpack.c.h.b16 %v941
  %v959 = vunpack.c.l.b16 %v942
  %v960 = vunpack.c.h.b16 %v942
  %v961 = vunpack.c.l.b16 %v943
  %v962 = vunpack.c.h.b16 %v943
  %v963 = vunpack.c.l.b16 %v944
  %v964 = vunpack.c.h.b16 %v944
  %v965 = vunpack.c.l.b16 %v945
  %v966 = vunpack.c.h.b16 %v945
  %v967 = vunpack.c.l.b16 %v946
  %v968 = vunpack.c.h.b16 %v946
  %v969 = vunpack.c.l.b16 %v947
  %v970 = vunpack.c.h.b16 %v947
  %v971 = vunpack.c.l.b16 %v948
  %v972 = vunpack.c.h.b16 %v948
  %v973 = vpack.c.b16 %v957, %v957
  %v974 = vpack.c.b16 %v958, %v958
  %v975 = vpack.c.b16 %v959, %v959
  %v976 = vpack.c.b16 %v960, %v960
  %v977 = vpack.c.b16 %v961, %v961
  %v978 = vpack.c.b16 %v962, %v962
  %v979 = vpack.c.b16 %v963, %v963
  %v980 = vpack.c.b16 %v964, %v964
  %v981 = vpack.c.b16 %v965, %v965
  %v982 = vpack.c.b16 %v966, %v966
  %v983 = vpack.c.b16 %v967, %v967
  %v984 = vpack.c.b16 %v968, %v968
  %v985 = vpack.c.b16 %v969, %v969
  %v986 = vpack.c.b16 %v970, %v970
  %v987 = vpack.c.b16 %v971, %v971
  %v988 = vpack.c.b16 %v972, %v972
  %1005 = vst [vmem:[%s4] sm:$0xf] %v973
  %1006 = vst [vmem:[%s4 + $0x4] sm:$0xf] %v974
  %1007 = vst [vmem:[%s4 + $0x8] sm:$0xf] %v975
  %1008 = vst [vmem:[%s4 + $0xc] sm:$0xf] %v976
  %1009 = vst [vmem:[%s4 + $0x10] sm:$0xf] %v977
  %1010 = vst [vmem:[%s4 + $0x14] sm:$0xf] %v978
  %1011 = vst [vmem:[%s4 + $0x18] sm:$0xf] %v979
  %1012 = vst [vmem:[%s4 + $0x1c] sm:$0xf] %v980
  %1013 = vst [vmem:[%s4 + $0x20] sm:$0xf] %v981
  %1014 = vst [vmem:[%s4 + $0x24] sm:$0xf] %v982
  %1015 = vst [vmem:[%s4 + $0x28] sm:$0xf] %v983
  %1016 = vst [vmem:[%s4 + $0x2c] sm:$0xf] %v984
  %1017 = vst [vmem:[%s4 + $0x30] sm:$0xf] %v985
  %1018 = vst [vmem:[%s4 + $0x34] sm:$0xf] %v986
  %1019 = vst [vmem:[%s4 + $0x38] sm:$0xf] %v987
  %1020 = vst [vmem:[%s4 + $0x3c] sm:$0xf] %v988
  // Predicated region
  $region18: #{_lambda_.12} parent=0 // pred_check
    _
  $region19: #{_lambda_.12} parent=0 // pred_check_branch
    %1022 = sbr.rel (0) target = $region21
  $region20: #{_lambda_.12} parent=0 // pred_region
    _
  $region21: #{_lambda_.12} parent=0 // pred_fallthru
    _
  // Predicated region
  $region22: #{_lambda_.12} parent=0 // pred_check
    _
  $region23: #{_lambda_.12} parent=0 // pred_check_branch
    %1024 = sbr.rel (0) target = $region25
  $region24: #{_lambda_.12} parent=0 // pred_region
    _
  $region25: #{_lambda_.12} parent=0 // pred_fallthru
    _

// kernel: _lambda_.15
$region0: #{_lambda_.15}
  #allocation0 [shape = 'u32[]', space=smem, size = 0x4, offset = 0x4, fixed_abs, tag = 'smem constant byte address 0x4 - core index']
  #allocation1 [shape = 'u32[144,128]{1,0:T(1,128)}', space=vmem, size = 0x12000, scoped, tag = 'internal scratch']
  %s0 = inlined_call_operand.vmem [shape: bf16[32,576], index: 0, kind: input, shape index: {}]
  %s1 = inlined_call_operand.vmem [shape: bf16[576,128], index: 1, kind: input, shape index: {}]
  %s2 = inlined_call_operand.vmem [shape: f32[1,128], index: 2, kind: input, shape index: {}]
  %s3 = inlined_call_operand.vmem [shape: bf16[32,128], index: 3, kind: output, shape index: {}]
  %s4 = sld [smem:[#allocation0]]
  $region22: #{_lambda_.15} parent=0
    _
  %s6 = ssub.s32 1, %s4
  %s7 = scalar_select 0, %s6, %s4
  // Predicated region
  $region2: #{_lambda_.15} parent=0 // pred_check
    _
  $region3: #{_lambda_.15} parent=0 // pred_check_branch
    %9 = sbr.rel (0) target = $region5
  $region4: #{_lambda_.15} parent=0 // pred_region
    _
  $region5: #{_lambda_.15} parent=0 // pred_fallthru
    _
  // Predicated region
  $region6: #{_lambda_.15} parent=0 // pred_check
    _
  $region7: #{_lambda_.15} parent=0 // pred_check_branch
    %11 = sbr.rel (0) target = $region9
  $region8: #{_lambda_.15} parent=0 // pred_region
    _
  $region9: #{_lambda_.15} parent=0 // pred_fallthru
    _
  // Predicated region
  $region10: #{_lambda_.15} parent=0 // pred_check
    _
  $region11: #{_lambda_.15} parent=0 // pred_check_branch
    %13 = sbr.rel (0) target = $region13
  $region12: #{_lambda_.15} parent=0 // pred_region
    _
  $region13: #{_lambda_.15} parent=0 // pred_fallthru
    _
  %v15 = vld [vmem:[%s0] sm:$0xff]
  %v16 = vld [vmem:[%s0 + $0x8] sm:$0xff]
  %v17 = vld [vmem:[%s0 + $0x10] sm:$0xf]
  %v18 = vld [vmem:[%s0 + $0x14] sm:$0xff]
  %v19 = vld [vmem:[%s0 + $0x1c] sm:$0xff]
  %v20 = vld [vmem:[%s0 + $0x24] sm:$0xf]
  %v21 = vld [vmem:[%s0 + $0x28] sm:$0xff]
  %v22 = vld [vmem:[%s0 + $0x30] sm:$0xff]
  %v23 = vld [vmem:[%s0 + $0x38] sm:$0xf]
  %v24 = vld [vmem:[%s0 + $0x3c] sm:$0xff]
  %v25 = vld [vmem:[%s0 + $0x44] sm:$0xff]
  %v26 = vld [vmem:[%s0 + $0x4c] sm:$0xf]
  %v27 = vld [vmem:[%s1] sm:$0xf]
  %v28 = vld [vmem:[%s1 + $0x4] sm:$0xf]
  %v29 = vld [vmem:[%s1 + $0x8] sm:$0xf]
  %v30 = vld [vmem:[%s1 + $0xc] sm:$0xf]
  %v31 = vld [vmem:[%s1 + $0x10] sm:$0xf]
  %v32 = vld [vmem:[%s1 + $0x14] sm:$0xf]
  %v33 = vld [vmem:[%s1 + $0x18] sm:$0xf]
  %v34 = vld [vmem:[%s1 + $0x1c] sm:$0xf]
  %v35 = vld [vmem:[%s1 + $0x20] sm:$0xf]
  %v36 = vld [vmem:[%s1 + $0x24] sm:$0xf]
  %v37 = vld [vmem:[%s1 + $0x28] sm:$0xf]
  %v38 = vld [vmem:[%s1 + $0x2c] sm:$0xf]
  %v39 = vld [vmem:[%s1 + $0x30] sm:$0xf]
  %v40 = vld [vmem:[%s1 + $0x34] sm:$0xf]
  %v41 = vld [vmem:[%s1 + $0x38] sm:$0xf]
  %v42 = vld [vmem:[%s1 + $0x3c] sm:$0xf]
  %v43 = vld [vmem:[%s1 + $0x40] sm:$0xf]
  %v44 = vld [vmem:[%s1 + $0x44] sm:$0xf]
  %v45 = vld [vmem:[%s1 + $0x48] sm:$0xf]
  %v46 = vld [vmem:[%s1 + $0x4c] sm:$0xf]
  %v47 = vld [vmem:[%s1 + $0x50] sm:$0xf]
  %v48 = vld [vmem:[%s1 + $0x54] sm:$0xf]
  %v49 = vld [vmem:[%s1 + $0x58] sm:$0xf]
  %v50 = vld [vmem:[%s1 + $0x5c] sm:$0xf]
  %v51 = vld [vmem:[%s1 + $0x60] sm:$0xf]
  %v52 = vld [vmem:[%s1 + $0x64] sm:$0xf]
  %v53 = vld [vmem:[%s1 + $0x68] sm:$0xf]
  %v54 = vld [vmem:[%s1 + $0x6c] sm:$0xf]
  %v55 = vld [vmem:[%s1 + $0x70] sm:$0xf]
  %v56 = vld [vmem:[%s1 + $0x74] sm:$0xf]
  %v57 = vld [vmem:[%s1 + $0x78] sm:$0xf]
  %v58 = vld [vmem:[%s1 + $0x7c] sm:$0xf]
  %v59 = vld [vmem:[%s1 + $0x80] sm:$0xf]
  %v60 = vld [vmem:[%s1 + $0x84] sm:$0xf]
  %v61 = vld [vmem:[%s1 + $0x88] sm:$0xf]
  %v62 = vld [vmem:[%s1 + $0x8c] sm:$0xf]
  %v63 = vld [vmem:[%s1 + $0x90] sm:$0xf]
  %v64 = vld [vmem:[%s1 + $0x94] sm:$0xf]
  %v65 = vld [vmem:[%s1 + $0x98] sm:$0xf]
  %v66 = vld [vmem:[%s1 + $0x9c] sm:$0xf]
  %v67 = vld [vmem:[%s1 + $0xa0] sm:$0xf]
  %v68 = vld [vmem:[%s1 + $0xa4] sm:$0xf]
  %v69 = vld [vmem:[%s1 + $0xa8] sm:$0xf]
  %v70 = vld [vmem:[%s1 + $0xac] sm:$0xf]
  %v71 = vld [vmem:[%s1 + $0xb0] sm:$0xf]
  %v72 = vld [vmem:[%s1 + $0xb4] sm:$0xf]
  %v73 = vld [vmem:[%s1 + $0xb8] sm:$0xf]
  %v74 = vld [vmem:[%s1 + $0xbc] sm:$0xf]
  %v75 = vld [vmem:[%s1 + $0xc0] sm:$0xf]
  %v76 = vld [vmem:[%s1 + $0xc4] sm:$0xf]
  %v77 = vld [vmem:[%s1 + $0xc8] sm:$0xf]
  %v78 = vld [vmem:[%s1 + $0xcc] sm:$0xf]
  %v79 = vld [vmem:[%s1 + $0xd0] sm:$0xf]
  %v80 = vld [vmem:[%s1 + $0xd4] sm:$0xf]
  %v81 = vld [vmem:[%s1 + $0xd8] sm:$0xf]
  %v82 = vld [vmem:[%s1 + $0xdc] sm:$0xf]
  %v83 = vld [vmem:[%s1 + $0xe0] sm:$0xf]
  %v84 = vld [vmem:[%s1 + $0xe4] sm:$0xf]
  %v85 = vld [vmem:[%s1 + $0xe8] sm:$0xf]
  %v86 = vld [vmem:[%s1 + $0xec] sm:$0xf]
  %v87 = vld [vmem:[%s1 + $0xf0] sm:$0xf]
  %v88 = vld [vmem:[%s1 + $0xf4] sm:$0xf]
  %v89 = vld [vmem:[%s1 + $0xf8] sm:$0xf]
  %v90 = vld [vmem:[%s1 + $0xfc] sm:$0xf]
  %v91 = vld [vmem:[%s1 + $0x100] sm:$0xf]
  %v92 = vld [vmem:[%s1 + $0x104] sm:$0xf]
  %v93 = vld [vmem:[%s1 + $0x108] sm:$0xf]
  %v94 = vld [vmem:[%s1 + $0x10c] sm:$0xf]
  %v95 = vld [vmem:[%s1 + $0x110] sm:$0xf]
  %v96 = vld [vmem:[%s1 + $0x114] sm:$0xf]
  %v97 = vld [vmem:[%s1 + $0x118] sm:$0xf]
  %v98 = vld [vmem:[%s1 + $0x11c] sm:$0xf]
  %v99 = vld [vmem:[%s2] sm:$0x1]
  %v101 = vlaneseq
  %v102 = vshrl.u32 %v101, 7
  %v103 = vsub.s32 0, %v102
  %v104 = vrot.slane %v99, %v103
  %v118 = vunpack.c.l.b16 %v15
  %v119 = vunpack.c.h.b16 %v15
  %v120 = vunpack.c.l.b16 %v16
  %v121 = vunpack.c.h.b16 %v16
  %v122 = vunpack.c.l.b16 %v17
  %v123 = vunpack.c.l.b16 %v18
  %v124 = vunpack.c.h.b16 %v18
  %v125 = vunpack.c.l.b16 %v19
  %v126 = vunpack.c.h.b16 %v19
  %v127 = vunpack.c.l.b16 %v20
  %v128 = vunpack.c.l.b16 %v21
  %v129 = vunpack.c.h.b16 %v21
  %v130 = vunpack.c.l.b16 %v22
  %v131 = vunpack.c.h.b16 %v22
  %v132 = vunpack.c.l.b16 %v23
  %v133 = vunpack.c.l.b16 %v24
  %v134 = vunpack.c.h.b16 %v24
  %v135 = vunpack.c.l.b16 %v25
  %v136 = vunpack.c.h.b16 %v25
  %v137 = vunpack.c.l.b16 %v26
  %v138 = vpack.c.b16 %v123, %v118
  %v139 = vpack.c.b16 %v124, %v119
  %v140 = vpack.c.b16 %v125, %v120
  %v141 = vpack.c.b16 %v126, %v121
  %v142 = vpack.c.b16 %v127, %v122
  %v143 = vpack.c.b16 %v133, %v128
  %v144 = vpack.c.b16 %v134, %v129
  %v145 = vpack.c.b16 %v135, %v130
  %v146 = vpack.c.b16 %v136, %v131
  %v147 = vpack.c.b16 %v137, %v132
  %v228 = vunpack.c.l.b16 %v27
  %v229 = vunpack.c.l.b16 %v28
  %v230 = vunpack.c.l.b16 %v29
  %v231 = vunpack.c.l.b16 %v30
  %v232 = vunpack.c.l.b16 %v31
  %v233 = vunpack.c.l.b16 %v32
  %v234 = vunpack.c.l.b16 %v33
  %v235 = vunpack.c.l.b16 %v34
  %v236 = vunpack.c.l.b16 %v35
  %v237 = vunpack.c.l.b16 %v36
  %v238 = vunpack.c.l.b16 %v37
  %v239 = vunpack.c.l.b16 %v38
  %v240 = vunpack.c.l.b16 %v39
  %v241 = vunpack.c.l.b16 %v40
  %v242 = vunpack.c.l.b16 %v41
  %v243 = vunpack.c.l.b16 %v42
  %v244 = vunpack.c.l.b16 %v43
  %v245 = vunpack.c.l.b16 %v44
  %v246 = vunpack.c.l.b16 %v45
  %v247 = vunpack.c.l.b16 %v46
  %v248 = vunpack.c.l.b16 %v47
  %v249 = vunpack.c.l.b16 %v48
  %v250 = vunpack.c.l.b16 %v49
  %v251 = vunpack.c.l.b16 %v50
  %v252 = vunpack.c.l.b16 %v51
  %v253 = vunpack.c.l.b16 %v52
  %v254 = vunpack.c.l.b16 %v53
  %v255 = vunpack.c.l.b16 %v54
  %v256 = vunpack.c.l.b16 %v55
  %v257 = vunpack.c.l.b16 %v56
  %v258 = vunpack.c.l.b16 %v57
  %v259 = vunpack.c.l.b16 %v58
  %v260 = vunpack.c.l.b16 %v59
  %v261 = vunpack.c.l.b16 %v60
  %v262 = vunpack.c.l.b16 %v61
  %v263 = vunpack.c.l.b16 %v62
  %v264 = vunpack.c.l.b16 %v63
  %v265 = vunpack.c.l.b16 %v64
  %v266 = vunpack.c.l.b16 %v65
  %v267 = vunpack.c.l.b16 %v66
  %v268 = vunpack.c.l.b16 %v67
  %v269 = vunpack.c.l.b16 %v68
  %v270 = vunpack.c.l.b16 %v69
  %v271 = vunpack.c.l.b16 %v70
  %v272 = vunpack.c.l.b16 %v71
  %v273 = vunpack.c.l.b16 %v72
  %v274 = vunpack.c.l.b16 %v73
  %v275 = vunpack.c.l.b16 %v74
  %v276 = vunpack.c.l.b16 %v75
  %v277 = vunpack.c.l.b16 %v76
  %v278 = vunpack.c.l.b16 %v77
  %v279 = vunpack.c.l.b16 %v78
  %v280 = vunpack.c.l.b16 %v79
  %v281 = vunpack.c.l.b16 %v80
  %v282 = vunpack.c.l.b16 %v81
  %v283 = vunpack.c.l.b16 %v82
  %v284 = vunpack.c.l.b16 %v83
  %v285 = vunpack.c.l.b16 %v84
  %v286 = vunpack.c.l.b16 %v85
  %v287 = vunpack.c.l.b16 %v86
  %v288 = vunpack.c.l.b16 %v87
  %v289 = vunpack.c.l.b16 %v88
  %v290 = vunpack.c.l.b16 %v89
  %v291 = vunpack.c.l.b16 %v90
  %v292 = vunpack.c.l.b16 %v91
  %v293 = vunpack.c.l.b16 %v92
  %v294 = vunpack.c.l.b16 %v93
  %v295 = vunpack.c.l.b16 %v94
  %v296 = vunpack.c.l.b16 %v95
  %v297 = vunpack.c.l.b16 %v96
  %v298 = vunpack.c.l.b16 %v97
  %v299 = vunpack.c.l.b16 %v98
  %v300 = vpack.c.b16 %v229, %v228
  %v301 = vpack.c.b16 %v231, %v230
  %v302 = vpack.c.b16 %v233, %v232
  %v303 = vpack.c.b16 %v235, %v234
  %v304 = vpack.c.b16 %v237, %v236
  %v305 = vpack.c.b16 %v239, %v238
  %v306 = vpack.c.b16 %v241, %v240
  %v307 = vpack.c.b16 %v243, %v242
  %v308 = vpack.c.b16 %v245, %v244
  %v309 = vpack.c.b16 %v247, %v246
  %v310 = vpack.c.b16 %v249, %v248
  %v311 = vpack.c.b16 %v251, %v250
  %v312 = vpack.c.b16 %v253, %v252
  %v313 = vpack.c.b16 %v255, %v254
  %v314 = vpack.c.b16 %v257, %v256
  %v315 = vpack.c.b16 %v259, %v258
  %v316 = vpack.c.b16 %v261, %v260
  %v317 = vpack.c.b16 %v263, %v262
  %v318 = vpack.c.b16 %v265, %v264
  %v319 = vpack.c.b16 %v267, %v266
  %v320 = vpack.c.b16 %v269, %v268
  %v321 = vpack.c.b16 %v271, %v270
  %v322 = vpack.c.b16 %v273, %v272
  %v323 = vpack.c.b16 %v275, %v274
  %v324 = vpack.c.b16 %v277, %v276
  %v325 = vpack.c.b16 %v279, %v278
  %v326 = vpack.c.b16 %v281, %v280
  %v327 = vpack.c.b16 %v283, %v282
  %v328 = vpack.c.b16 %v285, %v284
  %v329 = vpack.c.b16 %v287, %v286
  %v330 = vpack.c.b16 %v289, %v288
  %v331 = vpack.c.b16 %v291, %v290
  %v332 = vpack.c.b16 %v293, %v292
  %v333 = vpack.c.b16 %v295, %v294
  %v334 = vpack.c.b16 %v297, %v296
  %v335 = vpack.c.b16 %v299, %v298
  %vm372 = vcmask 523264
  %v374 = vsel %vm372, %v142, 0
  %v377 = vsel %vm372, %v147, 0
  %379 = vmatprep.subr.bf16.mxu0 0
  %380 = vmatpush1.bf16.msra.mxu0 %v307
  %381 = vmatprep.subr.bf16.mxu0 0
  %382 = vmatpush1.bf16.msra.mxu0 %v306
  %383 = vmatprep.subr.bf16.mxu0 0
  %384 = vmatpush1.bf16.msra.mxu0 %v305
  %385 = vmatprep.subr.bf16.mxu0 0
  %386 = vmatpush1.bf16.msra.mxu0 %v304
  %387 = vmatprep.subr.bf16.mxu0 0
  %388 = vmatpush1.bf16.msra.mxu0 %v303
  %389 = vmatprep.subr.bf16.mxu0 0
  %390 = vmatpush1.bf16.msra.mxu0 %v302
  %391 = vmatprep.subr.bf16.mxu0 0
  %392 = vmatpush1.bf16.msra.mxu0 %v301
  %393 = vmatprep.subr.bf16.mxu0 0
  %394 = vmatpush1.bf16.msra.mxu0 %v300
  %395 = vmatprep.subr.bf16.mxu0 0
  %396 = vmatpush2.bf16.msra.mxu0 %v315
  %397 = vmatprep.subr.bf16.mxu0 0
  %398 = vmatpush2.bf16.msra.mxu0 %v314
  %399 = vmatprep.subr.bf16.mxu0 0
  %400 = vmatpush2.bf16.msra.mxu0 %v313
  %401 = vmatprep.subr.bf16.mxu0 0
  %402 = vmatpush2.bf16.msra.mxu0 %v312
  %403 = vmatprep.subr.bf16.mxu0 0
  %404 = vmatpush2.bf16.msra.mxu0 %v311
  %405 = vmatprep.subr.bf16.mxu0 0
  %406 = vmatpush2.bf16.msra.mxu0 %v310
  %407 = vmatprep.subr.bf16.mxu0 0
  %408 = vmatpush2.bf16.msra.mxu0 %v309
  %409 = vmatprep.subr.bf16.mxu0 0
  %410 = vmatpush2.bf16.msra.mxu0 %v308
  %411 = vmatprep.mubr.bf16.mxu0 %v139
  %412 = vmatmul.mubr.bf16.gmra.mxu0 %v138
  %v413 = vpop.f32.mrf.mxu0
  %v414 = vadd.f32 %v104, %v413
  %v415 = vpop.f32.mrf.mxu0
  %v416 = vpop.f32.mrf.mxu0
  %v417 = vadd.f32 %v104, %v416
  %v418 = vpop.f32.mrf.mxu0
  %419 = vmatprep.mubr.bf16.mxu0 %v144
  %420 = vmatmul.mubr.bf16.gmra.mxu0 %v143
  %v421 = vpop.f32.mrf.mxu0
  %v422 = vadd.f32 %v104, %v421
  %v423 = vpop.f32.mrf.mxu0
  %v424 = vpop.f32.mrf.mxu0
  %v425 = vadd.f32 %v104, %v424
  %v426 = vpop.f32.mrf.mxu0
  %427 = vdwg.mxu0
  %428 = vmatprep.subr.bf16.mxu0 0
  %429 = vmatpush1.bf16.msra.mxu0 %v323
  %430 = vmatprep.subr.bf16.mxu0 0
  %431 = vmatpush1.bf16.msra.mxu0 %v322
  %432 = vmatprep.subr.bf16.mxu0 0
  %433 = vmatpush1.bf16.msra.mxu0 %v321
  %434 = vmatprep.subr.bf16.mxu0 0
  %435 = vmatpush1.bf16.msra.mxu0 %v320
  %436 = vmatprep.subr.bf16.mxu0 0
  %437 = vmatpush1.bf16.msra.mxu0 %v319
  %438 = vmatprep.subr.bf16.mxu0 0
  %439 = vmatpush1.bf16.msra.mxu0 %v318
  %440 = vmatprep.subr.bf16.mxu0 0
  %441 = vmatpush1.bf16.msra.mxu0 %v317
  %442 = vmatprep.subr.bf16.mxu0 0
  %443 = vmatpush1.bf16.msra.mxu0 %v316
  %444 = vmatprep.subr.bf16.mxu0 0
  %445 = vmatpush2.bf16.msra.mxu0 %v331
  %446 = vmatprep.subr.bf16.mxu0 0
  %447 = vmatpush2.bf16.msra.mxu0 %v330
  %448 = vmatprep.subr.bf16.mxu0 0
  %449 = vmatpush2.bf16.msra.mxu0 %v329
  %450 = vmatprep.subr.bf16.mxu0 0
  %451 = vmatpush2.bf16.msra.mxu0 %v328
  %452 = vmatprep.subr.bf16.mxu0 0
  %453 = vmatpush2.bf16.msra.mxu0 %v327
  %454 = vmatprep.subr.bf16.mxu0 0
  %455 = vmatpush2.bf16.msra.mxu0 %v326
  %456 = vmatprep.subr.bf16.mxu0 0
  %457 = vmatpush2.bf16.msra.mxu0 %v325
  %458 = vmatprep.subr.bf16.mxu0 0
  %459 = vmatpush2.bf16.msra.mxu0 %v324
  %460 = vmatprep.mubr.bf16.mxu0 %v141
  %461 = vmatmul.mubr.bf16.gmra.mxu0 %v140
  %v462 = vpop.f32.mrf.mxu0
  %v463 = vadd.f32 %v414, %v462
  %v464 = vpop.f32.mrf.mxu0
  %v465 = vpop.f32.mrf.mxu0
  %v466 = vadd.f32 %v417, %v465
  %v467 = vpop.f32.mrf.mxu0
  %468 = vmatprep.mubr.bf16.mxu0 %v146
  %469 = vmatmul.mubr.bf16.gmra.mxu0 %v145
  %v470 = vpop.f32.mrf.mxu0
  %v471 = vadd.f32 %v422, %v470
  %v472 = vpop.f32.mrf.mxu0
  %v473 = vpop.f32.mrf.mxu0
  %v474 = vadd.f32 %v425, %v473
  %v475 = vpop.f32.mrf.mxu0
  %476 = vdwg.mxu0
  %477 = vmatprep.subr.bf16.mxu0 0
  %478 = vmatpush1.bf16.msra.mxu0 0
  %479 = vmatprep.subr.bf16.mxu0 0
  %480 = vmatpush1.bf16.msra.mxu0 0
  %481 = vmatprep.subr.bf16.mxu0 0
  %482 = vmatpush1.bf16.msra.mxu0 0
  %483 = vmatprep.subr.bf16.mxu0 0
  %484 = vmatpush1.bf16.msra.mxu0 0
  %485 = vmatprep.subr.bf16.mxu0 0
  %486 = vmatpush1.bf16.msra.mxu0 %v335
  %487 = vmatprep.subr.bf16.mxu0 0
  %488 = vmatpush1.bf16.msra.mxu0 %v334
  %489 = vmatprep.subr.bf16.mxu0 0
  %490 = vmatpush1.bf16.msra.mxu0 %v333
  %491 = vmatprep.subr.bf16.mxu0 0
  %492 = vmatpush1.bf16.msra.mxu0 %v332
  %493 = vmatprep.subr.bf16.mxu0 0
  %494 = vmatpush2.bf16.msra.mxu0 0
  %495 = vmatprep.subr.bf16.mxu0 0
  %496 = vmatpush2.bf16.msra.mxu0 0
  %497 = vmatprep.subr.bf16.mxu0 0
  %498 = vmatpush2.bf16.msra.mxu0 0
  %499 = vmatprep.subr.bf16.mxu0 0
  %500 = vmatpush2.bf16.msra.mxu0 0
  %501 = vmatprep.subr.bf16.mxu0 0
  %502 = vmatpush2.bf16.msra.mxu0 0
  %503 = vmatprep.subr.bf16.mxu0 0
  %504 = vmatpush2.bf16.msra.mxu0 0
  %505 = vmatprep.subr.bf16.mxu0 0
  %506 = vmatpush2.bf16.msra.mxu0 0
  %507 = vmatprep.subr.bf16.mxu0 0
  %508 = vmatpush2.bf16.msra.mxu0 0
  %509 = vmatprep.mubr.bf16.mxu0 0
  %510 = vmatmul.mubr.bf16.gmra.mxu0 %v374
  %v511 = vpop.f32.mrf.mxu0
  %v512 = vadd.f32 %v463, %v511
  %v513 = vpop.f32.mrf.mxu0
  %v514 = vpop.f32.mrf.mxu0
  %v515 = vadd.f32 %v466, %v514
  %v516 = vpop.f32.mrf.mxu0
  %517 = vmatprep.mubr.bf16.mxu0 0
  %518 = vmatmul.mubr.bf16.gmra.mxu0 %v377
  %v519 = vpop.f32.mrf.mxu0
  %v520 = vadd.f32 %v471, %v519
  %v521 = vpop.f32.mrf.mxu0
  %v522 = vpop.f32.mrf.mxu0
  %v523 = vadd.f32 %v474, %v522
  %v524 = vpop.f32.mrf.mxu0
  %525 = vdwg.mxu0
  %v526 = vmax.f32 %v512, 0.0
  %v527 = vmax.f32 %v515, 0.0
  %v528 = vmax.f32 %v520, 0.0
  %v529 = vmax.f32 %v523, 0.0
  %v530 = vpack.c.bf16 %v527, %v526
  %v531 = vpack.c.bf16 %v529, %v528
  %v534 = vunpack.c.l.b16 %v530
  %v535 = vunpack.c.h.b16 %v530
  %v536 = vunpack.c.l.b16 %v531
  %v537 = vunpack.c.h.b16 %v531
  %v538 = vpack.c.b16 %v534, %v534
  %v539 = vpack.c.b16 %v535, %v535
  %v540 = vpack.c.b16 %v536, %v536
  %v541 = vpack.c.b16 %v537, %v537
  %546 = vst [vmem:[%s3] sm:$0xf] %v538
  %547 = vst [vmem:[%s3 + $0x4] sm:$0xf] %v539
  %548 = vst [vmem:[%s3 + $0x8] sm:$0xf] %v540
  %549 = vst [vmem:[%s3 + $0xc] sm:$0xf] %v541
  // Predicated region
  $region14: #{_lambda_.15} parent=0 // pred_check
    _
  $region15: #{_lambda_.15} parent=0 // pred_check_branch
    %551 = sbr.rel (0) target = $region17
  $region16: #{_lambda_.15} parent=0 // pred_region
    _
  $region17: #{_lambda_.15} parent=0 // pred_fallthru
    _
  // Predicated region
  $region18: #{_lambda_.15} parent=0 // pred_check
    _
  $region19: #{_lambda_.15} parent=0 // pred_check_branch
    %553 = sbr.rel (0) target = $region21
  $region20: #{_lambda_.15} parent=0 // pred_region
    _
  $region21: #{_lambda_.15} parent=0 // pred_fallthru
    _

// kernel: _lambda_.16
$region0: #{_lambda_.16}
  #allocation0 [shape = 'u32[]', space=smem, size = 0x4, offset = 0x4, fixed_abs, tag = 'smem constant byte address 0x4 - core index']
  #allocation1 [shape = 'u32[144,128]{1,0:T(1,128)}', space=vmem, size = 0x12000, scoped, tag = 'internal scratch']
  %s0 = inlined_call_operand.vmem [shape: bf16[32,64], index: 0, kind: input, shape index: {}]
  %s1 = inlined_call_operand.vmem [shape: bf16[64,128], index: 1, kind: input, shape index: {}]
  %s2 = inlined_call_operand.vmem [shape: f32[1,128], index: 2, kind: input, shape index: {}]
  %s3 = inlined_call_operand.vmem [shape: bf16[32,128], index: 3, kind: output, shape index: {}]
  %s4 = sld [smem:[#allocation0]]
  $region22: #{_lambda_.16} parent=0
    _
  %s6 = ssub.s32 1, %s4
  %s7 = scalar_select 0, %s6, %s4
  // Predicated region
  $region2: #{_lambda_.16} parent=0 // pred_check
    _
  $region3: #{_lambda_.16} parent=0 // pred_check_branch
    %9 = sbr.rel (0) target = $region5
  $region4: #{_lambda_.16} parent=0 // pred_region
    _
  $region5: #{_lambda_.16} parent=0 // pred_fallthru
    _
  // Predicated region
  $region6: #{_lambda_.16} parent=0 // pred_check
    _
  $region7: #{_lambda_.16} parent=0 // pred_check_branch
    %11 = sbr.rel (0) target = $region9
  $region8: #{_lambda_.16} parent=0 // pred_region
    _
  $region9: #{_lambda_.16} parent=0 // pred_fallthru
    _
  // Predicated region
  $region10: #{_lambda_.16} parent=0 // pred_check
    _
  $region11: #{_lambda_.16} parent=0 // pred_check_branch
    %13 = sbr.rel (0) target = $region13
  $region12: #{_lambda_.16} parent=0 // pred_region
    _
  $region13: #{_lambda_.16} parent=0 // pred_fallthru
    _
  %v15 = vld [vmem:[%s0] sm:$0xf]
  %v16 = vld [vmem:[%s0 + $0x4] sm:$0xf]
  %v17 = vld [vmem:[%s0 + $0x8] sm:$0xf]
  %v18 = vld [vmem:[%s0 + $0xc] sm:$0xf]
  %v19 = vld [vmem:[%s1] sm:$0xf]
  %v20 = vld [vmem:[%s1 + $0x4] sm:$0xf]
  %v21 = vld [vmem:[%s1 + $0x8] sm:$0xf]
  %v22 = vld [vmem:[%s1 + $0xc] sm:$0xf]
  %v23 = vld [vmem:[%s1 + $0x10] sm:$0xf]
  %v24 = vld [vmem:[%s1 + $0x14] sm:$0xf]
  %v25 = vld [vmem:[%s1 + $0x18] sm:$0xf]
  %v26 = vld [vmem:[%s1 + $0x1c] sm:$0xf]
  %v27 = vld [vmem:[%s2] sm:$0x1]
  %v29 = vlaneseq
  %v30 = vshrl.u32 %v29, 7
  %v31 = vsub.s32 0, %v30
  %v32 = vrot.slane %v27, %v31
  %v38 = vunpack.c.l.b16 %v15
  %v39 = vunpack.c.l.b16 %v16
  %v40 = vunpack.c.l.b16 %v17
  %v41 = vunpack.c.l.b16 %v18
  %v42 = vpack.c.b16 %v39, %v38
  %v43 = vpack.c.b16 %v41, %v40
  %v52 = vunpack.c.l.b16 %v19
  %v53 = vunpack.c.l.b16 %v20
  %v54 = vunpack.c.l.b16 %v21
  %v55 = vunpack.c.l.b16 %v22
  %v56 = vunpack.c.l.b16 %v23
  %v57 = vunpack.c.l.b16 %v24
  %v58 = vunpack.c.l.b16 %v25
  %v59 = vunpack.c.l.b16 %v26
  %v60 = vpack.c.b16 %v53, %v52
  %v61 = vpack.c.b16 %v55, %v54
  %v62 = vpack.c.b16 %v57, %v56
  %v63 = vpack.c.b16 %v59, %v58
  %vm68 = vcmask 523264
  %v70 = vsel %vm68, %v42, 0
  %v73 = vsel %vm68, %v43, 0
  %75 = vmatprep.subr.bf16.mxu0 0
  %76 = vmatpush1.bf16.msra.mxu0 0
  %77 = vmatprep.subr.bf16.mxu0 0
  %78 = vmatpush1.bf16.msra.mxu0 0
  %79 = vmatprep.subr.bf16.mxu0 0
  %80 = vmatpush1.bf16.msra.mxu0 0
  %81 = vmatprep.subr.bf16.mxu0 0
  %82 = vmatpush1.bf16.msra.mxu0 0
  %83 = vmatprep.subr.bf16.mxu0 0
  %84 = vmatpush1.bf16.msra.mxu0 %v63
  %85 = vmatprep.subr.bf16.mxu0 0
  %86 = vmatpush1.bf16.msra.mxu0 %v62
  %87 = vmatprep.subr.bf16.mxu0 0
  %88 = vmatpush1.bf16.msra.mxu0 %v61
  %89 = vmatprep.subr.bf16.mxu0 0
  %90 = vmatpush1.bf16.msra.mxu0 %v60
  %91 = vmatprep.subr.bf16.mxu0 0
  %92 = vmatpush2.bf16.msra.mxu0 0
  %93 = vmatprep.subr.bf16.mxu0 0
  %94 = vmatpush2.bf16.msra.mxu0 0
  %95 = vmatprep.subr.bf16.mxu0 0
  %96 = vmatpush2.bf16.msra.mxu0 0
  %97 = vmatprep.subr.bf16.mxu0 0
  %98 = vmatpush2.bf16.msra.mxu0 0
  %99 = vmatprep.subr.bf16.mxu0 0
  %100 = vmatpush2.bf16.msra.mxu0 0
  %101 = vmatprep.subr.bf16.mxu0 0
  %102 = vmatpush2.bf16.msra.mxu0 0
  %103 = vmatprep.subr.bf16.mxu0 0
  %104 = vmatpush2.bf16.msra.mxu0 0
  %105 = vmatprep.subr.bf16.mxu0 0
  %106 = vmatpush2.bf16.msra.mxu0 0
  %107 = vmatprep.mubr.bf16.mxu0 0
  %108 = vmatmul.mubr.bf16.gmra.mxu0 %v70
  %v109 = vpop.f32.mrf.mxu0
  %v110 = vadd.f32 %v32, %v109
  %v111 = vpop.f32.mrf.mxu0
  %v112 = vpop.f32.mrf.mxu0
  %v113 = vadd.f32 %v32, %v112
  %v114 = vpop.f32.mrf.mxu0
  %115 = vmatprep.mubr.bf16.mxu0 0
  %116 = vmatmul.mubr.bf16.gmra.mxu0 %v73
  %v117 = vpop.f32.mrf.mxu0
  %v118 = vadd.f32 %v32, %v117
  %v119 = vpop.f32.mrf.mxu0
  %v120 = vpop.f32.mrf.mxu0
  %v121 = vadd.f32 %v32, %v120
  %v122 = vpop.f32.mrf.mxu0
  %123 = vdwg.mxu0
  %v124 = vpack.c.bf16 %v113, %v110
  %v125 = vpack.c.bf16 %v121, %v118
  %v128 = vunpack.c.l.b16 %v124
  %v129 = vunpack.c.h.b16 %v124
  %v130 = vunpack.c.l.b16 %v125
  %v131 = vunpack.c.h.b16 %v125
  %v132 = vpack.c.b16 %v128, %v128
  %v133 = vpack.c.b16 %v129, %v129
  %v134 = vpack.c.b16 %v130, %v130
  %v135 = vpack.c.b16 %v131, %v131
  %140 = vst [vmem:[%s3] sm:$0xf] %v132
  %141 = vst [vmem:[%s3 + $0x4] sm:$0xf] %v133
  %142 = vst [vmem:[%s3 + $0x8] sm:$0xf] %v134
  %143 = vst [vmem:[%s3 + $0xc] sm:$0xf] %v135
  // Predicated region
  $region14: #{_lambda_.16} parent=0 // pred_check
    _
  $region15: #{_lambda_.16} parent=0 // pred_check_branch
    %145 = sbr.rel (0) target = $region17
  $region16: #{_lambda_.16} parent=0 // pred_region
    _
  $region17: #{_lambda_.16} parent=0 // pred_fallthru
    _
  // Predicated region
  $region18: #{_lambda_.16} parent=0 // pred_check
    _
  $region19: #{_lambda_.16} parent=0 // pred_check_branch
    %147 = sbr.rel (0) target = $region21
  $region20: #{_lambda_.16} parent=0 // pred_region
    _
  $region21: #{_lambda_.16} parent=0 // pred_fallthru
    _

// kernel: _lambda_.17
$region0: #{_lambda_.17}
  #allocation0 [shape = 'u32[]', space=smem, size = 0x4, offset = 0x4, fixed_abs, tag = 'smem constant byte address 0x4 - core index']
  #allocation1 [shape = 'u32[144,128]{1,0:T(1,128)}', space=vmem, size = 0x12000, scoped, tag = 'internal scratch']
  %s0 = inlined_call_operand.vmem [shape: bf16[32,1152], index: 0, kind: input, shape index: {}]
  %s1 = inlined_call_operand.vmem [shape: bf16[1152,128], index: 1, kind: input, shape index: {}]
  %s2 = inlined_call_operand.vmem [shape: f32[1,128], index: 2, kind: input, shape index: {}]
  %s3 = inlined_call_operand.vmem [shape: bf16[32,128], index: 3, kind: input, shape index: {}]
  %s4 = inlined_call_operand.vmem [shape: bf16[32,128], index: 4, kind: output, shape index: {}]
  %s5 = sld [smem:[#allocation0]]
  $region26: #{_lambda_.17} parent=0
    _
  %s7 = ssub.s32 1, %s5
  %s8 = scalar_select 0, %s7, %s5
  // Predicated region
  $region2: #{_lambda_.17} parent=0 // pred_check
    _
  $region3: #{_lambda_.17} parent=0 // pred_check_branch
    %10 = sbr.rel (0) target = $region5
  $region4: #{_lambda_.17} parent=0 // pred_region
    _
  $region5: #{_lambda_.17} parent=0 // pred_fallthru
    _
  // Predicated region
  $region6: #{_lambda_.17} parent=0 // pred_check
    _
  $region7: #{_lambda_.17} parent=0 // pred_check_branch
    %12 = sbr.rel (0) target = $region9
  $region8: #{_lambda_.17} parent=0 // pred_region
    _
  $region9: #{_lambda_.17} parent=0 // pred_fallthru
    _
  // Predicated region
  $region10: #{_lambda_.17} parent=0 // pred_check
    _
  $region11: #{_lambda_.17} parent=0 // pred_check_branch
    %14 = sbr.rel (0) target = $region13
  $region12: #{_lambda_.17} parent=0 // pred_region
    _
  $region13: #{_lambda_.17} parent=0 // pred_fallthru
    _
  // Predicated region
  $region14: #{_lambda_.17} parent=0 // pred_check
    _
  $region15: #{_lambda_.17} parent=0 // pred_check_branch
    %16 = sbr.rel (0) target = $region17
  $region16: #{_lambda_.17} parent=0 // pred_region
    _
  $region17: #{_lambda_.17} parent=0 // pred_fallthru
    _
  %v18 = vld [vmem:[%s0] sm:$0xff]
  %v19 = vld [vmem:[%s0 + $0x8] sm:$0xff]
  %v20 = vld [vmem:[%s0 + $0x10] sm:$0xff]
  %v21 = vld [vmem:[%s0 + $0x18] sm:$0xff]
  %v22 = vld [vmem:[%s0 + $0x20] sm:$0xf]
  %v23 = vld [vmem:[%s0 + $0x24] sm:$0xff]
  %v24 = vld [vmem:[%s0 + $0x2c] sm:$0xff]
  %v25 = vld [vmem:[%s0 + $0x34] sm:$0xff]
  %v26 = vld [vmem:[%s0 + $0x3c] sm:$0xff]
  %v27 = vld [vmem:[%s0 + $0x44] sm:$0xf]
  %v28 = vld [vmem:[%s0 + $0x48] sm:$0xff]
  %v29 = vld [vmem:[%s0 + $0x50] sm:$0xff]
  %v30 = vld [vmem:[%s0 + $0x58] sm:$0xff]
  %v31 = vld [vmem:[%s0 + $0x60] sm:$0xff]
  %v32 = vld [vmem:[%s0 + $0x68] sm:$0xf]
  %v33 = vld [vmem:[%s0 + $0x6c] sm:$0xff]
  %v34 = vld [vmem:[%s0 + $0x74] sm:$0xff]
  %v35 = vld [vmem:[%s0 + $0x7c] sm:$0xff]
  %v36 = vld [vmem:[%s0 + $0x84] sm:$0xff]
  %v37 = vld [vmem:[%s0 + $0x8c] sm:$0xf]
  %v38 = vld [vmem:[%s1] sm:$0xf]
  %v39 = vld [vmem:[%s1 + $0x4] sm:$0xf]
  %v40 = vld [vmem:[%s1 + $0x8] sm:$0xf]
  %v41 = vld [vmem:[%s1 + $0xc] sm:$0xf]
  %v42 = vld [vmem:[%s1 + $0x10] sm:$0xf]
  %v43 = vld [vmem:[%s1 + $0x14] sm:$0xf]
  %v44 = vld [vmem:[%s1 + $0x18] sm:$0xf]
  %v45 = vld [vmem:[%s1 + $0x1c] sm:$0xf]
  %v46 = vld [vmem:[%s1 + $0x20] sm:$0xf]
  %v47 = vld [vmem:[%s1 + $0x24] sm:$0xf]
  %v48 = vld [vmem:[%s1 + $0x28] sm:$0xf]
  %v49 = vld [vmem:[%s1 + $0x2c] sm:$0xf]
  %v50 = vld [vmem:[%s1 + $0x30] sm:$0xf]
  %v51 = vld [vmem:[%s1 + $0x34] sm:$0xf]
  %v52 = vld [vmem:[%s1 + $0x38] sm:$0xf]
  %v53 = vld [vmem:[%s1 + $0x3c] sm:$0xf]
  %v54 = vld [vmem:[%s1 + $0x40] sm:$0xf]
  %v55 = vld [vmem:[%s1 + $0x44] sm:$0xf]
  %v56 = vld [vmem:[%s1 + $0x48] sm:$0xf]
  %v57 = vld [vmem:[%s1 + $0x4c] sm:$0xf]
  %v58 = vld [vmem:[%s1 + $0x50] sm:$0xf]
  %v59 = vld [vmem:[%s1 + $0x54] sm:$0xf]
  %v60 = vld [vmem:[%s1 + $0x58] sm:$0xf]
  %v61 = vld [vmem:[%s1 + $0x5c] sm:$0xf]
  %v62 = vld [vmem:[%s1 + $0x60] sm:$0xf]
  %v63 = vld [vmem:[%s1 + $0x64] sm:$0xf]
  %v64 = vld [vmem:[%s1 + $0x68] sm:$0xf]
  %v65 = vld [vmem:[%s1 + $0x6c] sm:$0xf]
  %v66 = vld [vmem:[%s1 + $0x70] sm:$0xf]
  %v67 = vld [vmem:[%s1 + $0x74] sm:$0xf]
  %v68 = vld [vmem:[%s1 + $0x78] sm:$0xf]
  %v69 = vld [vmem:[%s1 + $0x7c] sm:$0xf]
  %v70 = vld [vmem:[%s1 + $0x80] sm:$0xf]
  %v71 = vld [vmem:[%s1 + $0x84] sm:$0xf]
  %v72 = vld [vmem:[%s1 + $0x88] sm:$0xf]
  %v73 = vld [vmem:[%s1 + $0x8c] sm:$0xf]
  %v74 = vld [vmem:[%s1 + $0x90] sm:$0xf]
  %v75 = vld [vmem:[%s1 + $0x94] sm:$0xf]
  %v76 = vld [vmem:[%s1 + $0x98] sm:$0xf]
  %v77 = vld [vmem:[%s1 + $0x9c] sm:$0xf]
  %v78 = vld [vmem:[%s1 + $0xa0] sm:$0xf]
  %v79 = vld [vmem:[%s1 + $0xa4] sm:$0xf]
  %v80 = vld [vmem:[%s1 + $0xa8] sm:$0xf]
  %v81 = vld [vmem:[%s1 + $0xac] sm:$0xf]
  %v82 = vld [vmem:[%s1 + $0xb0] sm:$0xf]
  %v83 = vld [vmem:[%s1 + $0xb4] sm:$0xf]
  %v84 = vld [vmem:[%s1 + $0xb8] sm:$0xf]
  %v85 = vld [vmem:[%s1 + $0xbc] sm:$0xf]
  %v86 = vld [vmem:[%s1 + $0xc0] sm:$0xf]
  %v87 = vld [vmem:[%s1 + $0xc4] sm:$0xf]
  %v88 = vld [vmem:[%s1 + $0xc8] sm:$0xf]
  %v89 = vld [vmem:[%s1 + $0xcc] sm:$0xf]
  %v90 = vld [vmem:[%s1 + $0xd0] sm:$0xf]
  %v91 = vld [vmem:[%s1 + $0xd4] sm:$0xf]
  %v92 = vld [vmem:[%s1 + $0xd8] sm:$0xf]
  %v93 = vld [vmem:[%s1 + $0xdc] sm:$0xf]
  %v94 = vld [vmem:[%s1 + $0xe0] sm:$0xf]
  %v95 = vld [vmem:[%s1 + $0xe4] sm:$0xf]
  %v96 = vld [vmem:[%s1 + $0xe8] sm:$0xf]
  %v97 = vld [vmem:[%s1 + $0xec] sm:$0xf]
  %v98 = vld [vmem:[%s1 + $0xf0] sm:$0xf]
  %v99 = vld [vmem:[%s1 + $0xf4] sm:$0xf]
  %v100 = vld [vmem:[%s1 + $0xf8] sm:$0xf]
  %v101 = vld [vmem:[%s1 + $0xfc] sm:$0xf]
  %v102 = vld [vmem:[%s1 + $0x100] sm:$0xf]
  %v103 = vld [vmem:[%s1 + $0x104] sm:$0xf]
  %v104 = vld [vmem:[%s1 + $0x108] sm:$0xf]
  %v105 = vld [vmem:[%s1 + $0x10c] sm:$0xf]
  %v106 = vld [vmem:[%s1 + $0x110] sm:$0xf]
  %v107 = vld [vmem:[%s1 + $0x114] sm:$0xf]
  %v108 = vld [vmem:[%s1 + $0x118] sm:$0xf]
  %v109 = vld [vmem:[%s1 + $0x11c] sm:$0xf]
  %v110 = vld [vmem:[%s1 + $0x120] sm:$0xf]
  %v111 = vld [vmem:[%s1 + $0x124] sm:$0xf]
  %v112 = vld [vmem:[%s1 + $0x128] sm:$0xf]
  %v113 = vld [vmem:[%s1 + $0x12c] sm:$0xf]
  %v114 = vld [vmem:[%s1 + $0x130] sm:$0xf]
  %v115 = vld [vmem:[%s1 + $0x134] sm:$0xf]
  %v116 = vld [vmem:[%s1 + $0x138] sm:$0xf]
  %v117 = vld [vmem:[%s1 + $0x13c] sm:$0xf]
  %v118 = vld [vmem:[%s1 + $0x140] sm:$0xf]
  %v119 = vld [vmem:[%s1 + $0x144] sm:$0xf]
  %v120 = vld [vmem:[%s1 + $0x148] sm:$0xf]
  %v121 = vld [vmem:[%s1 + $0x14c] sm:$0xf]
  %v122 = vld [vmem:[%s1 + $0x150] sm:$0xf]
  %v123 = vld [vmem:[%s1 + $0x154] sm:$0xf]
  %v124 = vld [vmem:[%s1 + $0x158] sm:$0xf]
  %v125 = vld [vmem:[%s1 + $0x15c] sm:$0xf]
  %v126 = vld [vmem:[%s1 + $0x160] sm:$0xf]
  %v127 = vld [vmem:[%s1 + $0x164] sm:$0xf]
  %v128 = vld [vmem:[%s1 + $0x168] sm:$0xf]
  %v129 = vld [vmem:[%s1 + $0x16c] sm:$0xf]
  %v130 = vld [vmem:[%s1 + $0x170] sm:$0xf]
  %v131 = vld [vmem:[%s1 + $0x174] sm:$0xf]
  %v132 = vld [vmem:[%s1 + $0x178] sm:$0xf]
  %v133 = vld [vmem:[%s1 + $0x17c] sm:$0xf]
  %v134 = vld [vmem:[%s1 + $0x180] sm:$0xf]
  %v135 = vld [vmem:[%s1 + $0x184] sm:$0xf]
  %v136 = vld [vmem:[%s1 + $0x188] sm:$0xf]
  %v137 = vld [vmem:[%s1 + $0x18c] sm:$0xf]
  %v138 = vld [vmem:[%s1 + $0x190] sm:$0xf]
  %v139 = vld [vmem:[%s1 + $0x194] sm:$0xf]
  %v140 = vld [vmem:[%s1 + $0x198] sm:$0xf]
  %v141 = vld [vmem:[%s1 + $0x19c] sm:$0xf]
  %v142 = vld [vmem:[%s1 + $0x1a0] sm:$0xf]
  %v143 = vld [vmem:[%s1 + $0x1a4] sm:$0xf]
  %v144 = vld [vmem:[%s1 + $0x1a8] sm:$0xf]
  %v145 = vld [vmem:[%s1 + $0x1ac] sm:$0xf]
  %v146 = vld [vmem:[%s1 + $0x1b0] sm:$0xf]
  %v147 = vld [vmem:[%s1 + $0x1b4] sm:$0xf]
  %v148 = vld [vmem:[%s1 + $0x1b8] sm:$0xf]
  %v149 = vld [vmem:[%s1 + $0x1bc] sm:$0xf]
  %v150 = vld [vmem:[%s1 + $0x1c0] sm:$0xf]
  %v151 = vld [vmem:[%s1 + $0x1c4] sm:$0xf]
  %v152 = vld [vmem:[%s1 + $0x1c8] sm:$0xf]
  %v153 = vld [vmem:[%s1 + $0x1cc] sm:$0xf]
  %v154 = vld [vmem:[%s1 + $0x1d0] sm:$0xf]
  %v155 = vld [vmem:[%s1 + $0x1d4] sm:$0xf]
  %v156 = vld [vmem:[%s1 + $0x1d8] sm:$0xf]
  %v157 = vld [vmem:[%s1 + $0x1dc] sm:$0xf]
  %v158 = vld [vmem:[%s1 + $0x1e0] sm:$0xf]
  %v159 = vld [vmem:[%s1 + $0x1e4] sm:$0xf]
  %v160 = vld [vmem:[%s1 + $0x1e8] sm:$0xf]
  %v161 = vld [vmem:[%s1 + $0x1ec] sm:$0xf]
  %v162 = vld [vmem:[%s1 + $0x1f0] sm:$0xf]
  %v163 = vld [vmem:[%s1 + $0x1f4] sm:$0xf]
  %v164 = vld [vmem:[%s1 + $0x1f8] sm:$0xf]
  %v165 = vld [vmem:[%s1 + $0x1fc] sm:$0xf]
  %v166 = vld [vmem:[%s1 + $0x200] sm:$0xf]
  %v167 = vld [vmem:[%s1 + $0x204] sm:$0xf]
  %v168 = vld [vmem:[%s1 + $0x208] sm:$0xf]
  %v169 = vld [vmem:[%s1 + $0x20c] sm:$0xf]
  %v170 = vld [vmem:[%s1 + $0x210] sm:$0xf]
  %v171 = vld [vmem:[%s1 + $0x214] sm:$0xf]
  %v172 = vld [vmem:[%s1 + $0x218] sm:$0xf]
  %v173 = vld [vmem:[%s1 + $0x21c] sm:$0xf]
  %v174 = vld [vmem:[%s1 + $0x220] sm:$0xf]
  %v175 = vld [vmem:[%s1 + $0x224] sm:$0xf]
  %v176 = vld [vmem:[%s1 + $0x228] sm:$0xf]
  %v177 = vld [vmem:[%s1 + $0x22c] sm:$0xf]
  %v178 = vld [vmem:[%s1 + $0x230] sm:$0xf]
  %v179 = vld [vmem:[%s1 + $0x234] sm:$0xf]
  %v180 = vld [vmem:[%s1 + $0x238] sm:$0xf]
  %v181 = vld [vmem:[%s1 + $0x23c] sm:$0xf]
  %v182 = vld [vmem:[%s2] sm:$0x1]
  %v184 = vlaneseq
  %v185 = vshrl.u32 %v184, 7
  %v186 = vsub.s32 0, %v185
  %v187 = vrot.slane %v182, %v186
  %v209 = vunpack.c.l.b16 %v18
  %v210 = vunpack.c.h.b16 %v18
  %v211 = vunpack.c.l.b16 %v19
  %v212 = vunpack.c.h.b16 %v19
  %v213 = vunpack.c.l.b16 %v20
  %v214 = vunpack.c.h.b16 %v20
  %v215 = vunpack.c.l.b16 %v21
  %v216 = vunpack.c.h.b16 %v21
  %v217 = vunpack.c.l.b16 %v22
  %v218 = vunpack.c.l.b16 %v23
  %v219 = vunpack.c.h.b16 %v23
  %v220 = vunpack.c.l.b16 %v24
  %v221 = vunpack.c.h.b16 %v24
  %v222 = vunpack.c.l.b16 %v25
  %v223 = vunpack.c.h.b16 %v25
  %v224 = vunpack.c.l.b16 %v26
  %v225 = vunpack.c.h.b16 %v26
  %v226 = vunpack.c.l.b16 %v27
  %v227 = vunpack.c.l.b16 %v28
  %v228 = vunpack.c.h.b16 %v28
  %v229 = vunpack.c.l.b16 %v29
  %v230 = vunpack.c.h.b16 %v29
  %v231 = vunpack.c.l.b16 %v30
  %v232 = vunpack.c.h.b16 %v30
  %v233 = vunpack.c.l.b16 %v31
  %v234 = vunpack.c.h.b16 %v31
  %v235 = vunpack.c.l.b16 %v32
  %v236 = vunpack.c.l.b16 %v33
  %v237 = vunpack.c.h.b16 %v33
  %v238 = vunpack.c.l.b16 %v34
  %v239 = vunpack.c.h.b16 %v34
  %v240 = vunpack.c.l.b16 %v35
  %v241 = vunpack.c.h.b16 %v35
  %v242 = vunpack.c.l.b16 %v36
  %v243 = vunpack.c.h.b16 %v36
  %v244 = vunpack.c.l.b16 %v37
  %v245 = vpack.c.b16 %v218, %v209
  %v246 = vpack.c.b16 %v219, %v210
  %v247 = vpack.c.b16 %v220, %v211
  %v248 = vpack.c.b16 %v221, %v212
  %v249 = vpack.c.b16 %v222, %v213
  %v250 = vpack.c.b16 %v223, %v214
  %v251 = vpack.c.b16 %v224, %v215
  %v252 = vpack.c.b16 %v225, %v216
  %v253 = vpack.c.b16 %v226, %v217
  %v254 = vpack.c.b16 %v236, %v227
  %v255 = vpack.c.b16 %v237, %v228
  %v256 = vpack.c.b16 %v238, %v229
  %v257 = vpack.c.b16 %v239, %v230
  %v258 = vpack.c.b16 %v240, %v231
  %v259 = vpack.c.b16 %v241, %v232
  %v260 = vpack.c.b16 %v242, %v233
  %v261 = vpack.c.b16 %v243, %v234
  %v262 = vpack.c.b16 %v244, %v235
  %v425 = vunpack.c.l.b16 %v38
  %v426 = vunpack.c.l.b16 %v39
  %v427 = vunpack.c.l.b16 %v40
  %v428 = vunpack.c.l.b16 %v41
  %v429 = vunpack.c.l.b16 %v42
  %v430 = vunpack.c.l.b16 %v43
  %v431 = vunpack.c.l.b16 %v44
  %v432 = vunpack.c.l.b16 %v45
  %v433 = vunpack.c.l.b16 %v46
  %v434 = vunpack.c.l.b16 %v47
  %v435 = vunpack.c.l.b16 %v48
  %v436 = vunpack.c.l.b16 %v49
  %v437 = vunpack.c.l.b16 %v50
  %v438 = vunpack.c.l.b16 %v51
  %v439 = vunpack.c.l.b16 %v52
  %v440 = vunpack.c.l.b16 %v53
  %v441 = vunpack.c.l.b16 %v54
  %v442 = vunpack.c.l.b16 %v55
  %v443 = vunpack.c.l.b16 %v56
  %v444 = vunpack.c.l.b16 %v57
  %v445 = vunpack.c.l.b16 %v58
  %v446 = vunpack.c.l.b16 %v59
  %v447 = vunpack.c.l.b16 %v60
  %v448 = vunpack.c.l.b16 %v61
  %v449 = vunpack.c.l.b16 %v62
  %v450 = vunpack.c.l.b16 %v63
  %v451 = vunpack.c.l.b16 %v64
  %v452 = vunpack.c.l.b16 %v65
  %v453 = vunpack.c.l.b16 %v66
  %v454 = vunpack.c.l.b16 %v67
  %v455 = vunpack.c.l.b16 %v68
  %v456 = vunpack.c.l.b16 %v69
  %v457 = vunpack.c.l.b16 %v70
  %v458 = vunpack.c.l.b16 %v71
  %v459 = vunpack.c.l.b16 %v72
  %v460 = vunpack.c.l.b16 %v73
  %v461 = vunpack.c.l.b16 %v74
  %v462 = vunpack.c.l.b16 %v75
  %v463 = vunpack.c.l.b16 %v76
  %v464 = vunpack.c.l.b16 %v77
  %v465 = vunpack.c.l.b16 %v78
  %v466 = vunpack.c.l.b16 %v79
  %v467 = vunpack.c.l.b16 %v80
  %v468 = vunpack.c.l.b16 %v81
  %v469 = vunpack.c.l.b16 %v82
  %v470 = vunpack.c.l.b16 %v83
  %v471 = vunpack.c.l.b16 %v84
  %v472 = vunpack.c.l.b16 %v85
  %v473 = vunpack.c.l.b16 %v86
  %v474 = vunpack.c.l.b16 %v87
  %v475 = vunpack.c.l.b16 %v88
  %v476 = vunpack.c.l.b16 %v89
  %v477 = vunpack.c.l.b16 %v90
  %v478 = vunpack.c.l.b16 %v91
  %v479 = vunpack.c.l.b16 %v92
  %v480 = vunpack.c.l.b16 %v93
  %v481 = vunpack.c.l.b16 %v94
  %v482 = vunpack.c.l.b16 %v95
  %v483 = vunpack.c.l.b16 %v96
  %v484 = vunpack.c.l.b16 %v97
  %v485 = vunpack.c.l.b16 %v98
  %v486 = vunpack.c.l.b16 %v99
  %v487 = vunpack.c.l.b16 %v100
  %v488 = vunpack.c.l.b16 %v101
  %v489 = vunpack.c.l.b16 %v102
  %v490 = vunpack.c.l.b16 %v103
  %v491 = vunpack.c.l.b16 %v104
  %v492 = vunpack.c.l.b16 %v105
  %v493 = vunpack.c.l.b16 %v106
  %v494 = vunpack.c.l.b16 %v107
  %v495 = vunpack.c.l.b16 %v108
  %v496 = vunpack.c.l.b16 %v109
  %v497 = vunpack.c.l.b16 %v110
  %v498 = vunpack.c.l.b16 %v111
  %v499 = vunpack.c.l.b16 %v112
  %v500 = vunpack.c.l.b16 %v113
  %v501 = vunpack.c.l.b16 %v114
  %v502 = vunpack.c.l.b16 %v115
  %v503 = vunpack.c.l.b16 %v116
  %v504 = vunpack.c.l.b16 %v117
  %v505 = vunpack.c.l.b16 %v118
  %v506 = vunpack.c.l.b16 %v119
  %v507 = vunpack.c.l.b16 %v120
  %v508 = vunpack.c.l.b16 %v121
  %v509 = vunpack.c.l.b16 %v122
  %v510 = vunpack.c.l.b16 %v123
  %v511 = vunpack.c.l.b16 %v124
  %v512 = vunpack.c.l.b16 %v125
  %v513 = vunpack.c.l.b16 %v126
  %v514 = vunpack.c.l.b16 %v127
  %v515 = vunpack.c.l.b16 %v128
  %v516 = vunpack.c.l.b16 %v129
  %v517 = vunpack.c.l.b16 %v130
  %v518 = vunpack.c.l.b16 %v131
  %v519 = vunpack.c.l.b16 %v132
  %v520 = vunpack.c.l.b16 %v133
  %v521 = vunpack.c.l.b16 %v134
  %v522 = vunpack.c.l.b16 %v135
  %v523 = vunpack.c.l.b16 %v136
  %v524 = vunpack.c.l.b16 %v137
  %v525 = vunpack.c.l.b16 %v138
  %v526 = vunpack.c.l.b16 %v139
  %v527 = vunpack.c.l.b16 %v140
  %v528 = vunpack.c.l.b16 %v141
  %v529 = vunpack.c.l.b16 %v142
  %v530 = vunpack.c.l.b16 %v143
  %v531 = vunpack.c.l.b16 %v144
  %v532 = vunpack.c.l.b16 %v145
  %v533 = vunpack.c.l.b16 %v146
  %v534 = vunpack.c.l.b16 %v147
  %v535 = vunpack.c.l.b16 %v148
  %v536 = vunpack.c.l.b16 %v149
  %v537 = vunpack.c.l.b16 %v150
  %v538 = vunpack.c.l.b16 %v151
  %v539 = vunpack.c.l.b16 %v152
  %v540 = vunpack.c.l.b16 %v153
  %v541 = vunpack.c.l.b16 %v154
  %v542 = vunpack.c.l.b16 %v155
  %v543 = vunpack.c.l.b16 %v156
  %v544 = vunpack.c.l.b16 %v157
  %v545 = vunpack.c.l.b16 %v158
  %v546 = vunpack.c.l.b16 %v159
  %v547 = vunpack.c.l.b16 %v160
  %v548 = vunpack.c.l.b16 %v161
  %v549 = vunpack.c.l.b16 %v162
  %v550 = vunpack.c.l.b16 %v163
  %v551 = vunpack.c.l.b16 %v164
  %v552 = vunpack.c.l.b16 %v165
  %v553 = vunpack.c.l.b16 %v166
  %v554 = vunpack.c.l.b16 %v167
  %v555 = vunpack.c.l.b16 %v168
  %v556 = vunpack.c.l.b16 %v169
  %v557 = vunpack.c.l.b16 %v170
  %v558 = vunpack.c.l.b16 %v171
  %v559 = vunpack.c.l.b16 %v172
  %v560 = vunpack.c.l.b16 %v173
  %v561 = vunpack.c.l.b16 %v174
  %v562 = vunpack.c.l.b16 %v175
  %v563 = vunpack.c.l.b16 %v176
  %v564 = vunpack.c.l.b16 %v177
  %v565 = vunpack.c.l.b16 %v178
  %v566 = vunpack.c.l.b16 %v179
  %v567 = vunpack.c.l.b16 %v180
  %v568 = vunpack.c.l.b16 %v181
  %v569 = vpack.c.b16 %v426, %v425
  %v570 = vpack.c.b16 %v428, %v427
  %v571 = vpack.c.b16 %v430, %v429
  %v572 = vpack.c.b16 %v432, %v431
  %v573 = vpack.c.b16 %v434, %v433
  %v574 = vpack.c.b16 %v436, %v435
  %v575 = vpack.c.b16 %v438, %v437
  %v576 = vpack.c.b16 %v440, %v439
  %v577 = vpack.c.b16 %v442, %v441
  %v578 = vpack.c.b16 %v444, %v443
  %v579 = vpack.c.b16 %v446, %v445
  %v580 = vpack.c.b16 %v448, %v447
  %v581 = vpack.c.b16 %v450, %v449
  %v582 = vpack.c.b16 %v452, %v451
  %v583 = vpack.c.b16 %v454, %v453
  %v584 = vpack.c.b16 %v456, %v455
  %v585 = vpack.c.b16 %v458, %v457
  %v586 = vpack.c.b16 %v460, %v459
  %v587 = vpack.c.b16 %v462, %v461
  %v588 = vpack.c.b16 %v464, %v463
  %v589 = vpack.c.b16 %v466, %v465
  %v590 = vpack.c.b16 %v468, %v467
  %v591 = vpack.c.b16 %v470, %v469
  %v592 = vpack.c.b16 %v472, %v471
  %v593 = vpack.c.b16 %v474, %v473
  %v594 = vpack.c.b16 %v476, %v475
  %v595 = vpack.c.b16 %v478, %v477
  %v596 = vpack.c.b16 %v480, %v479
  %v597 = vpack.c.b16 %v482, %v481
  %v598 = vpack.c.b16 %v484, %v483
  %v599 = vpack.c.b16 %v486, %v485
  %v600 = vpack.c.b16 %v488, %v487
  %v601 = vpack.c.b16 %v490, %v489
  %v602 = vpack.c.b16 %v492, %v491
  %v603 = vpack.c.b16 %v494, %v493
  %v604 = vpack.c.b16 %v496, %v495
  %v605 = vpack.c.b16 %v498, %v497
  %v606 = vpack.c.b16 %v500, %v499
  %v607 = vpack.c.b16 %v502, %v501
  %v608 = vpack.c.b16 %v504, %v503
  %v609 = vpack.c.b16 %v506, %v505
  %v610 = vpack.c.b16 %v508, %v507
  %v611 = vpack.c.b16 %v510, %v509
  %v612 = vpack.c.b16 %v512, %v511
  %v613 = vpack.c.b16 %v514, %v513
  %v614 = vpack.c.b16 %v516, %v515
  %v615 = vpack.c.b16 %v518, %v517
  %v616 = vpack.c.b16 %v520, %v519
  %v617 = vpack.c.b16 %v522, %v521
  %v618 = vpack.c.b16 %v524, %v523
  %v619 = vpack.c.b16 %v526, %v525
  %v620 = vpack.c.b16 %v528, %v527
  %v621 = vpack.c.b16 %v530, %v529
  %v622 = vpack.c.b16 %v532, %v531
  %v623 = vpack.c.b16 %v534, %v533
  %v624 = vpack.c.b16 %v536, %v535
  %v625 = vpack.c.b16 %v538, %v537
  %v626 = vpack.c.b16 %v540, %v539
  %v627 = vpack.c.b16 %v542, %v541
  %v628 = vpack.c.b16 %v544, %v543
  %v629 = vpack.c.b16 %v546, %v545
  %v630 = vpack.c.b16 %v548, %v547
  %v631 = vpack.c.b16 %v550, %v549
  %v632 = vpack.c.b16 %v552, %v551
  %v633 = vpack.c.b16 %v554, %v553
  %v634 = vpack.c.b16 %v556, %v555
  %v635 = vpack.c.b16 %v558, %v557
  %v636 = vpack.c.b16 %v560, %v559
  %v637 = vpack.c.b16 %v562, %v561
  %v638 = vpack.c.b16 %v564, %v563
  %v639 = vpack.c.b16 %v566, %v565
  %v640 = vpack.c.b16 %v568, %v567
  %713 = vmatprep.subr.bf16.mxu0 0
  %714 = vmatpush1.bf16.msra.mxu0 %v576
  %715 = vmatprep.subr.bf16.mxu0 0
  %716 = vmatpush1.bf16.msra.mxu0 %v575
  %717 = vmatprep.subr.bf16.mxu0 0
  %718 = vmatpush1.bf16.msra.mxu0 %v574
  %719 = vmatprep.subr.bf16.mxu0 0
  %720 = vmatpush1.bf16.msra.mxu0 %v573
  %721 = vmatprep.subr.bf16.mxu0 0
  %722 = vmatpush1.bf16.msra.mxu0 %v572
  %723 = vmatprep.subr.bf16.mxu0 0
  %724 = vmatpush1.bf16.msra.mxu0 %v571
  %725 = vmatprep.subr.bf16.mxu0 0
  %726 = vmatpush1.bf16.msra.mxu0 %v570
  %727 = vmatprep.subr.bf16.mxu0 0
  %728 = vmatpush1.bf16.msra.mxu0 %v569
  %729 = vmatprep.subr.bf16.mxu0 0
  %730 = vmatpush2.bf16.msra.mxu0 %v584
  %731 = vmatprep.subr.bf16.mxu0 0
  %732 = vmatpush2.bf16.msra.mxu0 %v583
  %733 = vmatprep.subr.bf16.mxu0 0
  %734 = vmatpush2.bf16.msra.mxu0 %v582
  %735 = vmatprep.subr.bf16.mxu0 0
  %736 = vmatpush2.bf16.msra.mxu0 %v581
  %737 = vmatprep.subr.bf16.mxu0 0
  %738 = vmatpush2.bf16.msra.mxu0 %v580
  %739 = vmatprep.subr.bf16.mxu0 0
  %740 = vmatpush2.bf16.msra.mxu0 %v579
  %741 = vmatprep.subr.bf16.mxu0 0
  %742 = vmatpush2.bf16.msra.mxu0 %v578
  %743 = vmatprep.subr.bf16.mxu0 0
  %744 = vmatpush2.bf16.msra.mxu0 %v577
  %745 = vmatprep.mubr.bf16.mxu0 %v246
  %746 = vmatmul.mubr.bf16.gmra.mxu0 %v245
  %v747 = vpop.f32.mrf.mxu0
  %v748 = vadd.f32 %v187, %v747
  %v749 = vpop.f32.mrf.mxu0
  %v750 = vpop.f32.mrf.mxu0
  %v751 = vadd.f32 %v187, %v750
  %v752 = vpop.f32.mrf.mxu0
  %753 = vmatprep.mubr.bf16.mxu0 %v255
  %754 = vmatmul.mubr.bf16.gmra.mxu0 %v254
  %v755 = vpop.f32.mrf.mxu0
  %v756 = vadd.f32 %v187, %v755
  %v757 = vpop.f32.mrf.mxu0
  %v758 = vpop.f32.mrf.mxu0
  %v759 = vadd.f32 %v187, %v758
  %v760 = vpop.f32.mrf.mxu0
  %761 = vdwg.mxu0
  %762 = vmatprep.subr.bf16.mxu0 0
  %763 = vmatpush1.bf16.msra.mxu0 %v592
  %764 = vmatprep.subr.bf16.mxu0 0
  %765 = vmatpush1.bf16.msra.mxu0 %v591
  %766 = vmatprep.subr.bf16.mxu0 0
  %767 = vmatpush1.bf16.msra.mxu0 %v590
  %768 = vmatprep.subr.bf16.mxu0 0
  %769 = vmatpush1.bf16.msra.mxu0 %v589
  %770 = vmatprep.subr.bf16.mxu0 0
  %771 = vmatpush1.bf16.msra.mxu0 %v588
  %772 = vmatprep.subr.bf16.mxu0 0
  %773 = vmatpush1.bf16.msra.mxu0 %v587
  %774 = vmatprep.subr.bf16.mxu0 0
  %775 = vmatpush1.bf16.msra.mxu0 %v586
  %776 = vmatprep.subr.bf16.mxu0 0
  %777 = vmatpush1.bf16.msra.mxu0 %v585
  %778 = vmatprep.subr.bf16.mxu0 0
  %779 = vmatpush2.bf16.msra.mxu0 %v600
  %780 = vmatprep.subr.bf16.mxu0 0
  %781 = vmatpush2.bf16.msra.mxu0 %v599
  %782 = vmatprep.subr.bf16.mxu0 0
  %783 = vmatpush2.bf16.msra.mxu0 %v598
  %784 = vmatprep.subr.bf16.mxu0 0
  %785 = vmatpush2.bf16.msra.mxu0 %v597
  %786 = vmatprep.subr.bf16.mxu0 0
  %787 = vmatpush2.bf16.msra.mxu0 %v596
  %788 = vmatprep.subr.bf16.mxu0 0
  %789 = vmatpush2.bf16.msra.mxu0 %v595
  %790 = vmatprep.subr.bf16.mxu0 0
  %791 = vmatpush2.bf16.msra.mxu0 %v594
  %792 = vmatprep.subr.bf16.mxu0 0
  %793 = vmatpush2.bf16.msra.mxu0 %v593
  %794 = vmatprep.mubr.bf16.mxu0 %v248
  %795 = vmatmul.mubr.bf16.gmra.mxu0 %v247
  %v796 = vpop.f32.mrf.mxu0
  %v797 = vadd.f32 %v748, %v796
  %v798 = vpop.f32.mrf.mxu0
  %v799 = vpop.f32.mrf.mxu0
  %v800 = vadd.f32 %v751, %v799
  %v801 = vpop.f32.mrf.mxu0
  %802 = vmatprep.mubr.bf16.mxu0 %v257
  %803 = vmatmul.mubr.bf16.gmra.mxu0 %v256
  %v804 = vpop.f32.mrf.mxu0
  %v805 = vadd.f32 %v756, %v804
  %v806 = vpop.f32.mrf.mxu0
  %v807 = vpop.f32.mrf.mxu0
  %v808 = vadd.f32 %v759, %v807
  %v809 = vpop.f32.mrf.mxu0
  %810 = vdwg.mxu0
  %811 = vmatprep.subr.bf16.mxu0 0
  %812 = vmatpush1.bf16.msra.mxu0 %v608
  %813 = vmatprep.subr.bf16.mxu0 0
  %814 = vmatpush1.bf16.msra.mxu0 %v607
  %815 = vmatprep.subr.bf16.mxu0 0
  %816 = vmatpush1.bf16.msra.mxu0 %v606
  %817 = vmatprep.subr.bf16.mxu0 0
  %818 = vmatpush1.bf16.msra.mxu0 %v605
  %819 = vmatprep.subr.bf16.mxu0 0
  %820 = vmatpush1.bf16.msra.mxu0 %v604
  %821 = vmatprep.subr.bf16.mxu0 0
  %822 = vmatpush1.bf16.msra.mxu0 %v603
  %823 = vmatprep.subr.bf16.mxu0 0
  %824 = vmatpush1.bf16.msra.mxu0 %v602
  %825 = vmatprep.subr.bf16.mxu0 0
  %826 = vmatpush1.bf16.msra.mxu0 %v601
  %827 = vmatprep.subr.bf16.mxu0 0
  %828 = vmatpush2.bf16.msra.mxu0 %v616
  %829 = vmatprep.subr.bf16.mxu0 0
  %830 = vmatpush2.bf16.msra.mxu0 %v615
  %831 = vmatprep.subr.bf16.mxu0 0
  %832 = vmatpush2.bf16.msra.mxu0 %v614
  %833 = vmatprep.subr.bf16.mxu0 0
  %834 = vmatpush2.bf16.msra.mxu0 %v613
  %835 = vmatprep.subr.bf16.mxu0 0
  %836 = vmatpush2.bf16.msra.mxu0 %v612
  %837 = vmatprep.subr.bf16.mxu0 0
  %838 = vmatpush2.bf16.msra.mxu0 %v611
  %839 = vmatprep.subr.bf16.mxu0 0
  %840 = vmatpush2.bf16.msra.mxu0 %v610
  %841 = vmatprep.subr.bf16.mxu0 0
  %842 = vmatpush2.bf16.msra.mxu0 %v609
  %843 = vmatprep.mubr.bf16.mxu0 %v250
  %844 = vmatmul.mubr.bf16.gmra.mxu0 %v249
  %v845 = vpop.f32.mrf.mxu0
  %v846 = vadd.f32 %v797, %v845
  %v847 = vpop.f32.mrf.mxu0
  %v848 = vpop.f32.mrf.mxu0
  %v849 = vadd.f32 %v800, %v848
  %v850 = vpop.f32.mrf.mxu0
  %851 = vmatprep.mubr.bf16.mxu0 %v259
  %852 = vmatmul.mubr.bf16.gmra.mxu0 %v258
  %v853 = vpop.f32.mrf.mxu0
  %v854 = vadd.f32 %v805, %v853
  %v855 = vpop.f32.mrf.mxu0
  %v856 = vpop.f32.mrf.mxu0
  %v857 = vadd.f32 %v808, %v856
  %v858 = vpop.f32.mrf.mxu0
  %859 = vdwg.mxu0
  %860 = vmatprep.subr.bf16.mxu0 0
  %861 = vmatpush1.bf16.msra.mxu0 %v624
  %862 = vmatprep.subr.bf16.mxu0 0
  %863 = vmatpush1.bf16.msra.mxu0 %v623
  %864 = vmatprep.subr.bf16.mxu0 0
  %865 = vmatpush1.bf16.msra.mxu0 %v622
  %866 = vmatprep.subr.bf16.mxu0 0
  %867 = vmatpush1.bf16.msra.mxu0 %v621
  %868 = vmatprep.subr.bf16.mxu0 0
  %869 = vmatpush1.bf16.msra.mxu0 %v620
  %870 = vmatprep.subr.bf16.mxu0 0
  %871 = vmatpush1.bf16.msra.mxu0 %v619
  %872 = vmatprep.subr.bf16.mxu0 0
  %873 = vmatpush1.bf16.msra.mxu0 %v618
  %874 = vmatprep.subr.bf16.mxu0 0
  %875 = vmatpush1.bf16.msra.mxu0 %v617
  %876 = vmatprep.subr.bf16.mxu0 0
  %877 = vmatpush2.bf16.msra.mxu0 %v632
  %878 = vmatprep.subr.bf16.mxu0 0
  %879 = vmatpush2.bf16.msra.mxu0 %v631
  %880 = vmatprep.subr.bf16.mxu0 0
  %881 = vmatpush2.bf16.msra.mxu0 %v630
  %882 = vmatprep.subr.bf16.mxu0 0
  %883 = vmatpush2.bf16.msra.mxu0 %v629
  %884 = vmatprep.subr.bf16.mxu0 0
  %885 = vmatpush2.bf16.msra.mxu0 %v628
  %886 = vmatprep.subr.bf16.mxu0 0
  %887 = vmatpush2.bf16.msra.mxu0 %v627
  %888 = vmatprep.subr.bf16.mxu0 0
  %889 = vmatpush2.bf16.msra.mxu0 %v626
  %890 = vmatprep.subr.bf16.mxu0 0
  %891 = vmatpush2.bf16.msra.mxu0 %v625
  %892 = vmatprep.mubr.bf16.mxu0 %v252
  %893 = vmatmul.mubr.bf16.gmra.mxu0 %v251
  %v894 = vpop.f32.mrf.mxu0
  %v895 = vadd.f32 %v846, %v894
  %v896 = vpop.f32.mrf.mxu0
  %v897 = vpop.f32.mrf.mxu0
  %v898 = vadd.f32 %v849, %v897
  %v899 = vpop.f32.mrf.mxu0
  %900 = vmatprep.mubr.bf16.mxu0 %v261
  %901 = vmatmul.mubr.bf16.gmra.mxu0 %v260
  %v902 = vpop.f32.mrf.mxu0
  %v903 = vadd.f32 %v854, %v902
  %v904 = vpop.f32.mrf.mxu0
  %v905 = vpop.f32.mrf.mxu0
  %v906 = vadd.f32 %v857, %v905
  %v907 = vpop.f32.mrf.mxu0
  %908 = vdwg.mxu0
  %909 = vmatprep.subr.bf16.mxu0 0
  %910 = vmatpush1.bf16.msra.mxu0 %v640
  %911 = vmatprep.subr.bf16.mxu0 0
  %912 = vmatpush1.bf16.msra.mxu0 %v639
  %913 = vmatprep.subr.bf16.mxu0 0
  %914 = vmatpush1.bf16.msra.mxu0 %v638
  %915 = vmatprep.subr.bf16.mxu0 0
  %916 = vmatpush1.bf16.msra.mxu0 %v637
  %917 = vmatprep.subr.bf16.mxu0 0
  %918 = vmatpush1.bf16.msra.mxu0 %v636
  %919 = vmatprep.subr.bf16.mxu0 0
  %920 = vmatpush1.bf16.msra.mxu0 %v635
  %921 = vmatprep.subr.bf16.mxu0 0
  %922 = vmatpush1.bf16.msra.mxu0 %v634
  %923 = vmatprep.subr.bf16.mxu0 0
  %924 = vmatpush1.bf16.msra.mxu0 %v633
  %925 = vmatprep.subr.bf16.mxu0 0
  %926 = vmatpush2.bf16.msra.mxu0 0
  %927 = vmatprep.subr.bf16.mxu0 0
  %928 = vmatpush2.bf16.msra.mxu0 0
  %929 = vmatprep.subr.bf16.mxu0 0
  %930 = vmatpush2.bf16.msra.mxu0 0
  %931 = vmatprep.subr.bf16.mxu0 0
  %932 = vmatpush2.bf16.msra.mxu0 0
  %933 = vmatprep.subr.bf16.mxu0 0
  %934 = vmatpush2.bf16.msra.mxu0 0
  %935 = vmatprep.subr.bf16.mxu0 0
  %936 = vmatpush2.bf16.msra.mxu0 0
  %937 = vmatprep.subr.bf16.mxu0 0
  %938 = vmatpush2.bf16.msra.mxu0 0
  %939 = vmatprep.subr.bf16.mxu0 0
  %940 = vmatpush2.bf16.msra.mxu0 0
  %941 = vmatprep.mubr.bf16.mxu0 0
  %942 = vmatmul.mubr.bf16.gmra.mxu0 %v253
  %v943 = vpop.f32.mrf.mxu0
  %v944 = vadd.f32 %v895, %v943
  %v945 = vpop.f32.mrf.mxu0
  %v946 = vpop.f32.mrf.mxu0
  %v947 = vadd.f32 %v898, %v946
  %v948 = vpop.f32.mrf.mxu0
  %949 = vmatprep.mubr.bf16.mxu0 0
  %950 = vmatmul.mubr.bf16.gmra.mxu0 %v262
  %v951 = vpop.f32.mrf.mxu0
  %v952 = vadd.f32 %v903, %v951
  %v953 = vpop.f32.mrf.mxu0
  %v954 = vpop.f32.mrf.mxu0
  %v955 = vadd.f32 %v906, %v954
  %v956 = vpop.f32.mrf.mxu0
  %957 = vdwg.mxu0
  %v958 = vld [vmem:[%s3] sm:$0xf]
  %v959 = vld [vmem:[%s3 + $0x4] sm:$0xf]
  %v960 = vld [vmem:[%s3 + $0x8] sm:$0xf]
  %v961 = vld [vmem:[%s3 + $0xc] sm:$0xf]
  %v962 = vunpack.c.l.bf16 %v958
  %v963 = vunpack.c.l.bf16 %v959
  %v964 = vunpack.c.l.bf16 %v960
  %v965 = vunpack.c.l.bf16 %v961
  %v966 = vadd.f32 %v944, %v962
  %v967 = vadd.f32 %v947, %v963
  %v968 = vadd.f32 %v952, %v964
  %v969 = vadd.f32 %v955, %v965
  %v970 = vmax.f32 %v966, 0.0
  %v971 = vmax.f32 %v967, 0.0
  %v972 = vmax.f32 %v968, 0.0
  %v973 = vmax.f32 %v969, 0.0
  %v974 = vpack.c.bf16 %v971, %v970
  %v975 = vpack.c.bf16 %v973, %v972
  %v978 = vunpack.c.l.b16 %v974
  %v979 = vunpack.c.h.b16 %v974
  %v980 = vunpack.c.l.b16 %v975
  %v981 = vunpack.c.h.b16 %v975
  %v982 = vpack.c.b16 %v978, %v978
  %v983 = vpack.c.b16 %v979, %v979
  %v984 = vpack.c.b16 %v980, %v980
  %v985 = vpack.c.b16 %v981, %v981
  %990 = vst [vmem:[%s4] sm:$0xf] %v982
  %991 = vst [vmem:[%s4 + $0x4] sm:$0xf] %v983
  %992 = vst [vmem:[%s4 + $0x8] sm:$0xf] %v984
  %993 = vst [vmem:[%s4 + $0xc] sm:$0xf] %v985
  // Predicated region
  $region18: #{_lambda_.17} parent=0 // pred_check
    _
  $region19: #{_lambda_.17} parent=0 // pred_check_branch
    %995 = sbr.rel (0) target = $region21
  $region20: #{_lambda_.17} parent=0 // pred_region
    _
  $region21: #{_lambda_.17} parent=0 // pred_fallthru
    _
  // Predicated region
  $region22: #{_lambda_.17} parent=0 // pred_check
    _
  $region23: #{_lambda_.17} parent=0 // pred_check_branch
    %997 = sbr.rel (0) target = $region25
  $region24: #{_lambda_.17} parent=0 // pred_region
    _
  $region25: #{_lambda_.17} parent=0 // pred_fallthru
    _

// kernel: _lambda_.18
$region0: #{_lambda_.18}
  #allocation0 [shape = 'u32[]', space=smem, size = 0x4, offset = 0x4, fixed_abs, tag = 'smem constant byte address 0x4 - core index']
  #allocation1 [shape = 'u32[144,128]{1,0:T(1,128)}', space=vmem, size = 0x12000, scoped, tag = 'internal scratch']
  %s0 = inlined_call_operand.vmem [shape: bf16[32,1152], index: 0, kind: input, shape index: {}]
  %s1 = inlined_call_operand.vmem [shape: bf16[1152,128], index: 1, kind: input, shape index: {}]
  %s2 = inlined_call_operand.vmem [shape: f32[1,128], index: 2, kind: input, shape index: {}]
  %s3 = inlined_call_operand.vmem [shape: bf16[32,128], index: 3, kind: output, shape index: {}]
  %s4 = sld [smem:[#allocation0]]
  $region22: #{_lambda_.18} parent=0
    _
  %s6 = ssub.s32 1, %s4
  %s7 = scalar_select 0, %s6, %s4
  // Predicated region
  $region2: #{_lambda_.18} parent=0 // pred_check
    _
  $region3: #{_lambda_.18} parent=0 // pred_check_branch
    %9 = sbr.rel (0) target = $region5
  $region4: #{_lambda_.18} parent=0 // pred_region
    _
  $region5: #{_lambda_.18} parent=0 // pred_fallthru
    _
  // Predicated region
  $region6: #{_lambda_.18} parent=0 // pred_check
    _
  $region7: #{_lambda_.18} parent=0 // pred_check_branch
    %11 = sbr.rel (0) target = $region9
  $region8: #{_lambda_.18} parent=0 // pred_region
    _
  $region9: #{_lambda_.18} parent=0 // pred_fallthru
    _
  // Predicated region
  $region10: #{_lambda_.18} parent=0 // pred_check
    _
  $region11: #{_lambda_.18} parent=0 // pred_check_branch
    %13 = sbr.rel (0) target = $region13
  $region12: #{_lambda_.18} parent=0 // pred_region
    _
  $region13: #{_lambda_.18} parent=0 // pred_fallthru
    _
  %v15 = vld [vmem:[%s0] sm:$0xff]
  %v16 = vld [vmem:[%s0 + $0x8] sm:$0xff]
  %v17 = vld [vmem:[%s0 + $0x10] sm:$0xff]
  %v18 = vld [vmem:[%s0 + $0x18] sm:$0xff]
  %v19 = vld [vmem:[%s0 + $0x20] sm:$0xf]
  %v20 = vld [vmem:[%s0 + $0x24] sm:$0xff]
  %v21 = vld [vmem:[%s0 + $0x2c] sm:$0xff]
  %v22 = vld [vmem:[%s0 + $0x34] sm:$0xff]
  %v23 = vld [vmem:[%s0 + $0x3c] sm:$0xff]
  %v24 = vld [vmem:[%s0 + $0x44] sm:$0xf]
  %v25 = vld [vmem:[%s0 + $0x48] sm:$0xff]
  %v26 = vld [vmem:[%s0 + $0x50] sm:$0xff]
  %v27 = vld [vmem:[%s0 + $0x58] sm:$0xff]
  %v28 = vld [vmem:[%s0 + $0x60] sm:$0xff]
  %v29 = vld [vmem:[%s0 + $0x68] sm:$0xf]
  %v30 = vld [vmem:[%s0 + $0x6c] sm:$0xff]
  %v31 = vld [vmem:[%s0 + $0x74] sm:$0xff]
  %v32 = vld [vmem:[%s0 + $0x7c] sm:$0xff]
  %v33 = vld [vmem:[%s0 + $0x84] sm:$0xff]
  %v34 = vld [vmem:[%s0 + $0x8c] sm:$0xf]
  %v35 = vld [vmem:[%s1] sm:$0xf]
  %v36 = vld [vmem:[%s1 + $0x4] sm:$0xf]
  %v37 = vld [vmem:[%s1 + $0x8] sm:$0xf]
  %v38 = vld [vmem:[%s1 + $0xc] sm:$0xf]
  %v39 = vld [vmem:[%s1 + $0x10] sm:$0xf]
  %v40 = vld [vmem:[%s1 + $0x14] sm:$0xf]
  %v41 = vld [vmem:[%s1 + $0x18] sm:$0xf]
  %v42 = vld [vmem:[%s1 + $0x1c] sm:$0xf]
  %v43 = vld [vmem:[%s1 + $0x20] sm:$0xf]
  %v44 = vld [vmem:[%s1 + $0x24] sm:$0xf]
  %v45 = vld [vmem:[%s1 + $0x28] sm:$0xf]
  %v46 = vld [vmem:[%s1 + $0x2c] sm:$0xf]
  %v47 = vld [vmem:[%s1 + $0x30] sm:$0xf]
  %v48 = vld [vmem:[%s1 + $0x34] sm:$0xf]
  %v49 = vld [vmem:[%s1 + $0x38] sm:$0xf]
  %v50 = vld [vmem:[%s1 + $0x3c] sm:$0xf]
  %v51 = vld [vmem:[%s1 + $0x40] sm:$0xf]
  %v52 = vld [vmem:[%s1 + $0x44] sm:$0xf]
  %v53 = vld [vmem:[%s1 + $0x48] sm:$0xf]
  %v54 = vld [vmem:[%s1 + $0x4c] sm:$0xf]
  %v55 = vld [vmem:[%s1 + $0x50] sm:$0xf]
  %v56 = vld [vmem:[%s1 + $0x54] sm:$0xf]
  %v57 = vld [vmem:[%s1 + $0x58] sm:$0xf]
  %v58 = vld [vmem:[%s1 + $0x5c] sm:$0xf]
  %v59 = vld [vmem:[%s1 + $0x60] sm:$0xf]
  %v60 = vld [vmem:[%s1 + $0x64] sm:$0xf]
  %v61 = vld [vmem:[%s1 + $0x68] sm:$0xf]
  %v62 = vld [vmem:[%s1 + $0x6c] sm:$0xf]
  %v63 = vld [vmem:[%s1 + $0x70] sm:$0xf]
  %v64 = vld [vmem:[%s1 + $0x74] sm:$0xf]
  %v65 = vld [vmem:[%s1 + $0x78] sm:$0xf]
  %v66 = vld [vmem:[%s1 + $0x7c] sm:$0xf]
  %v67 = vld [vmem:[%s1 + $0x80] sm:$0xf]
  %v68 = vld [vmem:[%s1 + $0x84] sm:$0xf]
  %v69 = vld [vmem:[%s1 + $0x88] sm:$0xf]
  %v70 = vld [vmem:[%s1 + $0x8c] sm:$0xf]
  %v71 = vld [vmem:[%s1 + $0x90] sm:$0xf]
  %v72 = vld [vmem:[%s1 + $0x94] sm:$0xf]
  %v73 = vld [vmem:[%s1 + $0x98] sm:$0xf]
  %v74 = vld [vmem:[%s1 + $0x9c] sm:$0xf]
  %v75 = vld [vmem:[%s1 + $0xa0] sm:$0xf]
  %v76 = vld [vmem:[%s1 + $0xa4] sm:$0xf]
  %v77 = vld [vmem:[%s1 + $0xa8] sm:$0xf]
  %v78 = vld [vmem:[%s1 + $0xac] sm:$0xf]
  %v79 = vld [vmem:[%s1 + $0xb0] sm:$0xf]
  %v80 = vld [vmem:[%s1 + $0xb4] sm:$0xf]
  %v81 = vld [vmem:[%s1 + $0xb8] sm:$0xf]
  %v82 = vld [vmem:[%s1 + $0xbc] sm:$0xf]
  %v83 = vld [vmem:[%s1 + $0xc0] sm:$0xf]
  %v84 = vld [vmem:[%s1 + $0xc4] sm:$0xf]
  %v85 = vld [vmem:[%s1 + $0xc8] sm:$0xf]
  %v86 = vld [vmem:[%s1 + $0xcc] sm:$0xf]
  %v87 = vld [vmem:[%s1 + $0xd0] sm:$0xf]
  %v88 = vld [vmem:[%s1 + $0xd4] sm:$0xf]
  %v89 = vld [vmem:[%s1 + $0xd8] sm:$0xf]
  %v90 = vld [vmem:[%s1 + $0xdc] sm:$0xf]
  %v91 = vld [vmem:[%s1 + $0xe0] sm:$0xf]
  %v92 = vld [vmem:[%s1 + $0xe4] sm:$0xf]
  %v93 = vld [vmem:[%s1 + $0xe8] sm:$0xf]
  %v94 = vld [vmem:[%s1 + $0xec] sm:$0xf]
  %v95 = vld [vmem:[%s1 + $0xf0] sm:$0xf]
  %v96 = vld [vmem:[%s1 + $0xf4] sm:$0xf]
  %v97 = vld [vmem:[%s1 + $0xf8] sm:$0xf]
  %v98 = vld [vmem:[%s1 + $0xfc] sm:$0xf]
  %v99 = vld [vmem:[%s1 + $0x100] sm:$0xf]
  %v100 = vld [vmem:[%s1 + $0x104] sm:$0xf]
  %v101 = vld [vmem:[%s1 + $0x108] sm:$0xf]
  %v102 = vld [vmem:[%s1 + $0x10c] sm:$0xf]
  %v103 = vld [vmem:[%s1 + $0x110] sm:$0xf]
  %v104 = vld [vmem:[%s1 + $0x114] sm:$0xf]
  %v105 = vld [vmem:[%s1 + $0x118] sm:$0xf]
  %v106 = vld [vmem:[%s1 + $0x11c] sm:$0xf]
  %v107 = vld [vmem:[%s1 + $0x120] sm:$0xf]
  %v108 = vld [vmem:[%s1 + $0x124] sm:$0xf]
  %v109 = vld [vmem:[%s1 + $0x128] sm:$0xf]
  %v110 = vld [vmem:[%s1 + $0x12c] sm:$0xf]
  %v111 = vld [vmem:[%s1 + $0x130] sm:$0xf]
  %v112 = vld [vmem:[%s1 + $0x134] sm:$0xf]
  %v113 = vld [vmem:[%s1 + $0x138] sm:$0xf]
  %v114 = vld [vmem:[%s1 + $0x13c] sm:$0xf]
  %v115 = vld [vmem:[%s1 + $0x140] sm:$0xf]
  %v116 = vld [vmem:[%s1 + $0x144] sm:$0xf]
  %v117 = vld [vmem:[%s1 + $0x148] sm:$0xf]
  %v118 = vld [vmem:[%s1 + $0x14c] sm:$0xf]
  %v119 = vld [vmem:[%s1 + $0x150] sm:$0xf]
  %v120 = vld [vmem:[%s1 + $0x154] sm:$0xf]
  %v121 = vld [vmem:[%s1 + $0x158] sm:$0xf]
  %v122 = vld [vmem:[%s1 + $0x15c] sm:$0xf]
  %v123 = vld [vmem:[%s1 + $0x160] sm:$0xf]
  %v124 = vld [vmem:[%s1 + $0x164] sm:$0xf]
  %v125 = vld [vmem:[%s1 + $0x168] sm:$0xf]
  %v126 = vld [vmem:[%s1 + $0x16c] sm:$0xf]
  %v127 = vld [vmem:[%s1 + $0x170] sm:$0xf]
  %v128 = vld [vmem:[%s1 + $0x174] sm:$0xf]
  %v129 = vld [vmem:[%s1 + $0x178] sm:$0xf]
  %v130 = vld [vmem:[%s1 + $0x17c] sm:$0xf]
  %v131 = vld [vmem:[%s1 + $0x180] sm:$0xf]
  %v132 = vld [vmem:[%s1 + $0x184] sm:$0xf]
  %v133 = vld [vmem:[%s1 + $0x188] sm:$0xf]
  %v134 = vld [vmem:[%s1 + $0x18c] sm:$0xf]
  %v135 = vld [vmem:[%s1 + $0x190] sm:$0xf]
  %v136 = vld [vmem:[%s1 + $0x194] sm:$0xf]
  %v137 = vld [vmem:[%s1 + $0x198] sm:$0xf]
  %v138 = vld [vmem:[%s1 + $0x19c] sm:$0xf]
  %v139 = vld [vmem:[%s1 + $0x1a0] sm:$0xf]
  %v140 = vld [vmem:[%s1 + $0x1a4] sm:$0xf]
  %v141 = vld [vmem:[%s1 + $0x1a8] sm:$0xf]
  %v142 = vld [vmem:[%s1 + $0x1ac] sm:$0xf]
  %v143 = vld [vmem:[%s1 + $0x1b0] sm:$0xf]
  %v144 = vld [vmem:[%s1 + $0x1b4] sm:$0xf]
  %v145 = vld [vmem:[%s1 + $0x1b8] sm:$0xf]
  %v146 = vld [vmem:[%s1 + $0x1bc] sm:$0xf]
  %v147 = vld [vmem:[%s1 + $0x1c0] sm:$0xf]
  %v148 = vld [vmem:[%s1 + $0x1c4] sm:$0xf]
  %v149 = vld [vmem:[%s1 + $0x1c8] sm:$0xf]
  %v150 = vld [vmem:[%s1 + $0x1cc] sm:$0xf]
  %v151 = vld [vmem:[%s1 + $0x1d0] sm:$0xf]
  %v152 = vld [vmem:[%s1 + $0x1d4] sm:$0xf]
  %v153 = vld [vmem:[%s1 + $0x1d8] sm:$0xf]
  %v154 = vld [vmem:[%s1 + $0x1dc] sm:$0xf]
  %v155 = vld [vmem:[%s1 + $0x1e0] sm:$0xf]
  %v156 = vld [vmem:[%s1 + $0x1e4] sm:$0xf]
  %v157 = vld [vmem:[%s1 + $0x1e8] sm:$0xf]
  %v158 = vld [vmem:[%s1 + $0x1ec] sm:$0xf]
  %v159 = vld [vmem:[%s1 + $0x1f0] sm:$0xf]
  %v160 = vld [vmem:[%s1 + $0x1f4] sm:$0xf]
  %v161 = vld [vmem:[%s1 + $0x1f8] sm:$0xf]
  %v162 = vld [vmem:[%s1 + $0x1fc] sm:$0xf]
  %v163 = vld [vmem:[%s1 + $0x200] sm:$0xf]
  %v164 = vld [vmem:[%s1 + $0x204] sm:$0xf]
  %v165 = vld [vmem:[%s1 + $0x208] sm:$0xf]
  %v166 = vld [vmem:[%s1 + $0x20c] sm:$0xf]
  %v167 = vld [vmem:[%s1 + $0x210] sm:$0xf]
  %v168 = vld [vmem:[%s1 + $0x214] sm:$0xf]
  %v169 = vld [vmem:[%s1 + $0x218] sm:$0xf]
  %v170 = vld [vmem:[%s1 + $0x21c] sm:$0xf]
  %v171 = vld [vmem:[%s1 + $0x220] sm:$0xf]
  %v172 = vld [vmem:[%s1 + $0x224] sm:$0xf]
  %v173 = vld [vmem:[%s1 + $0x228] sm:$0xf]
  %v174 = vld [vmem:[%s1 + $0x22c] sm:$0xf]
  %v175 = vld [vmem:[%s1 + $0x230] sm:$0xf]
  %v176 = vld [vmem:[%s1 + $0x234] sm:$0xf]
  %v177 = vld [vmem:[%s1 + $0x238] sm:$0xf]
  %v178 = vld [vmem:[%s1 + $0x23c] sm:$0xf]
  %v179 = vld [vmem:[%s2] sm:$0x1]
  %v181 = vlaneseq
  %v182 = vshrl.u32 %v181, 7
  %v183 = vsub.s32 0, %v182
  %v184 = vrot.slane %v179, %v183
  %v206 = vunpack.c.l.b16 %v15
  %v207 = vunpack.c.h.b16 %v15
  %v208 = vunpack.c.l.b16 %v16
  %v209 = vunpack.c.h.b16 %v16
  %v210 = vunpack.c.l.b16 %v17
  %v211 = vunpack.c.h.b16 %v17
  %v212 = vunpack.c.l.b16 %v18
  %v213 = vunpack.c.h.b16 %v18
  %v214 = vunpack.c.l.b16 %v19
  %v215 = vunpack.c.l.b16 %v20
  %v216 = vunpack.c.h.b16 %v20
  %v217 = vunpack.c.l.b16 %v21
  %v218 = vunpack.c.h.b16 %v21
  %v219 = vunpack.c.l.b16 %v22
  %v220 = vunpack.c.h.b16 %v22
  %v221 = vunpack.c.l.b16 %v23
  %v222 = vunpack.c.h.b16 %v23
  %v223 = vunpack.c.l.b16 %v24
  %v224 = vunpack.c.l.b16 %v25
  %v225 = vunpack.c.h.b16 %v25
  %v226 = vunpack.c.l.b16 %v26
  %v227 = vunpack.c.h.b16 %v26
  %v228 = vunpack.c.l.b16 %v27
  %v229 = vunpack.c.h.b16 %v27
  %v230 = vunpack.c.l.b16 %v28
  %v231 = vunpack.c.h.b16 %v28
  %v232 = vunpack.c.l.b16 %v29
  %v233 = vunpack.c.l.b16 %v30
  %v234 = vunpack.c.h.b16 %v30
  %v235 = vunpack.c.l.b16 %v31
  %v236 = vunpack.c.h.b16 %v31
  %v237 = vunpack.c.l.b16 %v32
  %v238 = vunpack.c.h.b16 %v32
  %v239 = vunpack.c.l.b16 %v33
  %v240 = vunpack.c.h.b16 %v33
  %v241 = vunpack.c.l.b16 %v34
  %v242 = vpack.c.b16 %v215, %v206
  %v243 = vpack.c.b16 %v216, %v207
  %v244 = vpack.c.b16 %v217, %v208
  %v245 = vpack.c.b16 %v218, %v209
  %v246 = vpack.c.b16 %v219, %v210
  %v247 = vpack.c.b16 %v220, %v211
  %v248 = vpack.c.b16 %v221, %v212
  %v249 = vpack.c.b16 %v222, %v213
  %v250 = vpack.c.b16 %v223, %v214
  %v251 = vpack.c.b16 %v233, %v224
  %v252 = vpack.c.b16 %v234, %v225
  %v253 = vpack.c.b16 %v235, %v226
  %v254 = vpack.c.b16 %v236, %v227
  %v255 = vpack.c.b16 %v237, %v228
  %v256 = vpack.c.b16 %v238, %v229
  %v257 = vpack.c.b16 %v239, %v230
  %v258 = vpack.c.b16 %v240, %v231
  %v259 = vpack.c.b16 %v241, %v232
  %v422 = vunpack.c.l.b16 %v35
  %v423 = vunpack.c.l.b16 %v36
  %v424 = vunpack.c.l.b16 %v37
  %v425 = vunpack.c.l.b16 %v38
  %v426 = vunpack.c.l.b16 %v39
  %v427 = vunpack.c.l.b16 %v40
  %v428 = vunpack.c.l.b16 %v41
  %v429 = vunpack.c.l.b16 %v42
  %v430 = vunpack.c.l.b16 %v43
  %v431 = vunpack.c.l.b16 %v44
  %v432 = vunpack.c.l.b16 %v45
  %v433 = vunpack.c.l.b16 %v46
  %v434 = vunpack.c.l.b16 %v47
  %v435 = vunpack.c.l.b16 %v48
  %v436 = vunpack.c.l.b16 %v49
  %v437 = vunpack.c.l.b16 %v50
  %v438 = vunpack.c.l.b16 %v51
  %v439 = vunpack.c.l.b16 %v52
  %v440 = vunpack.c.l.b16 %v53
  %v441 = vunpack.c.l.b16 %v54
  %v442 = vunpack.c.l.b16 %v55
  %v443 = vunpack.c.l.b16 %v56
  %v444 = vunpack.c.l.b16 %v57
  %v445 = vunpack.c.l.b16 %v58
  %v446 = vunpack.c.l.b16 %v59
  %v447 = vunpack.c.l.b16 %v60
  %v448 = vunpack.c.l.b16 %v61
  %v449 = vunpack.c.l.b16 %v62
  %v450 = vunpack.c.l.b16 %v63
  %v451 = vunpack.c.l.b16 %v64
  %v452 = vunpack.c.l.b16 %v65
  %v453 = vunpack.c.l.b16 %v66
  %v454 = vunpack.c.l.b16 %v67
  %v455 = vunpack.c.l.b16 %v68
  %v456 = vunpack.c.l.b16 %v69
  %v457 = vunpack.c.l.b16 %v70
  %v458 = vunpack.c.l.b16 %v71
  %v459 = vunpack.c.l.b16 %v72
  %v460 = vunpack.c.l.b16 %v73
  %v461 = vunpack.c.l.b16 %v74
  %v462 = vunpack.c.l.b16 %v75
  %v463 = vunpack.c.l.b16 %v76
  %v464 = vunpack.c.l.b16 %v77
  %v465 = vunpack.c.l.b16 %v78
  %v466 = vunpack.c.l.b16 %v79
  %v467 = vunpack.c.l.b16 %v80
  %v468 = vunpack.c.l.b16 %v81
  %v469 = vunpack.c.l.b16 %v82
  %v470 = vunpack.c.l.b16 %v83
  %v471 = vunpack.c.l.b16 %v84
  %v472 = vunpack.c.l.b16 %v85
  %v473 = vunpack.c.l.b16 %v86
  %v474 = vunpack.c.l.b16 %v87
  %v475 = vunpack.c.l.b16 %v88
  %v476 = vunpack.c.l.b16 %v89
  %v477 = vunpack.c.l.b16 %v90
  %v478 = vunpack.c.l.b16 %v91
  %v479 = vunpack.c.l.b16 %v92
  %v480 = vunpack.c.l.b16 %v93
  %v481 = vunpack.c.l.b16 %v94
  %v482 = vunpack.c.l.b16 %v95
  %v483 = vunpack.c.l.b16 %v96
  %v484 = vunpack.c.l.b16 %v97
  %v485 = vunpack.c.l.b16 %v98
  %v486 = vunpack.c.l.b16 %v99
  %v487 = vunpack.c.l.b16 %v100
  %v488 = vunpack.c.l.b16 %v101
  %v489 = vunpack.c.l.b16 %v102
  %v490 = vunpack.c.l.b16 %v103
  %v491 = vunpack.c.l.b16 %v104
  %v492 = vunpack.c.l.b16 %v105
  %v493 = vunpack.c.l.b16 %v106
  %v494 = vunpack.c.l.b16 %v107
  %v495 = vunpack.c.l.b16 %v108
  %v496 = vunpack.c.l.b16 %v109
  %v497 = vunpack.c.l.b16 %v110
  %v498 = vunpack.c.l.b16 %v111
  %v499 = vunpack.c.l.b16 %v112
  %v500 = vunpack.c.l.b16 %v113
  %v501 = vunpack.c.l.b16 %v114
  %v502 = vunpack.c.l.b16 %v115
  %v503 = vunpack.c.l.b16 %v116
  %v504 = vunpack.c.l.b16 %v117
  %v505 = vunpack.c.l.b16 %v118
  %v506 = vunpack.c.l.b16 %v119
  %v507 = vunpack.c.l.b16 %v120
  %v508 = vunpack.c.l.b16 %v121
  %v509 = vunpack.c.l.b16 %v122
  %v510 = vunpack.c.l.b16 %v123
  %v511 = vunpack.c.l.b16 %v124
  %v512 = vunpack.c.l.b16 %v125
  %v513 = vunpack.c.l.b16 %v126
  %v514 = vunpack.c.l.b16 %v127
  %v515 = vunpack.c.l.b16 %v128
  %v516 = vunpack.c.l.b16 %v129
  %v517 = vunpack.c.l.b16 %v130
  %v518 = vunpack.c.l.b16 %v131
  %v519 = vunpack.c.l.b16 %v132
  %v520 = vunpack.c.l.b16 %v133
  %v521 = vunpack.c.l.b16 %v134
  %v522 = vunpack.c.l.b16 %v135
  %v523 = vunpack.c.l.b16 %v136
  %v524 = vunpack.c.l.b16 %v137
  %v525 = vunpack.c.l.b16 %v138
  %v526 = vunpack.c.l.b16 %v139
  %v527 = vunpack.c.l.b16 %v140
  %v528 = vunpack.c.l.b16 %v141
  %v529 = vunpack.c.l.b16 %v142
  %v530 = vunpack.c.l.b16 %v143
  %v531 = vunpack.c.l.b16 %v144
  %v532 = vunpack.c.l.b16 %v145
  %v533 = vunpack.c.l.b16 %v146
  %v534 = vunpack.c.l.b16 %v147
  %v535 = vunpack.c.l.b16 %v148
  %v536 = vunpack.c.l.b16 %v149
  %v537 = vunpack.c.l.b16 %v150
  %v538 = vunpack.c.l.b16 %v151
  %v539 = vunpack.c.l.b16 %v152
  %v540 = vunpack.c.l.b16 %v153
  %v541 = vunpack.c.l.b16 %v154
  %v542 = vunpack.c.l.b16 %v155
  %v543 = vunpack.c.l.b16 %v156
  %v544 = vunpack.c.l.b16 %v157
  %v545 = vunpack.c.l.b16 %v158
  %v546 = vunpack.c.l.b16 %v159
  %v547 = vunpack.c.l.b16 %v160
  %v548 = vunpack.c.l.b16 %v161
  %v549 = vunpack.c.l.b16 %v162
  %v550 = vunpack.c.l.b16 %v163
  %v551 = vunpack.c.l.b16 %v164
  %v552 = vunpack.c.l.b16 %v165
  %v553 = vunpack.c.l.b16 %v166
  %v554 = vunpack.c.l.b16 %v167
  %v555 = vunpack.c.l.b16 %v168
  %v556 = vunpack.c.l.b16 %v169
  %v557 = vunpack.c.l.b16 %v170
  %v558 = vunpack.c.l.b16 %v171
  %v559 = vunpack.c.l.b16 %v172
  %v560 = vunpack.c.l.b16 %v173
  %v561 = vunpack.c.l.b16 %v174
  %v562 = vunpack.c.l.b16 %v175
  %v563 = vunpack.c.l.b16 %v176
  %v564 = vunpack.c.l.b16 %v177
  %v565 = vunpack.c.l.b16 %v178
  %v566 = vpack.c.b16 %v423, %v422
  %v567 = vpack.c.b16 %v425, %v424
  %v568 = vpack.c.b16 %v427, %v426
  %v569 = vpack.c.b16 %v429, %v428
  %v570 = vpack.c.b16 %v431, %v430
  %v571 = vpack.c.b16 %v433, %v432
  %v572 = vpack.c.b16 %v435, %v434
  %v573 = vpack.c.b16 %v437, %v436
  %v574 = vpack.c.b16 %v439, %v438
  %v575 = vpack.c.b16 %v441, %v440
  %v576 = vpack.c.b16 %v443, %v442
  %v577 = vpack.c.b16 %v445, %v444
  %v578 = vpack.c.b16 %v447, %v446
  %v579 = vpack.c.b16 %v449, %v448
  %v580 = vpack.c.b16 %v451, %v450
  %v581 = vpack.c.b16 %v453, %v452
  %v582 = vpack.c.b16 %v455, %v454
  %v583 = vpack.c.b16 %v457, %v456
  %v584 = vpack.c.b16 %v459, %v458
  %v585 = vpack.c.b16 %v461, %v460
  %v586 = vpack.c.b16 %v463, %v462
  %v587 = vpack.c.b16 %v465, %v464
  %v588 = vpack.c.b16 %v467, %v466
  %v589 = vpack.c.b16 %v469, %v468
  %v590 = vpack.c.b16 %v471, %v470
  %v591 = vpack.c.b16 %v473, %v472
  %v592 = vpack.c.b16 %v475, %v474
  %v593 = vpack.c.b16 %v477, %v476
  %v594 = vpack.c.b16 %v479, %v478
  %v595 = vpack.c.b16 %v481, %v480
  %v596 = vpack.c.b16 %v483, %v482
  %v597 = vpack.c.b16 %v485, %v484
  %v598 = vpack.c.b16 %v487, %v486
  %v599 = vpack.c.b16 %v489, %v488
  %v600 = vpack.c.b16 %v491, %v490
  %v601 = vpack.c.b16 %v493, %v492
  %v602 = vpack.c.b16 %v495, %v494
  %v603 = vpack.c.b16 %v497, %v496
  %v604 = vpack.c.b16 %v499, %v498
  %v605 = vpack.c.b16 %v501, %v500
  %v606 = vpack.c.b16 %v503, %v502
  %v607 = vpack.c.b16 %v505, %v504
  %v608 = vpack.c.b16 %v507, %v506
  %v609 = vpack.c.b16 %v509, %v508
  %v610 = vpack.c.b16 %v511, %v510
  %v611 = vpack.c.b16 %v513, %v512
  %v612 = vpack.c.b16 %v515, %v514
  %v613 = vpack.c.b16 %v517, %v516
  %v614 = vpack.c.b16 %v519, %v518
  %v615 = vpack.c.b16 %v521, %v520
  %v616 = vpack.c.b16 %v523, %v522
  %v617 = vpack.c.b16 %v525, %v524
  %v618 = vpack.c.b16 %v527, %v526
  %v619 = vpack.c.b16 %v529, %v528
  %v620 = vpack.c.b16 %v531, %v530
  %v621 = vpack.c.b16 %v533, %v532
  %v622 = vpack.c.b16 %v535, %v534
  %v623 = vpack.c.b16 %v537, %v536
  %v624 = vpack.c.b16 %v539, %v538
  %v625 = vpack.c.b16 %v541, %v540
  %v626 = vpack.c.b16 %v543, %v542
  %v627 = vpack.c.b16 %v545, %v544
  %v628 = vpack.c.b16 %v547, %v546
  %v629 = vpack.c.b16 %v549, %v548
  %v630 = vpack.c.b16 %v551, %v550
  %v631 = vpack.c.b16 %v553, %v552
  %v632 = vpack.c.b16 %v555, %v554
  %v633 = vpack.c.b16 %v557, %v556
  %v634 = vpack.c.b16 %v559, %v558
  %v635 = vpack.c.b16 %v561, %v560
  %v636 = vpack.c.b16 %v563, %v562
  %v637 = vpack.c.b16 %v565, %v564
  %710 = vmatprep.subr.bf16.mxu0 0
  %711 = vmatpush1.bf16.msra.mxu0 %v573
  %712 = vmatprep.subr.bf16.mxu0 0
  %713 = vmatpush1.bf16.msra.mxu0 %v572
  %714 = vmatprep.subr.bf16.mxu0 0
  %715 = vmatpush1.bf16.msra.mxu0 %v571
  %716 = vmatprep.subr.bf16.mxu0 0
  %717 = vmatpush1.bf16.msra.mxu0 %v570
  %718 = vmatprep.subr.bf16.mxu0 0
  %719 = vmatpush1.bf16.msra.mxu0 %v569
  %720 = vmatprep.subr.bf16.mxu0 0
  %721 = vmatpush1.bf16.msra.mxu0 %v568
  %722 = vmatprep.subr.bf16.mxu0 0
  %723 = vmatpush1.bf16.msra.mxu0 %v567
  %724 = vmatprep.subr.bf16.mxu0 0
  %725 = vmatpush1.bf16.msra.mxu0 %v566
  %726 = vmatprep.subr.bf16.mxu0 0
  %727 = vmatpush2.bf16.msra.mxu0 %v581
  %728 = vmatprep.subr.bf16.mxu0 0
  %729 = vmatpush2.bf16.msra.mxu0 %v580
  %730 = vmatprep.subr.bf16.mxu0 0
  %731 = vmatpush2.bf16.msra.mxu0 %v579
  %732 = vmatprep.subr.bf16.mxu0 0
  %733 = vmatpush2.bf16.msra.mxu0 %v578
  %734 = vmatprep.subr.bf16.mxu0 0
  %735 = vmatpush2.bf16.msra.mxu0 %v577
  %736 = vmatprep.subr.bf16.mxu0 0
  %737 = vmatpush2.bf16.msra.mxu0 %v576
  %738 = vmatprep.subr.bf16.mxu0 0
  %739 = vmatpush2.bf16.msra.mxu0 %v575
  %740 = vmatprep.subr.bf16.mxu0 0
  %741 = vmatpush2.bf16.msra.mxu0 %v574
  %742 = vmatprep.mubr.bf16.mxu0 %v243
  %743 = vmatmul.mubr.bf16.gmra.mxu0 %v242
  %v744 = vpop.f32.mrf.mxu0
  %v745 = vadd.f32 %v184, %v744
  %v746 = vpop.f32.mrf.mxu0
  %v747 = vpop.f32.mrf.mxu0
  %v748 = vadd.f32 %v184, %v747
  %v749 = vpop.f32.mrf.mxu0
  %750 = vmatprep.mubr.bf16.mxu0 %v252
  %751 = vmatmul.mubr.bf16.gmra.mxu0 %v251
  %v752 = vpop.f32.mrf.mxu0
  %v753 = vadd.f32 %v184, %v752
  %v754 = vpop.f32.mrf.mxu0
  %v755 = vpop.f32.mrf.mxu0
  %v756 = vadd.f32 %v184, %v755
  %v757 = vpop.f32.mrf.mxu0
  %758 = vdwg.mxu0
  %759 = vmatprep.subr.bf16.mxu0 0
  %760 = vmatpush1.bf16.msra.mxu0 %v589
  %761 = vmatprep.subr.bf16.mxu0 0
  %762 = vmatpush1.bf16.msra.mxu0 %v588
  %763 = vmatprep.subr.bf16.mxu0 0
  %764 = vmatpush1.bf16.msra.mxu0 %v587
  %765 = vmatprep.subr.bf16.mxu0 0
  %766 = vmatpush1.bf16.msra.mxu0 %v586
  %767 = vmatprep.subr.bf16.mxu0 0
  %768 = vmatpush1.bf16.msra.mxu0 %v585
  %769 = vmatprep.subr.bf16.mxu0 0
  %770 = vmatpush1.bf16.msra.mxu0 %v584
  %771 = vmatprep.subr.bf16.mxu0 0
  %772 = vmatpush1.bf16.msra.mxu0 %v583
  %773 = vmatprep.subr.bf16.mxu0 0
  %774 = vmatpush1.bf16.msra.mxu0 %v582
  %775 = vmatprep.subr.bf16.mxu0 0
  %776 = vmatpush2.bf16.msra.mxu0 %v597
  %777 = vmatprep.subr.bf16.mxu0 0
  %778 = vmatpush2.bf16.msra.mxu0 %v596
  %779 = vmatprep.subr.bf16.mxu0 0
  %780 = vmatpush2.bf16.msra.mxu0 %v595
  %781 = vmatprep.subr.bf16.mxu0 0
  %782 = vmatpush2.bf16.msra.mxu0 %v594
  %783 = vmatprep.subr.bf16.mxu0 0
  %784 = vmatpush2.bf16.msra.mxu0 %v593
  %785 = vmatprep.subr.bf16.mxu0 0
  %786 = vmatpush2.bf16.msra.mxu0 %v592
  %787 = vmatprep.subr.bf16.mxu0 0
  %788 = vmatpush2.bf16.msra.mxu0 %v591
  %789 = vmatprep.subr.bf16.mxu0 0
  %790 = vmatpush2.bf16.msra.mxu0 %v590
  %791 = vmatprep.mubr.bf16.mxu0 %v245
  %792 = vmatmul.mubr.bf16.gmra.mxu0 %v244
  %v793 = vpop.f32.mrf.mxu0
  %v794 = vadd.f32 %v745, %v793
  %v795 = vpop.f32.mrf.mxu0
  %v796 = vpop.f32.mrf.mxu0
  %v797 = vadd.f32 %v748, %v796
  %v798 = vpop.f32.mrf.mxu0
  %799 = vmatprep.mubr.bf16.mxu0 %v254
  %800 = vmatmul.mubr.bf16.gmra.mxu0 %v253
  %v801 = vpop.f32.mrf.mxu0
  %v802 = vadd.f32 %v753, %v801
  %v803 = vpop.f32.mrf.mxu0
  %v804 = vpop.f32.mrf.mxu0
  %v805 = vadd.f32 %v756, %v804
  %v806 = vpop.f32.mrf.mxu0
  %807 = vdwg.mxu0
  %808 = vmatprep.subr.bf16.mxu0 0
  %809 = vmatpush1.bf16.msra.mxu0 %v605
  %810 = vmatprep.subr.bf16.mxu0 0
  %811 = vmatpush1.bf16.msra.mxu0 %v604
  %812 = vmatprep.subr.bf16.mxu0 0
  %813 = vmatpush1.bf16.msra.mxu0 %v603
  %814 = vmatprep.subr.bf16.mxu0 0
  %815 = vmatpush1.bf16.msra.mxu0 %v602
  %816 = vmatprep.subr.bf16.mxu0 0
  %817 = vmatpush1.bf16.msra.mxu0 %v601
  %818 = vmatprep.subr.bf16.mxu0 0
  %819 = vmatpush1.bf16.msra.mxu0 %v600
  %820 = vmatprep.subr.bf16.mxu0 0
  %821 = vmatpush1.bf16.msra.mxu0 %v599
  %822 = vmatprep.subr.bf16.mxu0 0
  %823 = vmatpush1.bf16.msra.mxu0 %v598
  %824 = vmatprep.subr.bf16.mxu0 0
  %825 = vmatpush2.bf16.msra.mxu0 %v613
  %826 = vmatprep.subr.bf16.mxu0 0
  %827 = vmatpush2.bf16.msra.mxu0 %v612
  %828 = vmatprep.subr.bf16.mxu0 0
  %829 = vmatpush2.bf16.msra.mxu0 %v611
  %830 = vmatprep.subr.bf16.mxu0 0
  %831 = vmatpush2.bf16.msra.mxu0 %v610
  %832 = vmatprep.subr.bf16.mxu0 0
  %833 = vmatpush2.bf16.msra.mxu0 %v609
  %834 = vmatprep.subr.bf16.mxu0 0
  %835 = vmatpush2.bf16.msra.mxu0 %v608
  %836 = vmatprep.subr.bf16.mxu0 0
  %837 = vmatpush2.bf16.msra.mxu0 %v607
  %838 = vmatprep.subr.bf16.mxu0 0
  %839 = vmatpush2.bf16.msra.mxu0 %v606
  %840 = vmatprep.mubr.bf16.mxu0 %v247
  %841 = vmatmul.mubr.bf16.gmra.mxu0 %v246
  %v842 = vpop.f32.mrf.mxu0
  %v843 = vadd.f32 %v794, %v842
  %v844 = vpop.f32.mrf.mxu0
  %v845 = vpop.f32.mrf.mxu0
  %v846 = vadd.f32 %v797, %v845
  %v847 = vpop.f32.mrf.mxu0
  %848 = vmatprep.mubr.bf16.mxu0 %v256
  %849 = vmatmul.mubr.bf16.gmra.mxu0 %v255
  %v850 = vpop.f32.mrf.mxu0
  %v851 = vadd.f32 %v802, %v850
  %v852 = vpop.f32.mrf.mxu0
  %v853 = vpop.f32.mrf.mxu0
  %v854 = vadd.f32 %v805, %v853
  %v855 = vpop.f32.mrf.mxu0
  %856 = vdwg.mxu0
  %857 = vmatprep.subr.bf16.mxu0 0
  %858 = vmatpush1.bf16.msra.mxu0 %v621
  %859 = vmatprep.subr.bf16.mxu0 0
  %860 = vmatpush1.bf16.msra.mxu0 %v620
  %861 = vmatprep.subr.bf16.mxu0 0
  %862 = vmatpush1.bf16.msra.mxu0 %v619
  %863 = vmatprep.subr.bf16.mxu0 0
  %864 = vmatpush1.bf16.msra.mxu0 %v618
  %865 = vmatprep.subr.bf16.mxu0 0
  %866 = vmatpush1.bf16.msra.mxu0 %v617
  %867 = vmatprep.subr.bf16.mxu0 0
  %868 = vmatpush1.bf16.msra.mxu0 %v616
  %869 = vmatprep.subr.bf16.mxu0 0
  %870 = vmatpush1.bf16.msra.mxu0 %v615
  %871 = vmatprep.subr.bf16.mxu0 0
  %872 = vmatpush1.bf16.msra.mxu0 %v614
  %873 = vmatprep.subr.bf16.mxu0 0
  %874 = vmatpush2.bf16.msra.mxu0 %v629
  %875 = vmatprep.subr.bf16.mxu0 0
  %876 = vmatpush2.bf16.msra.mxu0 %v628
  %877 = vmatprep.subr.bf16.mxu0 0
  %878 = vmatpush2.bf16.msra.mxu0 %v627
  %879 = vmatprep.subr.bf16.mxu0 0
  %880 = vmatpush2.bf16.msra.mxu0 %v626
  %881 = vmatprep.subr.bf16.mxu0 0
  %882 = vmatpush2.bf16.msra.mxu0 %v625
  %883 = vmatprep.subr.bf16.mxu0 0
  %884 = vmatpush2.bf16.msra.mxu0 %v624
  %885 = vmatprep.subr.bf16.mxu0 0
  %886 = vmatpush2.bf16.msra.mxu0 %v623
  %887 = vmatprep.subr.bf16.mxu0 0
  %888 = vmatpush2.bf16.msra.mxu0 %v622
  %889 = vmatprep.mubr.bf16.mxu0 %v249
  %890 = vmatmul.mubr.bf16.gmra.mxu0 %v248
  %v891 = vpop.f32.mrf.mxu0
  %v892 = vadd.f32 %v843, %v891
  %v893 = vpop.f32.mrf.mxu0
  %v894 = vpop.f32.mrf.mxu0
  %v895 = vadd.f32 %v846, %v894
  %v896 = vpop.f32.mrf.mxu0
  %897 = vmatprep.mubr.bf16.mxu0 %v258
  %898 = vmatmul.mubr.bf16.gmra.mxu0 %v257
  %v899 = vpop.f32.mrf.mxu0
  %v900 = vadd.f32 %v851, %v899
  %v901 = vpop.f32.mrf.mxu0
  %v902 = vpop.f32.mrf.mxu0
  %v903 = vadd.f32 %v854, %v902
  %v904 = vpop.f32.mrf.mxu0
  %905 = vdwg.mxu0
  %906 = vmatprep.subr.bf16.mxu0 0
  %907 = vmatpush1.bf16.msra.mxu0 %v637
  %908 = vmatprep.subr.bf16.mxu0 0
  %909 = vmatpush1.bf16.msra.mxu0 %v636
  %910 = vmatprep.subr.bf16.mxu0 0
  %911 = vmatpush1.bf16.msra.mxu0 %v635
  %912 = vmatprep.subr.bf16.mxu0 0
  %913 = vmatpush1.bf16.msra.mxu0 %v634
  %914 = vmatprep.subr.bf16.mxu0 0
  %915 = vmatpush1.bf16.msra.mxu0 %v633
  %916 = vmatprep.subr.bf16.mxu0 0
  %917 = vmatpush1.bf16.msra.mxu0 %v632
  %918 = vmatprep.subr.bf16.mxu0 0
  %919 = vmatpush1.bf16.msra.mxu0 %v631
  %920 = vmatprep.subr.bf16.mxu0 0
  %921 = vmatpush1.bf16.msra.mxu0 %v630
  %922 = vmatprep.subr.bf16.mxu0 0
  %923 = vmatpush2.bf16.msra.mxu0 0
  %924 = vmatprep.subr.bf16.mxu0 0
  %925 = vmatpush2.bf16.msra.mxu0 0
  %926 = vmatprep.subr.bf16.mxu0 0
  %927 = vmatpush2.bf16.msra.mxu0 0
  %928 = vmatprep.subr.bf16.mxu0 0
  %929 = vmatpush2.bf16.msra.mxu0 0
  %930 = vmatprep.subr.bf16.mxu0 0
  %931 = vmatpush2.bf16.msra.mxu0 0
  %932 = vmatprep.subr.bf16.mxu0 0
  %933 = vmatpush2.bf16.msra.mxu0 0
  %934 = vmatprep.subr.bf16.mxu0 0
  %935 = vmatpush2.bf16.msra.mxu0 0
  %936 = vmatprep.subr.bf16.mxu0 0
  %937 = vmatpush2.bf16.msra.mxu0 0
  %938 = vmatprep.mubr.bf16.mxu0 0
  %939 = vmatmul.mubr.bf16.gmra.mxu0 %v250
  %v940 = vpop.f32.mrf.mxu0
  %v941 = vadd.f32 %v892, %v940
  %v942 = vpop.f32.mrf.mxu0
  %v943 = vpop.f32.mrf.mxu0
  %v944 = vadd.f32 %v895, %v943
  %v945 = vpop.f32.mrf.mxu0
  %946 = vmatprep.mubr.bf16.mxu0 0
  %947 = vmatmul.mubr.bf16.gmra.mxu0 %v259
  %v948 = vpop.f32.mrf.mxu0
  %v949 = vadd.f32 %v900, %v948
  %v950 = vpop.f32.mrf.mxu0
  %v951 = vpop.f32.mrf.mxu0
  %v952 = vadd.f32 %v903, %v951
  %v953 = vpop.f32.mrf.mxu0
  %954 = vdwg.mxu0
  %v955 = vmax.f32 %v941, 0.0
  %v956 = vmax.f32 %v944, 0.0
  %v957 = vmax.f32 %v949, 0.0
  %v958 = vmax.f32 %v952, 0.0
  %v959 = vpack.c.bf16 %v956, %v955
  %v960 = vpack.c.bf16 %v958, %v957
  %v963 = vunpack.c.l.b16 %v959
  %v964 = vunpack.c.h.b16 %v959
  %v965 = vunpack.c.l.b16 %v960
  %v966 = vunpack.c.h.b16 %v960
  %v967 = vpack.c.b16 %v963, %v963
  %v968 = vpack.c.b16 %v964, %v964
  %v969 = vpack.c.b16 %v965, %v965
  %v970 = vpack.c.b16 %v966, %v966
  %975 = vst [vmem:[%s3] sm:$0xf] %v967
  %976 = vst [vmem:[%s3 + $0x4] sm:$0xf] %v968
  %977 = vst [vmem:[%s3 + $0x8] sm:$0xf] %v969
  %978 = vst [vmem:[%s3 + $0xc] sm:$0xf] %v970
  // Predicated region
  $region14: #{_lambda_.18} parent=0 // pred_check
    _
  $region15: #{_lambda_.18} parent=0 // pred_check_branch
    %980 = sbr.rel (0) target = $region17
  $region16: #{_lambda_.18} parent=0 // pred_region
    _
  $region17: #{_lambda_.18} parent=0 // pred_fallthru
    _
  // Predicated region
  $region18: #{_lambda_.18} parent=0 // pred_check
    _
  $region19: #{_lambda_.18} parent=0 // pred_check_branch
    %982 = sbr.rel (0) target = $region21
  $region20: #{_lambda_.18} parent=0 // pred_region
    _
  $region21: #{_lambda_.18} parent=0 // pred_fallthru
    _

</llo_original>
